<compile_context>
chip_gen: v5e
topology: v5e:2x2
jax: 0.10.0
libtpu: 0.0.40
codegen_flags: <defaults>
</compile_context>

<pallas_src>
import functools

import jax
import jax.numpy as jnp
from jax import lax
from jax.experimental import pallas as pl
from jax.experimental.pallas import tpu as pltpu


def _round_up(x, m):
    return (x + m - 1) // m * m


def _rpn_head_kernel(H, W, x_ref, wc_ref, bc_ref, wh_ref, bh_ref, out_ref, t_ref):
    """One batch element per grid step.

    x_ref  : (1, (H+3)*(W+2), CP)  padded NHWC feature map, spatial flattened
    wc_ref : (9, CP, CP)           3x3 conv weights, tap k = dh*3+dw
    bc_ref : (1, CP)               conv bias (channel-padded)
    wh_ref : (CP, P)               fused [w_obj | w_del | 0] 1x1 head weights
    bh_ref : (1, P)                fused [b_obj | b_del | 0] head bias
    out_ref: (1, H*(W+2), P)       fused head output (lane-dense, padded)
    t_ref  : (H*(W+2), CP) f32     VMEM scratch for relu(conv(x)+b)
    """
    Wp = W + 2
    L = H * Wp
    CP = wc_ref.shape[1]

    # Fold the conv bias into the accumulator init (bias loaded/broadcast once).
    t_ref[...] = jnp.broadcast_to(bc_ref[...], (L, CP)).astype(jnp.float32)

    # 3x3 "SAME" conv as 9 large shifted-slab matmuls on the MXU.
    for k in range(9):
        off = (k // 3) * Wp + (k % 3)                 # static offset per tap
        t_ref[...] += jnp.dot(x_ref[0, off:off + L, :], wc_ref[k],
                              preferred_element_type=jnp.float32)

    # ReLU in place.
    t_ref[...] = jnp.maximum(t_ref[...], 0.0)

    # Fused 1x1 heads: one lane-dense (L, CP) @ (CP, P) matmul + bias.
    out = jnp.dot(t_ref[...], wh_ref[...], preferred_element_type=jnp.float32)
    out_ref[0] = (out + bh_ref[...]).astype(out_ref.dtype)


def _pack_params(params, dtype=jnp.float32):
    """Pad channels to 128 lanes and fuse the two 1x1 heads into one matrix."""
    C = params["w_conv"].shape[2]
    A = params["w_obj"].shape[1]
    AD = params["w_del"].shape[1]
    CP = _round_up(C, 128)
    P = _round_up(A + AD, 128)

    wc = jnp.zeros((3, 3, CP, CP), dtype).at[:, :, :C, :C].set(params["w_conv"])
    wc = wc.reshape(9, CP, CP)
    bc = jnp.zeros((1, CP), dtype).at[:, :C].set(params["b_conv"])

    wh = jnp.zeros((CP, P), dtype)
    wh = wh.at[:C, :A].set(params["w_obj"])
    wh = wh.at[:C, A:A + AD].set(params["w_del"])
    bh = jnp.zeros((1, P), dtype)
    bh = bh.at[:, :A].set(params["b_obj"])
    bh = bh.at[:, A:A + AD].set(params["b_del"])

    return {"wc": wc, "bc": bc, "wh": wh, "bh": bh,
            "C": C, "CP": CP, "A": A, "AD": AD, "P": P}


def rpn_head_single_level(x_nchw, packed):
    """Apply the RPN head to one feature level (NCHW in, PyTorch-shaped outs)."""
    N, C, H, W = x_nchw.shape
    CP, A, AD, P = packed["CP"], packed["A"], packed["AD"], packed["P"]
    Wp, Hp = W + 2, H + 3          # left/right pad 1; top pad 1, bottom pad 2
    L = H * Wp                     # (bottom pad 2 keeps tap slabs in bounds)

    # glue: NCHW -> NHWC, zero-pad spatial + channels, flatten spatial axes so
    # the kernel can take one shifted contiguous slab per 3x3 tap.
    x = jnp.transpose(x_nchw, (0, 2, 3, 1))
    x = jnp.pad(x, ((0, 0), (1, 2), (1, 1), (0, CP - C)))
    x = x.reshape(N, Hp * Wp, CP)

    kernel = functools.partial(_rpn_head_kernel, H, W)

    out_flat = pl.pallas_call(
        kernel,
        out_shape=jax.ShapeDtypeStruct((N, L, P), x_nchw.dtype),
        grid=(N,),
        in_specs=[
            pl.BlockSpec((1, Hp * Wp, CP), lambda n: (n, 0, 0)),
            pl.BlockSpec((9, CP, CP), lambda n: (0, 0, 0)),
            pl.BlockSpec((1, CP), lambda n: (0, 0)),
            pl.BlockSpec((CP, P), lambda n: (0, 0)),
            pl.BlockSpec((1, P), lambda n: (0, 0)),
        ],
        out_specs=pl.BlockSpec((1, L, P), lambda n: (n, 0, 0)),
        scratch_shapes=[pltpu.VMEM((L, CP), jnp.float32)],
        compiler_params=pltpu.CompilerParams(
            dimension_semantics=("parallel",),
            vmem_limit_bytes=32 * 1024 * 1024,
        ),
    )(x, packed["wc"], packed["bc"], packed["wh"], packed["bh"])

    # glue: drop the 2 garbage columns per row and the lane padding, split the
    # fused head output, and go back to PyTorch conventions.
    out = out_flat.reshape(N, H, Wp, P)[:, :, :W, :]
    obj = jnp.transpose(out[..., :A], (0, 3, 1, 2))            # (N, A, H, W)
    dlt = jnp.transpose(out[..., A:A + AD], (0, 3, 1, 2))      # (N, A*box_dim, H, W)
    return obj, dlt


def rpn_head_forward(features, params):
    """features: list of NCHW tensors. Returns (list of logits, list of deltas)."""
    packed = _pack_params(params, dtype=features[0].dtype)
    pred_objectness_logits = []
    pred_anchor_deltas = []
    for x in features:
        obj, dlt = rpn_head_single_level(x, packed)
        pred_objectness_logits.append(obj)
        pred_anchor_deltas.append(dlt)
    return pred_objectness_logits, pred_anchor_deltas


def init_params(key, in_channels, num_anchors, box_dim=4, dtype=jnp.float32):
    """Same init as the PyTorch module: normal(std=0.01) weights, zero biases."""
    k1, k2, k3 = jax.random.split(key, 3)
    C, A, AD = in_channels, num_anchors, num_anchors * box_dim
    return {
        "w_conv": 0.01 * jax.random.normal(k1, (3, 3, C, C), dtype),   # (kh,kw,cin,cout)
        "b_conv": jnp.zeros((1, C), dtype),
        "w_obj": 0.01 * jax.random.normal(k2, (C, A), dtype),
        "b_obj": jnp.zeros((1, A), dtype),
        "w_del": 0.01 * jax.random.normal(k3, (C, AD), dtype),
        "b_del": jnp.zeros((1, AD), dtype),
    }


def _ref_single_level(x_nchw, params):
    """Pure-JAX reference for correctness checking."""
    x_nhwc = jnp.transpose(x_nchw, (0, 2, 3, 1))
    t = lax.conv_general_dilated(
        x_nhwc, params["w_conv"], window_strides=(1, 1), padding="SAME",
        dimension_numbers=("NHWC", "HWIO", "NHWC"))
    t = jnp.maximum(t + params["b_conv"], 0.0)
    obj = jnp.einsum("nhwc,ca->nhwa", t, params["w_obj"]) + params["b_obj"]
    dlt = jnp.einsum("nhwc,cd->nhwd", t, params["w_del"]) + params["b_del"]
    return (jnp.transpose(obj, (0, 3, 1, 2)), jnp.transpose(dlt, (0, 3, 1, 2)))


if __name__ == "__main__":
    key = jax.random.PRNGKey(0)
    kp, kx1, kx2 = jax.random.split(key, 3)

    in_channels = 4
    num_anchors = 3
    box_dim = 4
    params = init_params(kp, in_channels, num_anchors, box_dim)

    # Two feature levels (like an FPN), NCHW like PyTorch.
    f1 = jax.random.normal(kx1, (2, in_channels, 16, 16), jnp.float32)
    f2 = jax.random.normal(kx2, (2, in_channels, 8, 8), jnp.float32)
    features = [f1, f2]

    objs, dlts = rpn_head_forward(features, params)
    jax.block_until_ready(objs)
    jax.block_until_ready(dlts)

    # Shape checks (match PyTorch output conventions).
    assert objs[0].shape == (2, num_anchors, 16, 16)
    assert dlts[0].shape == (2, num_anchors * box_dim, 16, 16)
    assert objs[1].shape == (2, num_anchors, 8, 8)
    assert dlts[1].shape == (2, num_anchors * box_dim, 8, 8)

    # Numerical check against a pure-JAX reference.
    for x, o, d in zip(features, objs, dlts):
        o_ref, d_ref = _ref_single_level(x, params)
        assert jnp.allclose(o, o_ref, atol=1e-5, rtol=1e-5), "objectness mismatch"
        assert jnp.allclose(d, d_ref, atol=1e-5, rtol=1e-5), "anchor-delta mismatch"

    print("KERNEL_OK")
</pallas_src>

<mosaic_0001>
module attributes {stable_mosaic.version = 11 : i64} {
  func.func @_rpn_head_kernel(%arg0: i32, %arg1: memref<1x342x128xf32, #tpu.memory_space<vmem>>, %arg2: memref<9x128x128xf32, #tpu.memory_space<vmem>>, %arg3: memref<1x128xf32, #tpu.memory_space<vmem>>, %arg4: memref<128x128xf32, #tpu.memory_space<vmem>>, %arg5: memref<1x128xf32, #tpu.memory_space<vmem>>, %arg6: memref<1x288x128xf32, #tpu.memory_space<vmem>>, %arg7: memref<288x128xf32, #tpu.memory_space<vmem>>) attributes {dimension_semantics = [#tpu.dimension_semantics<parallel>], iteration_bounds = array<i64: 2>, scalar_prefetch = 0 : i64, scratch_operands = 1 : i64, tpu.core_type = #tpu.core_type<tc>, window_params = [{transform_indices = @transform_0, window_bounds = array<i64: 1, 342, 128>}, {pipeline_mode = #tpu.pipeline_mode<synchronous>, transform_indices = @transform_1, window_bounds = array<i64: 9, 128, 128>}, {pipeline_mode = #tpu.pipeline_mode<synchronous>, transform_indices = @transform_2, window_bounds = array<i64: 1, 128>}, {pipeline_mode = #tpu.pipeline_mode<synchronous>, transform_indices = @transform_3, window_bounds = array<i64: 128, 128>}, {pipeline_mode = #tpu.pipeline_mode<synchronous>, transform_indices = @transform_4, window_bounds = array<i64: 1, 128>}, {transform_indices = @transform_5, window_bounds = array<i64: 1, 288, 128>}]} {
    %c0 = arith.constant 0 : index
    %c0_0 = arith.constant 0 : index
    %0 = vector.load %arg3[%c0, %c0_0] : memref<1x128xf32, #tpu.memory_space<vmem>>, vector<1x128xf32>
    %1 = vector.shape_cast %0 : vector<1x128xf32> to vector<1x128xf32>
    %2 = vector.broadcast %1 : vector<1x128xf32> to vector<288x128xf32>
    %c0_1 = arith.constant 0 : index
    %c0_2 = arith.constant 0 : index
    %3 = vector.load %arg7[%c0_1, %c0_2] : memref<288x128xf32, #tpu.memory_space<vmem>>, vector<288x128xf32>
    tpu.vector_store %arg7[%c0_1, %c0_2], %2 {strides = array<i32>} : memref<288x128xf32, #tpu.memory_space<vmem>>, vector<288x128xf32>,
    %c0_3 = arith.constant 0 : index
    %c0_4 = arith.constant 0 : index
    %4 = vector.load %arg7[%c0_3, %c0_4] : memref<288x128xf32, #tpu.memory_space<vmem>>, vector<288x128xf32>
    %c0_5 = arith.constant 0 : index
    %c0_6 = arith.constant 0 : index
    %c0_7 = arith.constant 0 : index
    %5 = vector.load %arg1[%c0_5, %c0_6, %c0_7] : memref<1x342x128xf32, #tpu.memory_space<vmem>>, vector<1x288x128xf32>
    %6 = vector.shape_cast %5 : vector<1x288x128xf32> to vector<288x128xf32>
    %c0_8 = arith.constant 0 : index
    %c0_9 = arith.constant 0 : index
    %c0_10 = arith.constant 0 : index
    %7 = vector.load %arg2[%c0_8, %c0_9, %c0_10] : memref<9x128x128xf32, #tpu.memory_space<vmem>>, vector<1x128x128xf32>
    %8 = vector.shape_cast %7 : vector<1x128x128xf32> to vector<128x128xf32>
    %cst = arith.constant dense<0.000000e+00> : vector<288x128xf32>
    %9 = tpu.matmul %6, %8, %cst {dimension_numbers = #tpu.dot_dimension_numbers<[1], [0], [0], [1], [0, 0, 1, 1], [], []>} : vector<288x128xf32>, vector<128x128xf32>, vector<288x128xf32> -> vector<288x128xf32>
    %10 = arith.addf %4, %9 : vector<288x128xf32>
    %c0_11 = arith.constant 0 : index
    %c0_12 = arith.constant 0 : index
    %11 = vector.load %arg7[%c0_11, %c0_12] : memref<288x128xf32, #tpu.memory_space<vmem>>, vector<288x128xf32>
    tpu.vector_store %arg7[%c0_11, %c0_12], %10 {strides = array<i32>} : memref<288x128xf32, #tpu.memory_space<vmem>>, vector<288x128xf32>,
    %c0_13 = arith.constant 0 : index
    %c0_14 = arith.constant 0 : index
    %12 = vector.load %arg7[%c0_13, %c0_14] : memref<288x128xf32, #tpu.memory_space<vmem>>, vector<288x128xf32>
    %c0_15 = arith.constant 0 : index
    %c1 = arith.constant 1 : index
    %c0_16 = arith.constant 0 : index
    %13 = vector.load %arg1[%c0_15, %c1, %c0_16] : memref<1x342x128xf32, #tpu.memory_space<vmem>>, vector<1x288x128xf32>
    %14 = vector.shape_cast %13 : vector<1x288x128xf32> to vector<288x128xf32>
    %c1_17 = arith.constant 1 : index
    %c0_18 = arith.constant 0 : index
    %c0_19 = arith.constant 0 : index
    %15 = vector.load %arg2[%c1_17, %c0_18, %c0_19] : memref<9x128x128xf32, #tpu.memory_space<vmem>>, vector<1x128x128xf32>
    %16 = vector.shape_cast %15 : vector<1x128x128xf32> to vector<128x128xf32>
    %cst_20 = arith.constant dense<0.000000e+00> : vector<288x128xf32>
    %17 = tpu.matmul %14, %16, %cst_20 {dimension_numbers = #tpu.dot_dimension_numbers<[1], [0], [0], [1], [0, 0, 1, 1], [], []>} : vector<288x128xf32>, vector<128x128xf32>, vector<288x128xf32> -> vector<288x128xf32>
    %18 = arith.addf %12, %17 : vector<288x128xf32>
    %c0_21 = arith.constant 0 : index
    %c0_22 = arith.constant 0 : index
    %19 = vector.load %arg7[%c0_21, %c0_22] : memref<288x128xf32, #tpu.memory_space<vmem>>, vector<288x128xf32>
    tpu.vector_store %arg7[%c0_21, %c0_22], %18 {strides = array<i32>} : memref<288x128xf32, #tpu.memory_space<vmem>>, vector<288x128xf32>,
    %c0_23 = arith.constant 0 : index
    %c0_24 = arith.constant 0 : index
    %20 = vector.load %arg7[%c0_23, %c0_24] : memref<288x128xf32, #tpu.memory_space<vmem>>, vector<288x128xf32>
    %c0_25 = arith.constant 0 : index
    %c2 = arith.constant 2 : index
    %c0_26 = arith.constant 0 : index
    %21 = vector.load %arg1[%c0_25, %c2, %c0_26] : memref<1x342x128xf32, #tpu.memory_space<vmem>>, vector<1x288x128xf32>
    %22 = vector.shape_cast %21 : vector<1x288x128xf32> to vector<288x128xf32>
    %c2_27 = arith.constant 2 : index
    %c0_28 = arith.constant 0 : index
    %c0_29 = arith.constant 0 : index
    %23 = vector.load %arg2[%c2_27, %c0_28, %c0_29] : memref<9x128x128xf32, #tpu.memory_space<vmem>>, vector<1x128x128xf32>
    %24 = vector.shape_cast %23 : vector<1x128x128xf32> to vector<128x128xf32>
    %cst_30 = arith.constant dense<0.000000e+00> : vector<288x128xf32>
    %25 = tpu.matmul %22, %24, %cst_30 {dimension_numbers = #tpu.dot_dimension_numbers<[1], [0], [0], [1], [0, 0, 1, 1], [], []>} : vector<288x128xf32>, vector<128x128xf32>, vector<288x128xf32> -> vector<288x128xf32>
    %26 = arith.addf %20, %25 : vector<288x128xf32>
    %c0_31 = arith.constant 0 : index
    %c0_32 = arith.constant 0 : index
    %27 = vector.load %arg7[%c0_31, %c0_32] : memref<288x128xf32, #tpu.memory_space<vmem>>, vector<288x128xf32>
    tpu.vector_store %arg7[%c0_31, %c0_32], %26 {strides = array<i32>} : memref<288x128xf32, #tpu.memory_space<vmem>>, vector<288x128xf32>,
    %c0_33 = arith.constant 0 : index
    %c0_34 = arith.constant 0 : index
    %28 = vector.load %arg7[%c0_33, %c0_34] : memref<288x128xf32, #tpu.memory_space<vmem>>, vector<288x128xf32>
    %c0_35 = arith.constant 0 : index
    %c18 = arith.constant 18 : index
    %c0_36 = arith.constant 0 : index
    %29 = vector.load %arg1[%c0_35, %c18, %c0_36] : memref<1x342x128xf32, #tpu.memory_space<vmem>>, vector<1x288x128xf32>
    %30 = vector.shape_cast %29 : vector<1x288x128xf32> to vector<288x128xf32>
    %c3 = arith.constant 3 : index
    %c0_37 = arith.constant 0 : index
    %c0_38 = arith.constant 0 : index
    %31 = vector.load %arg2[%c3, %c0_37, %c0_38] : memref<9x128x128xf32, #tpu.memory_space<vmem>>, vector<1x128x128xf32>
    %32 = vector.shape_cast %31 : vector<1x128x128xf32> to vector<128x128xf32>
    %cst_39 = arith.constant dense<0.000000e+00> : vector<288x128xf32>
    %33 = tpu.matmul %30, %32, %cst_39 {dimension_numbers = #tpu.dot_dimension_numbers<[1], [0], [0], [1], [0, 0, 1, 1], [], []>} : vector<288x128xf32>, vector<128x128xf32>, vector<288x128xf32> -> vector<288x128xf32>
    %34 = arith.addf %28, %33 : vector<288x128xf32>
    %c0_40 = arith.constant 0 : index
    %c0_41 = arith.constant 0 : index
    %35 = vector.load %arg7[%c0_40, %c0_41] : memref<288x128xf32, #tpu.memory_space<vmem>>, vector<288x128xf32>
    tpu.vector_store %arg7[%c0_40, %c0_41], %34 {strides = array<i32>} : memref<288x128xf32, #tpu.memory_space<vmem>>, vector<288x128xf32>,
    %c0_42 = arith.constant 0 : index
    %c0_43 = arith.constant 0 : index
    %36 = vector.load %arg7[%c0_42, %c0_43] : memref<288x128xf32, #tpu.memory_space<vmem>>, vector<288x128xf32>
    %c0_44 = arith.constant 0 : index
    %c19 = arith.constant 19 : index
    %c0_45 = arith.constant 0 : index
    %37 = vector.load %arg1[%c0_44, %c19, %c0_45] : memref<1x342x128xf32, #tpu.memory_space<vmem>>, vector<1x288x128xf32>
    %38 = vector.shape_cast %37 : vector<1x288x128xf32> to vector<288x128xf32>
    %c4 = arith.constant 4 : index
    %c0_46 = arith.constant 0 : index
    %c0_47 = arith.constant 0 : index
    %39 = vector.load %arg2[%c4, %c0_46, %c0_47] : memref<9x128x128xf32, #tpu.memory_space<vmem>>, vector<1x128x128xf32>
    %40 = vector.shape_cast %39 : vector<1x128x128xf32> to vector<128x128xf32>
    %cst_48 = arith.constant dense<0.000000e+00> : vector<288x128xf32>
    %41 = tpu.matmul %38, %40, %cst_48 {dimension_numbers = #tpu.dot_dimension_numbers<[1], [0], [0], [1], [0, 0, 1, 1], [], []>} : vector<288x128xf32>, vector<128x128xf32>, vector<288x128xf32> -> vector<288x128xf32>
    %42 = arith.addf %36, %41 : vector<288x128xf32>
    %c0_49 = arith.constant 0 : index
    %c0_50 = arith.constant 0 : index
    %43 = vector.load %arg7[%c0_49, %c0_50] : memref<288x128xf32, #tpu.memory_space<vmem>>, vector<288x128xf32>
    tpu.vector_store %arg7[%c0_49, %c0_50], %42 {strides = array<i32>} : memref<288x128xf32, #tpu.memory_space<vmem>>, vector<288x128xf32>,
    %c0_51 = arith.constant 0 : index
    %c0_52 = arith.constant 0 : index
    %44 = vector.load %arg7[%c0_51, %c0_52] : memref<288x128xf32, #tpu.memory_space<vmem>>, vector<288x128xf32>
    %c0_53 = arith.constant 0 : index
    %c20 = arith.constant 20 : index
    %c0_54 = arith.constant 0 : index
    %45 = vector.load %arg1[%c0_53, %c20, %c0_54] : memref<1x342x128xf32, #tpu.memory_space<vmem>>, vector<1x288x128xf32>
    %46 = vector.shape_cast %45 : vector<1x288x128xf32> to vector<288x128xf32>
    %c5 = arith.constant 5 : index
    %c0_55 = arith.constant 0 : index
    %c0_56 = arith.constant 0 : index
    %47 = vector.load %arg2[%c5, %c0_55, %c0_56] : memref<9x128x128xf32, #tpu.memory_space<vmem>>, vector<1x128x128xf32>
    %48 = vector.shape_cast %47 : vector<1x128x128xf32> to vector<128x128xf32>
    %cst_57 = arith.constant dense<0.000000e+00> : vector<288x128xf32>
    %49 = tpu.matmul %46, %48, %cst_57 {dimension_numbers = #tpu.dot_dimension_numbers<[1], [0], [0], [1], [0, 0, 1, 1], [], []>} : vector<288x128xf32>, vector<128x128xf32>, vector<288x128xf32> -> vector<288x128xf32>
    %50 = arith.addf %44, %49 : vector<288x128xf32>
    %c0_58 = arith.constant 0 : index
    %c0_59 = arith.constant 0 : index
    %51 = vector.load %arg7[%c0_58, %c0_59] : memref<288x128xf32, #tpu.memory_space<vmem>>, vector<288x128xf32>
    tpu.vector_store %arg7[%c0_58, %c0_59], %50 {strides = array<i32>} : memref<288x128xf32, #tpu.memory_space<vmem>>, vector<288x128xf32>,
    %c0_60 = arith.constant 0 : index
    %c0_61 = arith.constant 0 : index
    %52 = vector.load %arg7[%c0_60, %c0_61] : memref<288x128xf32, #tpu.memory_space<vmem>>, vector<288x128xf32>
    %c0_62 = arith.constant 0 : index
    %c36 = arith.constant 36 : index
    %c0_63 = arith.constant 0 : index
    %53 = vector.load %arg1[%c0_62, %c36, %c0_63] : memref<1x342x128xf32, #tpu.memory_space<vmem>>, vector<1x288x128xf32>
    %54 = vector.shape_cast %53 : vector<1x288x128xf32> to vector<288x128xf32>
    %c6 = arith.constant 6 : index
    %c0_64 = arith.constant 0 : index
    %c0_65 = arith.constant 0 : index
    %55 = vector.load %arg2[%c6, %c0_64, %c0_65] : memref<9x128x128xf32, #tpu.memory_space<vmem>>, vector<1x128x128xf32>
    %56 = vector.shape_cast %55 : vector<1x128x128xf32> to vector<128x128xf32>
    %cst_66 = arith.constant dense<0.000000e+00> : vector<288x128xf32>
    %57 = tpu.matmul %54, %56, %cst_66 {dimension_numbers = #tpu.dot_dimension_numbers<[1], [0], [0], [1], [0, 0, 1, 1], [], []>} : vector<288x128xf32>, vector<128x128xf32>, vector<288x128xf32> -> vector<288x128xf32>
    %58 = arith.addf %52, %57 : vector<288x128xf32>
    %c0_67 = arith.constant 0 : index
    %c0_68 = arith.constant 0 : index
    %59 = vector.load %arg7[%c0_67, %c0_68] : memref<288x128xf32, #tpu.memory_space<vmem>>, vector<288x128xf32>
    tpu.vector_store %arg7[%c0_67, %c0_68], %58 {strides = array<i32>} : memref<288x128xf32, #tpu.memory_space<vmem>>, vector<288x128xf32>,
    %c0_69 = arith.constant 0 : index
    %c0_70 = arith.constant 0 : index
    %60 = vector.load %arg7[%c0_69, %c0_70] : memref<288x128xf32, #tpu.memory_space<vmem>>, vector<288x128xf32>
    %c0_71 = arith.constant 0 : index
    %c37 = arith.constant 37 : index
    %c0_72 = arith.constant 0 : index
    %61 = vector.load %arg1[%c0_71, %c37, %c0_72] : memref<1x342x128xf32, #tpu.memory_space<vmem>>, vector<1x288x128xf32>
    %62 = vector.shape_cast %61 : vector<1x288x128xf32> to vector<288x128xf32>
    %c7 = arith.constant 7 : index
    %c0_73 = arith.constant 0 : index
    %c0_74 = arith.constant 0 : index
    %63 = vector.load %arg2[%c7, %c0_73, %c0_74] : memref<9x128x128xf32, #tpu.memory_space<vmem>>, vector<1x128x128xf32>
    %64 = vector.shape_cast %63 : vector<1x128x128xf32> to vector<128x128xf32>
    %cst_75 = arith.constant dense<0.000000e+00> : vector<288x128xf32>
    %65 = tpu.matmul %62, %64, %cst_75 {dimension_numbers = #tpu.dot_dimension_numbers<[1], [0], [0], [1], [0, 0, 1, 1], [], []>} : vector<288x128xf32>, vector<128x128xf32>, vector<288x128xf32> -> vector<288x128xf32>
    %66 = arith.addf %60, %65 : vector<288x128xf32>
    %c0_76 = arith.constant 0 : index
    %c0_77 = arith.constant 0 : index
    %67 = vector.load %arg7[%c0_76, %c0_77] : memref<288x128xf32, #tpu.memory_space<vmem>>, vector<288x128xf32>
    tpu.vector_store %arg7[%c0_76, %c0_77], %66 {strides = array<i32>} : memref<288x128xf32, #tpu.memory_space<vmem>>, vector<288x128xf32>,
    %c0_78 = arith.constant 0 : index
    %c0_79 = arith.constant 0 : index
    %68 = vector.load %arg7[%c0_78, %c0_79] : memref<288x128xf32, #tpu.memory_space<vmem>>, vector<288x128xf32>
    %c0_80 = arith.constant 0 : index
    %c38 = arith.constant 38 : index
    %c0_81 = arith.constant 0 : index
    %69 = vector.load %arg1[%c0_80, %c38, %c0_81] : memref<1x342x128xf32, #tpu.memory_space<vmem>>, vector<1x288x128xf32>
    %70 = vector.shape_cast %69 : vector<1x288x128xf32> to vector<288x128xf32>
    %c8 = arith.constant 8 : index
    %c0_82 = arith.constant 0 : index
    %c0_83 = arith.constant 0 : index
    %71 = vector.load %arg2[%c8, %c0_82, %c0_83] : memref<9x128x128xf32, #tpu.memory_space<vmem>>, vector<1x128x128xf32>
    %72 = vector.shape_cast %71 : vector<1x128x128xf32> to vector<128x128xf32>
    %cst_84 = arith.constant dense<0.000000e+00> : vector<288x128xf32>
    %73 = tpu.matmul %70, %72, %cst_84 {dimension_numbers = #tpu.dot_dimension_numbers<[1], [0], [0], [1], [0, 0, 1, 1], [], []>} : vector<288x128xf32>, vector<128x128xf32>, vector<288x128xf32> -> vector<288x128xf32>
    %74 = arith.addf %68, %73 : vector<288x128xf32>
    %c0_85 = arith.constant 0 : index
    %c0_86 = arith.constant 0 : index
    %75 = vector.load %arg7[%c0_85, %c0_86] : memref<288x128xf32, #tpu.memory_space<vmem>>, vector<288x128xf32>
    tpu.vector_store %arg7[%c0_85, %c0_86], %74 {strides = array<i32>} : memref<288x128xf32, #tpu.memory_space<vmem>>, vector<288x128xf32>,
    %c0_87 = arith.constant 0 : index
    %c0_88 = arith.constant 0 : index
    %76 = vector.load %arg7[%c0_87, %c0_88] : memref<288x128xf32, #tpu.memory_space<vmem>>, vector<288x128xf32>
    %cst_89 = arith.constant 0.000000e+00 : f32
    %77 = vector.broadcast %cst_89 : f32 to vector<288x128xf32>
    %78 = arith.maximumf %76, %77 : vector<288x128xf32>
    %c0_90 = arith.constant 0 : index
    %c0_91 = arith.constant 0 : index
    %79 = vector.load %arg7[%c0_90, %c0_91] : memref<288x128xf32, #tpu.memory_space<vmem>>, vector<288x128xf32>
    tpu.vector_store %arg7[%c0_90, %c0_91], %78 {strides = array<i32>} : memref<288x128xf32, #tpu.memory_space<vmem>>, vector<288x128xf32>,
    %c0_92 = arith.constant 0 : index
    %c0_93 = arith.constant 0 : index
    %80 = vector.load %arg7[%c0_92, %c0_93] : memref<288x128xf32, #tpu.memory_space<vmem>>, vector<288x128xf32>
    %c0_94 = arith.constant 0 : index
    %c0_95 = arith.constant 0 : index
    %81 = vector.load %arg4[%c0_94, %c0_95] : memref<128x128xf32, #tpu.memory_space<vmem>>, vector<128x128xf32>
    %cst_96 = arith.constant dense<0.000000e+00> : vector<288x128xf32>
    %82 = tpu.matmul %80, %81, %cst_96 {dimension_numbers = #tpu.dot_dimension_numbers<[1], [0], [0], [1], [0, 0, 1, 1], [], []>} : vector<288x128xf32>, vector<128x128xf32>, vector<288x128xf32> -> vector<288x128xf32>
    %c0_97 = arith.constant 0 : index
    %c0_98 = arith.constant 0 : index
    %83 = vector.load %arg5[%c0_97, %c0_98] : memref<1x128xf32, #tpu.memory_space<vmem>>, vector<1x128xf32>
    %84 = vector.broadcast %83 : vector<1x128xf32> to vector<288x128xf32>
    %85 = arith.addf %82, %84 : vector<288x128xf32>
    %c0_99 = arith.constant 0 : index
    %c0_100 = arith.constant 0 : index
    %c0_101 = arith.constant 0 : index
    %86 = vector.load %arg6[%c0_99, %c0_100, %c0_101] : memref<1x288x128xf32, #tpu.memory_space<vmem>>, vector<1x288x128xf32>
    %87 = vector.shape_cast %86 : vector<1x288x128xf32> to vector<288x128xf32>
    %88 = vector.shape_cast %85 : vector<288x128xf32> to vector<1x288x128xf32>
    tpu.vector_store %arg6[%c0_99, %c0_100, %c0_101], %88 {strides = array<i32>} : memref<1x288x128xf32, #tpu.memory_space<vmem>>, vector<1x288x128xf32>,
    return
  }
  func.func @transform_0(%arg0: i32) -> (i32, i32, i32) {
    %c0_i32 = arith.constant 0 : i32
    %c0_i32_0 = arith.constant 0 : i32
    %c0_i32_1 = arith.constant 0 : i32
    return %arg0, %c0_i32, %c0_i32_0 : i32, i32, i32
  }
  func.func @transform_1(%arg0: i32) -> (i32, i32, i32) {
    %c0_i32 = arith.constant 0 : i32
    %c0_i32_0 = arith.constant 0 : i32
    %c0_i32_1 = arith.constant 0 : i32
    %c0_i32_2 = arith.constant 0 : i32
    return %c0_i32, %c0_i32_0, %c0_i32_1 : i32, i32, i32
  }
  func.func @transform_2(%arg0: i32) -> (i32, i32) {
    %c0_i32 = arith.constant 0 : i32
    %c0_i32_0 = arith.constant 0 : i32
    %c0_i32_1 = arith.constant 0 : i32
    return %c0_i32, %c0_i32_0 : i32, i32
  }
  func.func @transform_3(%arg0: i32) -> (i32, i32) {
    %c0_i32 = arith.constant 0 : i32
    %c0_i32_0 = arith.constant 0 : i32
    %c0_i32_1 = arith.constant 0 : i32
    return %c0_i32, %c0_i32_0 : i32, i32
  }
  func.func @transform_4(%arg0: i32) -> (i32, i32) {
    %c0_i32 = arith.constant 0 : i32
    %c0_i32_0 = arith.constant 0 : i32
    %c0_i32_1 = arith.constant 0 : i32
    return %c0_i32, %c0_i32_0 : i32, i32
  }
  func.func @transform_5(%arg0: i32) -> (i32, i32, i32) {
    %c0_i32 = arith.constant 0 : i32
    %c0_i32_0 = arith.constant 0 : i32
    %c0_i32_1 = arith.constant 0 : i32
    return %arg0, %c0_i32, %c0_i32_0 : i32, i32, i32
  }
}

</mosaic_0001>

<llo_original>
// kernel: tpu_custom_call.1
$region0: #{tpu_custom_call.1}
  #allocation0 [shape = 'u32[]', space=smem, size = 0x4, offset = 0x4, fixed_abs, tag = 'smem constant byte address 0x4 - core index']
  #allocation1 [shape = 'u32[72,128]{1,0:T(1,128)}', space=vmem, size = 0x9000, scoped, tag = 'internal scratch']
  #allocation2 [shape = 'f32[288,128]{1,0:T(8,128)}', space=vmem, size = 0x24000, scoped, tag = 'scratch operand']
  %s0 = inlined_call_operand.vmem [shape: f32[2,342,128], index: 0, kind: input, shape index: {}]
  %s1 = inlined_call_operand.vmem [shape: f32[9,128,128], index: 1, kind: input, shape index: {}]
  %s2 = inlined_call_operand.vmem [shape: f32[1,128], index: 2, kind: input, shape index: {}]
  %s3 = inlined_call_operand.vmem [shape: f32[128,128], index: 3, kind: input, shape index: {}]
  %s4 = inlined_call_operand.vmem [shape: f32[1,128], index: 4, kind: input, shape index: {}]
  %s5 = inlined_call_operand.hbm [shape: f32[2,288,128], index: 5, kind: output, shape index: {}]
  %s6 = sld [smem:[#allocation0]]
  $region53: #{tpu_custom_call.1} parent=0
    _
  %s8 = ssub.s32 1, %s6
  %s9 = scalar_select 0, %s8, %s6
  $region1: #{tpu_custom_call.1} parent=0
    #allocation3 [shape = 'u8[294912]{0}', space=vmem, size = 0x48000, scoped, tag = 'output window, operand 0']
    #allocation4 [shape = 's32[2]{0}', space=sflag, size = 0x8, scoped, tag = 'scoped memory for tpu_custom_call.1']
    %10 = vsyncpa [#allocation4], 0
    %s11 = scalar_lea.sflag [#allocation4], 1
    %12 = vsyncpa %s11, 0
    loop: start=0, step=1, limit=4
    $region2: #{tpu_custom_call.1} parent=1 // loop_pre_header
      _
    $region3: #{tpu_custom_call.1} parent=1 // loop_header
      %s14 = sphi 0, %s18
      %p15 = scmp.ge.s32.totalorder %s14, 4
      %s24 = sphi 0, %s26
      %s27 = sphi 0, %s24
      %s28 = sphi 0, %s27
      %s44 = sphi 0, %s28
      %s48 = sphi 0, %s48
      %s50 = sphi 0, %s48
      %s51 = sphi 0, %s50
      %s65 = sphi 0, %s51
      %s69 = sphi 0, %s69
      %s71 = sphi 0, %s69
      %s72 = sphi 0, %s71
      %s86 = sphi 0, %s72
      %s90 = sphi 0, %s90
      %s92 = sphi 0, %s90
      %s93 = sphi 0, %s92
      %s107 = sphi 0, %s93
      %s111 = sphi 0, %s111
      %s113 = sphi 0, %s111
      %s114 = sphi 0, %s113
      %s128 = sphi 0, %s114
      %s134 = sphi 0, %s136
      %s137 = sphi 0, %s134
      %s138 = sphi 0, %s137
      %s154 = sphi 0, %s138
    $region4: #{tpu_custom_call.1} parent=1 // loop_header_branch
      %17 = sbr.rel (%p15) target = $region8
    $region5: #{tpu_custom_call.1} parent=1 // loop_body
      %s19 = ssub.s32 %s14, 1
      %s20 = ssub.s32 %s14, 2
      %s21 = sadd.s32 %s14, 1
      %s22 = ssub.s32 %s14, %s21
      %p23 = scmp.eq.s32.totalorder %s22, 0
      %s25 = sadd.s32 %s24, 1
      %s26 = scalar_select %p23, %s24, %s25
      %p29 = pneg %p23
      %p30 = scmp.eq.s32.totalorder %s14, 1
      %p31 = por %p29, %p30
      %p32 = scmp.ne.s32.totalorder %s24, %s27
      %p33 = scmp.eq.s32.totalorder %s14, 0
      %p34 = por %p32, %p33
      %p35 = scmp.ne.s32.totalorder %s24, %s27
      %p36 = scmp.eq.s32.totalorder %s19, 1
      %p37 = por %p35, %p36
      %p38 = scmp.ne.s32.totalorder %s27, %s28
      %p39 = scmp.eq.s32.totalorder %s19, 0
      %p40 = por %p38, %p39
      %p41 = scmp.ne.s32.totalorder %s27, %s28
      %p42 = scmp.eq.s32.totalorder %s20, 1
      %p43 = por %p41, %p42
      %p45 = scmp.ne.s32.totalorder %s28, %s44
      %p46 = scmp.eq.s32.totalorder %s20, 0
      %p47 = por %p45, %p46
      %s49 = sadd.s32 %s48, 1
      %p52 = scmp.eq.s32.totalorder %s14, 1
      %p53 = scmp.ne.s32.totalorder %s48, %s50
      %p54 = scmp.eq.s32.totalorder %s14, 0
      %p55 = por %p53, %p54
      %p56 = scmp.ne.s32.totalorder %s48, %s50
      %p57 = scmp.eq.s32.totalorder %s19, 1
      %p58 = por %p56, %p57
      %p59 = scmp.ne.s32.totalorder %s50, %s51
      %p60 = scmp.eq.s32.totalorder %s19, 0
      %p61 = por %p59, %p60
      %p62 = scmp.ne.s32.totalorder %s50, %s51
      %p63 = scmp.eq.s32.totalorder %s20, 1
      %p64 = por %p62, %p63
      %p66 = scmp.ne.s32.totalorder %s51, %s65
      %p67 = scmp.eq.s32.totalorder %s20, 0
      %p68 = por %p66, %p67
      %s70 = sadd.s32 %s69, 1
      %p73 = scmp.eq.s32.totalorder %s14, 1
      %p74 = scmp.ne.s32.totalorder %s69, %s71
      %p75 = scmp.eq.s32.totalorder %s14, 0
      %p76 = por %p74, %p75
      %p77 = scmp.ne.s32.totalorder %s69, %s71
      %p78 = scmp.eq.s32.totalorder %s19, 1
      %p79 = por %p77, %p78
      %p80 = scmp.ne.s32.totalorder %s71, %s72
      %p81 = scmp.eq.s32.totalorder %s19, 0
      %p82 = por %p80, %p81
      %p83 = scmp.ne.s32.totalorder %s71, %s72
      %p84 = scmp.eq.s32.totalorder %s20, 1
      %p85 = por %p83, %p84
      %p87 = scmp.ne.s32.totalorder %s72, %s86
      %p88 = scmp.eq.s32.totalorder %s20, 0
      %p89 = por %p87, %p88
      %s91 = sadd.s32 %s90, 1
      %p94 = scmp.eq.s32.totalorder %s14, 1
      %p95 = scmp.ne.s32.totalorder %s90, %s92
      %p96 = scmp.eq.s32.totalorder %s14, 0
      %p97 = por %p95, %p96
      %p98 = scmp.ne.s32.totalorder %s90, %s92
      %p99 = scmp.eq.s32.totalorder %s19, 1
      %p100 = por %p98, %p99
      %p101 = scmp.ne.s32.totalorder %s92, %s93
      %p102 = scmp.eq.s32.totalorder %s19, 0
      %p103 = por %p101, %p102
      %p104 = scmp.ne.s32.totalorder %s92, %s93
      %p105 = scmp.eq.s32.totalorder %s20, 1
      %p106 = por %p104, %p105
      %p108 = scmp.ne.s32.totalorder %s93, %s107
      %p109 = scmp.eq.s32.totalorder %s20, 0
      %p110 = por %p108, %p109
      %s112 = sadd.s32 %s111, 1
      %p115 = scmp.eq.s32.totalorder %s14, 1
      %p116 = scmp.ne.s32.totalorder %s111, %s113
      %p117 = scmp.eq.s32.totalorder %s14, 0
      %p118 = por %p116, %p117
      %p119 = scmp.ne.s32.totalorder %s111, %s113
      %p120 = scmp.eq.s32.totalorder %s19, 1
      %p121 = por %p119, %p120
      %p122 = scmp.ne.s32.totalorder %s113, %s114
      %p123 = scmp.eq.s32.totalorder %s19, 0
      %p124 = por %p122, %p123
      %p125 = scmp.ne.s32.totalorder %s113, %s114
      %p126 = scmp.eq.s32.totalorder %s20, 1
      %p127 = por %p125, %p126
      %p129 = scmp.ne.s32.totalorder %s114, %s128
      %p130 = scmp.eq.s32.totalorder %s20, 0
      %p131 = por %p129, %p130
      %s132 = ssub.s32 %s14, %s21
      %p133 = scmp.eq.s32.totalorder %s132, 0
      %s135 = sadd.s32 %s134, 1
      %s136 = scalar_select %p133, %s134, %s135
      %p139 = pneg %p133
      %p140 = scmp.eq.s32.totalorder %s14, 1
      %p141 = por %p139, %p140
      %p142 = scmp.ne.s32.totalorder %s134, %s137
      %p143 = scmp.eq.s32.totalorder %s14, 0
      %p144 = por %p142, %p143
      %p145 = scmp.ne.s32.totalorder %s134, %s137
      %p146 = scmp.eq.s32.totalorder %s19, 1
      %p147 = por %p145, %p146
      %p148 = scmp.ne.s32.totalorder %s137, %s138
      %p149 = scmp.eq.s32.totalorder %s19, 0
      %p150 = por %p148, %p149
      %p151 = scmp.ne.s32.totalorder %s137, %s138
      %p152 = scmp.eq.s32.totalorder %s20, 1
      %p153 = por %p151, %p152
      %p155 = scmp.ne.s32.totalorder %s138, %s154
      %p156 = scmp.eq.s32.totalorder %s20, 0
      %p157 = por %p155, %p156
      %p158 = scmp.le.s32.totalorder 1, %s14
      %p159 = scmp.lt.s32.totalorder %s14, 3
      %p160 = pnand %p158, %p159
      %p161 = pneg %p160
      // Predicated region
      $region9: #{tpu_custom_call.1} parent=5 // pred_check
        _
      $region10: #{tpu_custom_call.1} parent=5 // pred_check_branch
        %163 = sbr.rel (%p160) target = $region12
      $region11: #{tpu_custom_call.1} parent=5 // pred_region
        %s164 = ssub.s32 %s14, 1
        // Predicated region
        $region13: #{tpu_custom_call.1} parent=11 // pred_check
          %p165 = pneg %p61
        $region14: #{tpu_custom_call.1} parent=11 // pred_check_branch
          %167 = sbr.rel (%p165) target = $region16
        $region15: #{tpu_custom_call.1} parent=11 // pred_region
          _
        $region16: #{tpu_custom_call.1} parent=11 // pred_fallthru
          _
        // Predicated region
        $region17: #{tpu_custom_call.1} parent=11 // pred_check
          %p168 = pneg %p82
        $region18: #{tpu_custom_call.1} parent=11 // pred_check_branch
          %170 = sbr.rel (%p168) target = $region20
        $region19: #{tpu_custom_call.1} parent=11 // pred_region
          _
        $region20: #{tpu_custom_call.1} parent=11 // pred_fallthru
          _
        // Predicated region
        $region21: #{tpu_custom_call.1} parent=11 // pred_check
          %p171 = pneg %p103
        $region22: #{tpu_custom_call.1} parent=11 // pred_check_branch
          %173 = sbr.rel (%p171) target = $region24
        $region23: #{tpu_custom_call.1} parent=11 // pred_region
          _
        $region24: #{tpu_custom_call.1} parent=11 // pred_fallthru
          _
        // Predicated region
        $region25: #{tpu_custom_call.1} parent=11 // pred_check
          %p174 = pneg %p124
        $region26: #{tpu_custom_call.1} parent=11 // pred_check_branch
          %176 = sbr.rel (%p174) target = $region28
        $region27: #{tpu_custom_call.1} parent=11 // pred_region
          _
        $region28: #{tpu_custom_call.1} parent=11 // pred_fallthru
          _
      $region12: #{tpu_custom_call.1} parent=5 // pred_fallthru
        _
      %p177 = scmp.lt.s32.totalorder %s14, 2
      // Predicated region
      $region29: #{tpu_custom_call.1} parent=5 // pred_check
        %p178 = pneg %p177
      $region30: #{tpu_custom_call.1} parent=5 // pred_check_branch
        %180 = sbr.rel (%p178) target = $region32
      $region31: #{tpu_custom_call.1} parent=5 // pred_region
        // Predicated region
        $region33: #{tpu_custom_call.1} parent=31 // pred_check
          %p181 = pneg %p34
        $region34: #{tpu_custom_call.1} parent=31 // pred_check_branch
          %183 = sbr.rel (%p181) target = $region36
        $region35: #{tpu_custom_call.1} parent=31 // pred_region
          %p184 = scmp.lt.s32.totalorder %s14, 1
          %s185 = scalar_select %p184, %s14, 1
          %s186 = smul.addr %s185, 43
          %s187 = smul.addr %s186, 8
          %s188 = scalar_lea.vmem %s0, %s187
        $region36: #{tpu_custom_call.1} parent=31 // pred_fallthru
          _
      $region32: #{tpu_custom_call.1} parent=5 // pred_fallthru
        _
      %p189 = scmp.le.s32.totalorder 1, %s14
      %p190 = scmp.lt.s32.totalorder %s14, 3
      %p191 = pnand %p189, %p190
      %p192 = pneg %p191
      // Predicated region
      $region37: #{tpu_custom_call.1} parent=5 // pred_check
        _
      $region38: #{tpu_custom_call.1} parent=5 // pred_check_branch
        %194 = sbr.rel (%p191) target = $region40
      $region39: #{tpu_custom_call.1} parent=5 // pred_region
        %s195 = ssub.s32 %s14, 1
        %p196 = scmp.lt.s32.totalorder %s19, 1
        %s197 = scalar_select %p196, %s19, 1
        %s198 = smul.addr %s197, 43
        %s199 = smul.addr %s198, 8
        %s200 = scalar_lea.vmem %s0, %s199
        %p201 = pneg %p40
        %p202 = pneg %p37
        %p203 = pneg %p61
        %p204 = pneg %p58
        %p205 = pneg %p82
        %p206 = pneg %p79
        %p207 = pneg %p103
        %p208 = pneg %p100
        %p209 = pneg %p124
        %p210 = pneg %p121
        %p211 = pneg %p150
        %p212 = pneg %p147
        %s213 = sand.u32 %s137, 1
        %s214 = scalar_lea.sflag [#allocation4], %s213
        %s215 = sand.u32 %s137, 1
        %s216 = smul.addr %s215, 288
        %s217 = scalar_lea.vmem [#allocation3], %s216
        %p218 = scmp.lt.s32.totalorder %s19, 1
        %s219 = scalar_select %p218, %s19, 1
        %s220 = smul.addr %s219, 43
        %s221 = smul.addr %s220, 8
        %s222 = scalar_lea.vmem %s0, %s221
        %v223 = vld [vmem:[%s2] sm:$0x1]
        %v225 = vperm.slane %v223, 0
        %227 = vst [vmem:[#allocation2] sm:$0xff] %v225
        %228 = vst [vmem:[#allocation2 + $0x8] sm:$0xff] %v225
        %229 = vst [vmem:[#allocation2 + $0x10] sm:$0xff] %v225
        %230 = vst [vmem:[#allocation2 + $0x18] sm:$0xff] %v225
        %231 = vst [vmem:[#allocation2 + $0x20] sm:$0xff] %v225
        %232 = vst [vmem:[#allocation2 + $0x28] sm:$0xff] %v225
        %233 = vst [vmem:[#allocation2 + $0x30] sm:$0xff] %v225
        %234 = vst [vmem:[#allocation2 + $0x38] sm:$0xff] %v225
        %235 = vst [vmem:[#allocation2 + $0x40] sm:$0xff] %v225
        %236 = vst [vmem:[#allocation2 + $0x48] sm:$0xff] %v225
        %237 = vst [vmem:[#allocation2 + $0x50] sm:$0xff] %v225
        %238 = vst [vmem:[#allocation2 + $0x58] sm:$0xff] %v225
        %239 = vst [vmem:[#allocation2 + $0x60] sm:$0xff] %v225
        %240 = vst [vmem:[#allocation2 + $0x68] sm:$0xff] %v225
        %241 = vst [vmem:[#allocation2 + $0x70] sm:$0xff] %v225
        %242 = vst [vmem:[#allocation2 + $0x78] sm:$0xff] %v225
        %243 = vst [vmem:[#allocation2 + $0x80] sm:$0xff] %v225
        %244 = vst [vmem:[#allocation2 + $0x88] sm:$0xff] %v225
        %245 = vst [vmem:[#allocation2 + $0x90] sm:$0xff] %v225
        %246 = vst [vmem:[#allocation2 + $0x98] sm:$0xff] %v225
        %247 = vst [vmem:[#allocation2 + $0xa0] sm:$0xff] %v225
        %248 = vst [vmem:[#allocation2 + $0xa8] sm:$0xff] %v225
        %249 = vst [vmem:[#allocation2 + $0xb0] sm:$0xff] %v225
        %250 = vst [vmem:[#allocation2 + $0xb8] sm:$0xff] %v225
        %251 = vst [vmem:[#allocation2 + $0xc0] sm:$0xff] %v225
        %252 = vst [vmem:[#allocation2 + $0xc8] sm:$0xff] %v225
        %253 = vst [vmem:[#allocation2 + $0xd0] sm:$0xff] %v225
        %254 = vst [vmem:[#allocation2 + $0xd8] sm:$0xff] %v225
        %255 = vst [vmem:[#allocation2 + $0xe0] sm:$0xff] %v225
        %256 = vst [vmem:[#allocation2 + $0xe8] sm:$0xff] %v225
        %257 = vst [vmem:[#allocation2 + $0xf0] sm:$0xff] %v225
        %258 = vst [vmem:[#allocation2 + $0xf8] sm:$0xff] %v225
        %259 = vst [vmem:[#allocation2 + $0x100] sm:$0xff] %v225
        %260 = vst [vmem:[#allocation2 + $0x108] sm:$0xff] %v225
        %261 = vst [vmem:[#allocation2 + $0x110] sm:$0xff] %v225
        %262 = vst [vmem:[#allocation2 + $0x118] sm:$0xff] %v225
        %v263 = vld [vmem:[#allocation2] sm:$0xff]
        %v264 = vld [vmem:[#allocation2 + $0x8] sm:$0xff]
        %v265 = vld [vmem:[#allocation2 + $0x10] sm:$0xff]
        %v266 = vld [vmem:[#allocation2 + $0x18] sm:$0xff]
        %v267 = vld [vmem:[#allocation2 + $0x20] sm:$0xff]
        %v268 = vld [vmem:[#allocation2 + $0x28] sm:$0xff]
        %v269 = vld [vmem:[#allocation2 + $0x30] sm:$0xff]
        %v270 = vld [vmem:[#allocation2 + $0x38] sm:$0xff]
        %v271 = vld [vmem:[#allocation2 + $0x40] sm:$0xff]
        %v272 = vld [vmem:[#allocation2 + $0x48] sm:$0xff]
        %v273 = vld [vmem:[#allocation2 + $0x50] sm:$0xff]
        %v274 = vld [vmem:[#allocation2 + $0x58] sm:$0xff]
        %v275 = vld [vmem:[#allocation2 + $0x60] sm:$0xff]
        %v276 = vld [vmem:[#allocation2 + $0x68] sm:$0xff]
        %v277 = vld [vmem:[#allocation2 + $0x70] sm:$0xff]
        %v278 = vld [vmem:[#allocation2 + $0x78] sm:$0xff]
        %v279 = vld [vmem:[#allocation2 + $0x80] sm:$0xff]
        %v280 = vld [vmem:[#allocation2 + $0x88] sm:$0xff]
        %v281 = vld [vmem:[#allocation2 + $0x90] sm:$0xff]
        %v282 = vld [vmem:[#allocation2 + $0x98] sm:$0xff]
        %v283 = vld [vmem:[#allocation2 + $0xa0] sm:$0xff]
        %v284 = vld [vmem:[#allocation2 + $0xa8] sm:$0xff]
        %v285 = vld [vmem:[#allocation2 + $0xb0] sm:$0xff]
        %v286 = vld [vmem:[#allocation2 + $0xb8] sm:$0xff]
        %v287 = vld [vmem:[#allocation2 + $0xc0] sm:$0xff]
        %v288 = vld [vmem:[#allocation2 + $0xc8] sm:$0xff]
        %v289 = vld [vmem:[#allocation2 + $0xd0] sm:$0xff]
        %v290 = vld [vmem:[#allocation2 + $0xd8] sm:$0xff]
        %v291 = vld [vmem:[#allocation2 + $0xe0] sm:$0xff]
        %v292 = vld [vmem:[#allocation2 + $0xe8] sm:$0xff]
        %v293 = vld [vmem:[#allocation2 + $0xf0] sm:$0xff]
        %v294 = vld [vmem:[#allocation2 + $0xf8] sm:$0xff]
        %v295 = vld [vmem:[#allocation2 + $0x100] sm:$0xff]
        %v296 = vld [vmem:[#allocation2 + $0x108] sm:$0xff]
        %v297 = vld [vmem:[#allocation2 + $0x110] sm:$0xff]
        %v298 = vld [vmem:[#allocation2 + $0x118] sm:$0xff]
        %v299 = vld [vmem:[%s222] sm:$0xff]
        %v300 = vld [vmem:[%s222 + $0x8] sm:$0xff]
        %v301 = vld [vmem:[%s222 + $0x10] sm:$0xff]
        %v302 = vld [vmem:[%s222 + $0x18] sm:$0xff]
        %v303 = vld [vmem:[%s222 + $0x20] sm:$0xff]
        %v304 = vld [vmem:[%s222 + $0x28] sm:$0xff]
        %v305 = vld [vmem:[%s222 + $0x30] sm:$0xff]
        %v306 = vld [vmem:[%s222 + $0x38] sm:$0xff]
        %v307 = vld [vmem:[%s222 + $0x40] sm:$0xff]
        %v308 = vld [vmem:[%s222 + $0x48] sm:$0xff]
        %v309 = vld [vmem:[%s222 + $0x50] sm:$0xff]
        %v310 = vld [vmem:[%s222 + $0x58] sm:$0xff]
        %v311 = vld [vmem:[%s222 + $0x60] sm:$0xff]
        %v312 = vld [vmem:[%s222 + $0x68] sm:$0xff]
        %v313 = vld [vmem:[%s222 + $0x70] sm:$0xff]
        %v314 = vld [vmem:[%s222 + $0x78] sm:$0xff]
        %v315 = vld [vmem:[%s222 + $0x80] sm:$0xff]
        %v316 = vld [vmem:[%s222 + $0x88] sm:$0xff]
        %v317 = vld [vmem:[%s222 + $0x90] sm:$0xff]
        %v318 = vld [vmem:[%s222 + $0x98] sm:$0xff]
        %v319 = vld [vmem:[%s222 + $0xa0] sm:$0xff]
        %v320 = vld [vmem:[%s222 + $0xa8] sm:$0xff]
        %v321 = vld [vmem:[%s222 + $0xb0] sm:$0xff]
        %v322 = vld [vmem:[%s222 + $0xb8] sm:$0xff]
        %v323 = vld [vmem:[%s222 + $0xc0] sm:$0xff]
        %v324 = vld [vmem:[%s222 + $0xc8] sm:$0xff]
        %v325 = vld [vmem:[%s222 + $0xd0] sm:$0xff]
        %v326 = vld [vmem:[%s222 + $0xd8] sm:$0xff]
        %v327 = vld [vmem:[%s222 + $0xe0] sm:$0xff]
        %v328 = vld [vmem:[%s222 + $0xe8] sm:$0xff]
        %v329 = vld [vmem:[%s222 + $0xf0] sm:$0xff]
        %v330 = vld [vmem:[%s222 + $0xf8] sm:$0xff]
        %v331 = vld [vmem:[%s222 + $0x100] sm:$0xff]
        %v332 = vld [vmem:[%s222 + $0x108] sm:$0xff]
        %v333 = vld [vmem:[%s222 + $0x110] sm:$0xff]
        %v334 = vld [vmem:[%s222 + $0x118] sm:$0xff]
        %v335 = vld [vmem:[%s1] sm:$0xff]
        %v336 = vld [vmem:[%s1 + $0x8] sm:$0xff]
        %v337 = vld [vmem:[%s1 + $0x10] sm:$0xff]
        %v338 = vld [vmem:[%s1 + $0x18] sm:$0xff]
        %v339 = vld [vmem:[%s1 + $0x20] sm:$0xff]
        %v340 = vld [vmem:[%s1 + $0x28] sm:$0xff]
        %v341 = vld [vmem:[%s1 + $0x30] sm:$0xff]
        %v342 = vld [vmem:[%s1 + $0x38] sm:$0xff]
        %v343 = vld [vmem:[%s1 + $0x40] sm:$0xff]
        %v344 = vld [vmem:[%s1 + $0x48] sm:$0xff]
        %v345 = vld [vmem:[%s1 + $0x50] sm:$0xff]
        %v346 = vld [vmem:[%s1 + $0x58] sm:$0xff]
        %v347 = vld [vmem:[%s1 + $0x60] sm:$0xff]
        %v348 = vld [vmem:[%s1 + $0x68] sm:$0xff]
        %v349 = vld [vmem:[%s1 + $0x70] sm:$0xff]
        %v350 = vld [vmem:[%s1 + $0x78] sm:$0xff]
        %351 = vmatpush.msra.mxu0 %v350
        %352 = vmatpush.msra.mxu0 %v349
        %353 = vmatpush.msra.mxu0 %v348
        %354 = vmatpush.msra.mxu0 %v347
        %355 = vmatpush.msra.mxu0 %v346
        %356 = vmatpush.msra.mxu0 %v345
        %357 = vmatpush.msra.mxu0 %v344
        %358 = vmatpush.msra.mxu0 %v343
        %359 = vmatpush.msra.mxu0 %v342
        %360 = vmatpush.msra.mxu0 %v341
        %361 = vmatpush.msra.mxu0 %v340
        %362 = vmatpush.msra.mxu0 %v339
        %363 = vmatpush.msra.mxu0 %v338
        %364 = vmatpush.msra.mxu0 %v337
        %365 = vmatpush.msra.mxu0 %v336
        %366 = vmatpush.msra.mxu0 %v335
        %367 = vmatmul.f32.gmra.mxu0 %v299
        %v368 = vpop.f32.mrf.mxu0
        %v369 = vadd.f32 0.0, %v368
        %370 = vmatmul.f32.gmra.mxu0 %v300
        %v371 = vpop.f32.mrf.mxu0
        %v372 = vadd.f32 0.0, %v371
        %373 = vmatmul.f32.gmra.mxu0 %v301
        %v374 = vpop.f32.mrf.mxu0
        %v375 = vadd.f32 0.0, %v374
        %376 = vmatmul.f32.gmra.mxu0 %v302
        %v377 = vpop.f32.mrf.mxu0
        %v378 = vadd.f32 0.0, %v377
        %379 = vmatmul.f32.gmra.mxu0 %v303
        %v380 = vpop.f32.mrf.mxu0
        %v381 = vadd.f32 0.0, %v380
        %382 = vmatmul.f32.gmra.mxu0 %v304
        %v383 = vpop.f32.mrf.mxu0
        %v384 = vadd.f32 0.0, %v383
        %385 = vmatmul.f32.gmra.mxu0 %v305
        %v386 = vpop.f32.mrf.mxu0
        %v387 = vadd.f32 0.0, %v386
        %388 = vmatmul.f32.gmra.mxu0 %v306
        %v389 = vpop.f32.mrf.mxu0
        %v390 = vadd.f32 0.0, %v389
        %391 = vmatmul.f32.gmra.mxu0 %v307
        %v392 = vpop.f32.mrf.mxu0
        %v393 = vadd.f32 0.0, %v392
        %394 = vmatmul.f32.gmra.mxu0 %v308
        %v395 = vpop.f32.mrf.mxu0
        %v396 = vadd.f32 0.0, %v395
        %397 = vmatmul.f32.gmra.mxu0 %v309
        %v398 = vpop.f32.mrf.mxu0
        %v399 = vadd.f32 0.0, %v398
        %400 = vmatmul.f32.gmra.mxu0 %v310
        %v401 = vpop.f32.mrf.mxu0
        %v402 = vadd.f32 0.0, %v401
        %403 = vmatmul.f32.gmra.mxu0 %v311
        %v404 = vpop.f32.mrf.mxu0
        %v405 = vadd.f32 0.0, %v404
        %406 = vmatmul.f32.gmra.mxu0 %v312
        %v407 = vpop.f32.mrf.mxu0
        %v408 = vadd.f32 0.0, %v407
        %409 = vmatmul.f32.gmra.mxu0 %v313
        %v410 = vpop.f32.mrf.mxu0
        %v411 = vadd.f32 0.0, %v410
        %412 = vmatmul.f32.gmra.mxu0 %v314
        %v413 = vpop.f32.mrf.mxu0
        %v414 = vadd.f32 0.0, %v413
        %415 = vmatmul.f32.gmra.mxu0 %v315
        %v416 = vpop.f32.mrf.mxu0
        %v417 = vadd.f32 0.0, %v416
        %418 = vmatmul.f32.gmra.mxu0 %v316
        %v419 = vpop.f32.mrf.mxu0
        %v420 = vadd.f32 0.0, %v419
        %421 = vmatmul.f32.gmra.mxu0 %v317
        %v422 = vpop.f32.mrf.mxu0
        %v423 = vadd.f32 0.0, %v422
        %424 = vmatmul.f32.gmra.mxu0 %v318
        %v425 = vpop.f32.mrf.mxu0
        %v426 = vadd.f32 0.0, %v425
        %427 = vmatmul.f32.gmra.mxu0 %v319
        %v428 = vpop.f32.mrf.mxu0
        %v429 = vadd.f32 0.0, %v428
        %430 = vmatmul.f32.gmra.mxu0 %v320
        %v431 = vpop.f32.mrf.mxu0
        %v432 = vadd.f32 0.0, %v431
        %433 = vmatmul.f32.gmra.mxu0 %v321
        %v434 = vpop.f32.mrf.mxu0
        %v435 = vadd.f32 0.0, %v434
        %436 = vmatmul.f32.gmra.mxu0 %v322
        %v437 = vpop.f32.mrf.mxu0
        %v438 = vadd.f32 0.0, %v437
        %439 = vmatmul.f32.gmra.mxu0 %v323
        %v440 = vpop.f32.mrf.mxu0
        %v441 = vadd.f32 0.0, %v440
        %442 = vmatmul.f32.gmra.mxu0 %v324
        %v443 = vpop.f32.mrf.mxu0
        %v444 = vadd.f32 0.0, %v443
        %445 = vmatmul.f32.gmra.mxu0 %v325
        %v446 = vpop.f32.mrf.mxu0
        %v447 = vadd.f32 0.0, %v446
        %448 = vmatmul.f32.gmra.mxu0 %v326
        %v449 = vpop.f32.mrf.mxu0
        %v450 = vadd.f32 0.0, %v449
        %451 = vmatmul.f32.gmra.mxu0 %v327
        %v452 = vpop.f32.mrf.mxu0
        %v453 = vadd.f32 0.0, %v452
        %454 = vmatmul.f32.gmra.mxu0 %v328
        %v455 = vpop.f32.mrf.mxu0
        %v456 = vadd.f32 0.0, %v455
        %457 = vmatmul.f32.gmra.mxu0 %v329
        %v458 = vpop.f32.mrf.mxu0
        %v459 = vadd.f32 0.0, %v458
        %460 = vmatmul.f32.gmra.mxu0 %v330
        %v461 = vpop.f32.mrf.mxu0
        %v462 = vadd.f32 0.0, %v461
        %463 = vmatmul.f32.gmra.mxu0 %v331
        %v464 = vpop.f32.mrf.mxu0
        %v465 = vadd.f32 0.0, %v464
        %466 = vmatmul.f32.gmra.mxu0 %v332
        %v467 = vpop.f32.mrf.mxu0
        %v468 = vadd.f32 0.0, %v467
        %469 = vmatmul.f32.gmra.mxu0 %v333
        %v470 = vpop.f32.mrf.mxu0
        %v471 = vadd.f32 0.0, %v470
        %472 = vmatmul.f32.gmra.mxu0 %v334
        %v473 = vpop.f32.mrf.mxu0
        %v474 = vadd.f32 0.0, %v473
        %475 = vdwg.mxu0
        %v476 = vadd.f32 %v263, %v369
        %v477 = vadd.f32 %v264, %v372
        %v478 = vadd.f32 %v265, %v375
        %v479 = vadd.f32 %v266, %v378
        %v480 = vadd.f32 %v267, %v381
        %v481 = vadd.f32 %v268, %v384
        %v482 = vadd.f32 %v269, %v387
        %v483 = vadd.f32 %v270, %v390
        %v484 = vadd.f32 %v271, %v393
        %v485 = vadd.f32 %v272, %v396
        %v486 = vadd.f32 %v273, %v399
        %v487 = vadd.f32 %v274, %v402
        %v488 = vadd.f32 %v275, %v405
        %v489 = vadd.f32 %v276, %v408
        %v490 = vadd.f32 %v277, %v411
        %v491 = vadd.f32 %v278, %v414
        %v492 = vadd.f32 %v279, %v417
        %v493 = vadd.f32 %v280, %v420
        %v494 = vadd.f32 %v281, %v423
        %v495 = vadd.f32 %v282, %v426
        %v496 = vadd.f32 %v283, %v429
        %v497 = vadd.f32 %v284, %v432
        %v498 = vadd.f32 %v285, %v435
        %v499 = vadd.f32 %v286, %v438
        %v500 = vadd.f32 %v287, %v441
        %v501 = vadd.f32 %v288, %v444
        %v502 = vadd.f32 %v289, %v447
        %v503 = vadd.f32 %v290, %v450
        %v504 = vadd.f32 %v291, %v453
        %v505 = vadd.f32 %v292, %v456
        %v506 = vadd.f32 %v293, %v459
        %v507 = vadd.f32 %v294, %v462
        %v508 = vadd.f32 %v295, %v465
        %v509 = vadd.f32 %v296, %v468
        %v510 = vadd.f32 %v297, %v471
        %v511 = vadd.f32 %v298, %v474
        %512 = vst [vmem:[#allocation2] sm:$0xff] %v476
        %513 = vst [vmem:[#allocation2 + $0x8] sm:$0xff] %v477
        %514 = vst [vmem:[#allocation2 + $0x10] sm:$0xff] %v478
        %515 = vst [vmem:[#allocation2 + $0x18] sm:$0xff] %v479
        %516 = vst [vmem:[#allocation2 + $0x20] sm:$0xff] %v480
        %517 = vst [vmem:[#allocation2 + $0x28] sm:$0xff] %v481
        %518 = vst [vmem:[#allocation2 + $0x30] sm:$0xff] %v482
        %519 = vst [vmem:[#allocation2 + $0x38] sm:$0xff] %v483
        %520 = vst [vmem:[#allocation2 + $0x40] sm:$0xff] %v484
        %521 = vst [vmem:[#allocation2 + $0x48] sm:$0xff] %v485
        %522 = vst [vmem:[#allocation2 + $0x50] sm:$0xff] %v486
        %523 = vst [vmem:[#allocation2 + $0x58] sm:$0xff] %v487
        %524 = vst [vmem:[#allocation2 + $0x60] sm:$0xff] %v488
        %525 = vst [vmem:[#allocation2 + $0x68] sm:$0xff] %v489
        %526 = vst [vmem:[#allocation2 + $0x70] sm:$0xff] %v490
        %527 = vst [vmem:[#allocation2 + $0x78] sm:$0xff] %v491
        %528 = vst [vmem:[#allocation2 + $0x80] sm:$0xff] %v492
        %529 = vst [vmem:[#allocation2 + $0x88] sm:$0xff] %v493
        %530 = vst [vmem:[#allocation2 + $0x90] sm:$0xff] %v494
        %531 = vst [vmem:[#allocation2 + $0x98] sm:$0xff] %v495
        %532 = vst [vmem:[#allocation2 + $0xa0] sm:$0xff] %v496
        %533 = vst [vmem:[#allocation2 + $0xa8] sm:$0xff] %v497
        %534 = vst [vmem:[#allocation2 + $0xb0] sm:$0xff] %v498
        %535 = vst [vmem:[#allocation2 + $0xb8] sm:$0xff] %v499
        %536 = vst [vmem:[#allocation2 + $0xc0] sm:$0xff] %v500
        %537 = vst [vmem:[#allocation2 + $0xc8] sm:$0xff] %v501
        %538 = vst [vmem:[#allocation2 + $0xd0] sm:$0xff] %v502
        %539 = vst [vmem:[#allocation2 + $0xd8] sm:$0xff] %v503
        %540 = vst [vmem:[#allocation2 + $0xe0] sm:$0xff] %v504
        %541 = vst [vmem:[#allocation2 + $0xe8] sm:$0xff] %v505
        %542 = vst [vmem:[#allocation2 + $0xf0] sm:$0xff] %v506
        %543 = vst [vmem:[#allocation2 + $0xf8] sm:$0xff] %v507
        %544 = vst [vmem:[#allocation2 + $0x100] sm:$0xff] %v508
        %545 = vst [vmem:[#allocation2 + $0x108] sm:$0xff] %v509
        %546 = vst [vmem:[#allocation2 + $0x110] sm:$0xff] %v510
        %547 = vst [vmem:[#allocation2 + $0x118] sm:$0xff] %v511
        %v548 = vld [vmem:[#allocation2] sm:$0xff]
        %v549 = vld [vmem:[#allocation2 + $0x8] sm:$0xff]
        %v550 = vld [vmem:[#allocation2 + $0x10] sm:$0xff]
        %v551 = vld [vmem:[#allocation2 + $0x18] sm:$0xff]
        %v552 = vld [vmem:[#allocation2 + $0x20] sm:$0xff]
        %v553 = vld [vmem:[#allocation2 + $0x28] sm:$0xff]
        %v554 = vld [vmem:[#allocation2 + $0x30] sm:$0xff]
        %v555 = vld [vmem:[#allocation2 + $0x38] sm:$0xff]
        %v556 = vld [vmem:[#allocation2 + $0x40] sm:$0xff]
        %v557 = vld [vmem:[#allocation2 + $0x48] sm:$0xff]
        %v558 = vld [vmem:[#allocation2 + $0x50] sm:$0xff]
        %v559 = vld [vmem:[#allocation2 + $0x58] sm:$0xff]
        %v560 = vld [vmem:[#allocation2 + $0x60] sm:$0xff]
        %v561 = vld [vmem:[#allocation2 + $0x68] sm:$0xff]
        %v562 = vld [vmem:[#allocation2 + $0x70] sm:$0xff]
        %v563 = vld [vmem:[#allocation2 + $0x78] sm:$0xff]
        %v564 = vld [vmem:[#allocation2 + $0x80] sm:$0xff]
        %v565 = vld [vmem:[#allocation2 + $0x88] sm:$0xff]
        %v566 = vld [vmem:[#allocation2 + $0x90] sm:$0xff]
        %v567 = vld [vmem:[#allocation2 + $0x98] sm:$0xff]
        %v568 = vld [vmem:[#allocation2 + $0xa0] sm:$0xff]
        %v569 = vld [vmem:[#allocation2 + $0xa8] sm:$0xff]
        %v570 = vld [vmem:[#allocation2 + $0xb0] sm:$0xff]
        %v571 = vld [vmem:[#allocation2 + $0xb8] sm:$0xff]
        %v572 = vld [vmem:[#allocation2 + $0xc0] sm:$0xff]
        %v573 = vld [vmem:[#allocation2 + $0xc8] sm:$0xff]
        %v574 = vld [vmem:[#allocation2 + $0xd0] sm:$0xff]
        %v575 = vld [vmem:[#allocation2 + $0xd8] sm:$0xff]
        %v576 = vld [vmem:[#allocation2 + $0xe0] sm:$0xff]
        %v577 = vld [vmem:[#allocation2 + $0xe8] sm:$0xff]
        %v578 = vld [vmem:[#allocation2 + $0xf0] sm:$0xff]
        %v579 = vld [vmem:[#allocation2 + $0xf8] sm:$0xff]
        %v580 = vld [vmem:[#allocation2 + $0x100] sm:$0xff]
        %v581 = vld [vmem:[#allocation2 + $0x108] sm:$0xff]
        %v582 = vld [vmem:[#allocation2 + $0x110] sm:$0xff]
        %v583 = vld [vmem:[#allocation2 + $0x118] sm:$0xff]
        %v584 = vld [vmem:[%s222 + $0x1] sm:$0xff]
        %v585 = vld [vmem:[%s222 + $0x9] sm:$0xff]
        %v586 = vld [vmem:[%s222 + $0x11] sm:$0xff]
        %v587 = vld [vmem:[%s222 + $0x19] sm:$0xff]
        %v588 = vld [vmem:[%s222 + $0x21] sm:$0xff]
        %v589 = vld [vmem:[%s222 + $0x29] sm:$0xff]
        %v590 = vld [vmem:[%s222 + $0x31] sm:$0xff]
        %v591 = vld [vmem:[%s222 + $0x39] sm:$0xff]
        %v592 = vld [vmem:[%s222 + $0x41] sm:$0xff]
        %v593 = vld [vmem:[%s222 + $0x49] sm:$0xff]
        %v594 = vld [vmem:[%s222 + $0x51] sm:$0xff]
        %v595 = vld [vmem:[%s222 + $0x59] sm:$0xff]
        %v596 = vld [vmem:[%s222 + $0x61] sm:$0xff]
        %v597 = vld [vmem:[%s222 + $0x69] sm:$0xff]
        %v598 = vld [vmem:[%s222 + $0x71] sm:$0xff]
        %v599 = vld [vmem:[%s222 + $0x79] sm:$0xff]
        %v600 = vld [vmem:[%s222 + $0x81] sm:$0xff]
        %v601 = vld [vmem:[%s222 + $0x89] sm:$0xff]
        %v602 = vld [vmem:[%s222 + $0x91] sm:$0xff]
        %v603 = vld [vmem:[%s222 + $0x99] sm:$0xff]
        %v604 = vld [vmem:[%s222 + $0xa1] sm:$0xff]
        %v605 = vld [vmem:[%s222 + $0xa9] sm:$0xff]
        %v606 = vld [vmem:[%s222 + $0xb1] sm:$0xff]
        %v607 = vld [vmem:[%s222 + $0xb9] sm:$0xff]
        %v608 = vld [vmem:[%s222 + $0xc1] sm:$0xff]
        %v609 = vld [vmem:[%s222 + $0xc9] sm:$0xff]
        %v610 = vld [vmem:[%s222 + $0xd1] sm:$0xff]
        %v611 = vld [vmem:[%s222 + $0xd9] sm:$0xff]
        %v612 = vld [vmem:[%s222 + $0xe1] sm:$0xff]
        %v613 = vld [vmem:[%s222 + $0xe9] sm:$0xff]
        %v614 = vld [vmem:[%s222 + $0xf1] sm:$0xff]
        %v615 = vld [vmem:[%s222 + $0xf9] sm:$0xff]
        %v616 = vld [vmem:[%s222 + $0x101] sm:$0xff]
        %v617 = vld [vmem:[%s222 + $0x109] sm:$0xff]
        %v618 = vld [vmem:[%s222 + $0x111] sm:$0xff]
        %v619 = vld [vmem:[%s222 + $0x119] sm:$0xff]
        %s620 = scalar_lea.vmem %s1, 128
        %v621 = vld [vmem:[%s620] sm:$0xff]
        %v622 = vld [vmem:[%s620 + $0x8] sm:$0xff]
        %v623 = vld [vmem:[%s620 + $0x10] sm:$0xff]
        %v624 = vld [vmem:[%s620 + $0x18] sm:$0xff]
        %v625 = vld [vmem:[%s620 + $0x20] sm:$0xff]
        %v626 = vld [vmem:[%s620 + $0x28] sm:$0xff]
        %v627 = vld [vmem:[%s620 + $0x30] sm:$0xff]
        %v628 = vld [vmem:[%s620 + $0x38] sm:$0xff]
        %v629 = vld [vmem:[%s620 + $0x40] sm:$0xff]
        %v630 = vld [vmem:[%s620 + $0x48] sm:$0xff]
        %v631 = vld [vmem:[%s620 + $0x50] sm:$0xff]
        %v632 = vld [vmem:[%s620 + $0x58] sm:$0xff]
        %v633 = vld [vmem:[%s620 + $0x60] sm:$0xff]
        %v634 = vld [vmem:[%s620 + $0x68] sm:$0xff]
        %v635 = vld [vmem:[%s620 + $0x70] sm:$0xff]
        %v636 = vld [vmem:[%s620 + $0x78] sm:$0xff]
        %637 = vmatpush.msra.mxu0 %v636
        %638 = vmatpush.msra.mxu0 %v635
        %639 = vmatpush.msra.mxu0 %v634
        %640 = vmatpush.msra.mxu0 %v633
        %641 = vmatpush.msra.mxu0 %v632
        %642 = vmatpush.msra.mxu0 %v631
        %643 = vmatpush.msra.mxu0 %v630
        %644 = vmatpush.msra.mxu0 %v629
        %645 = vmatpush.msra.mxu0 %v628
        %646 = vmatpush.msra.mxu0 %v627
        %647 = vmatpush.msra.mxu0 %v626
        %648 = vmatpush.msra.mxu0 %v625
        %649 = vmatpush.msra.mxu0 %v624
        %650 = vmatpush.msra.mxu0 %v623
        %651 = vmatpush.msra.mxu0 %v622
        %652 = vmatpush.msra.mxu0 %v621
        %653 = vmatmul.f32.gmra.mxu0 %v584
        %v654 = vpop.f32.mrf.mxu0
        %v655 = vadd.f32 0.0, %v654
        %656 = vmatmul.f32.gmra.mxu0 %v585
        %v657 = vpop.f32.mrf.mxu0
        %v658 = vadd.f32 0.0, %v657
        %659 = vmatmul.f32.gmra.mxu0 %v586
        %v660 = vpop.f32.mrf.mxu0
        %v661 = vadd.f32 0.0, %v660
        %662 = vmatmul.f32.gmra.mxu0 %v587
        %v663 = vpop.f32.mrf.mxu0
        %v664 = vadd.f32 0.0, %v663
        %665 = vmatmul.f32.gmra.mxu0 %v588
        %v666 = vpop.f32.mrf.mxu0
        %v667 = vadd.f32 0.0, %v666
        %668 = vmatmul.f32.gmra.mxu0 %v589
        %v669 = vpop.f32.mrf.mxu0
        %v670 = vadd.f32 0.0, %v669
        %671 = vmatmul.f32.gmra.mxu0 %v590
        %v672 = vpop.f32.mrf.mxu0
        %v673 = vadd.f32 0.0, %v672
        %674 = vmatmul.f32.gmra.mxu0 %v591
        %v675 = vpop.f32.mrf.mxu0
        %v676 = vadd.f32 0.0, %v675
        %677 = vmatmul.f32.gmra.mxu0 %v592
        %v678 = vpop.f32.mrf.mxu0
        %v679 = vadd.f32 0.0, %v678
        %680 = vmatmul.f32.gmra.mxu0 %v593
        %v681 = vpop.f32.mrf.mxu0
        %v682 = vadd.f32 0.0, %v681
        %683 = vmatmul.f32.gmra.mxu0 %v594
        %v684 = vpop.f32.mrf.mxu0
        %v685 = vadd.f32 0.0, %v684
        %686 = vmatmul.f32.gmra.mxu0 %v595
        %v687 = vpop.f32.mrf.mxu0
        %v688 = vadd.f32 0.0, %v687
        %689 = vmatmul.f32.gmra.mxu0 %v596
        %v690 = vpop.f32.mrf.mxu0
        %v691 = vadd.f32 0.0, %v690
        %692 = vmatmul.f32.gmra.mxu0 %v597
        %v693 = vpop.f32.mrf.mxu0
        %v694 = vadd.f32 0.0, %v693
        %695 = vmatmul.f32.gmra.mxu0 %v598
        %v696 = vpop.f32.mrf.mxu0
        %v697 = vadd.f32 0.0, %v696
        %698 = vmatmul.f32.gmra.mxu0 %v599
        %v699 = vpop.f32.mrf.mxu0
        %v700 = vadd.f32 0.0, %v699
        %701 = vmatmul.f32.gmra.mxu0 %v600
        %v702 = vpop.f32.mrf.mxu0
        %v703 = vadd.f32 0.0, %v702
        %704 = vmatmul.f32.gmra.mxu0 %v601
        %v705 = vpop.f32.mrf.mxu0
        %v706 = vadd.f32 0.0, %v705
        %707 = vmatmul.f32.gmra.mxu0 %v602
        %v708 = vpop.f32.mrf.mxu0
        %v709 = vadd.f32 0.0, %v708
        %710 = vmatmul.f32.gmra.mxu0 %v603
        %v711 = vpop.f32.mrf.mxu0
        %v712 = vadd.f32 0.0, %v711
        %713 = vmatmul.f32.gmra.mxu0 %v604
        %v714 = vpop.f32.mrf.mxu0
        %v715 = vadd.f32 0.0, %v714
        %716 = vmatmul.f32.gmra.mxu0 %v605
        %v717 = vpop.f32.mrf.mxu0
        %v718 = vadd.f32 0.0, %v717
        %719 = vmatmul.f32.gmra.mxu0 %v606
        %v720 = vpop.f32.mrf.mxu0
        %v721 = vadd.f32 0.0, %v720
        %722 = vmatmul.f32.gmra.mxu0 %v607
        %v723 = vpop.f32.mrf.mxu0
        %v724 = vadd.f32 0.0, %v723
        %725 = vmatmul.f32.gmra.mxu0 %v608
        %v726 = vpop.f32.mrf.mxu0
        %v727 = vadd.f32 0.0, %v726
        %728 = vmatmul.f32.gmra.mxu0 %v609
        %v729 = vpop.f32.mrf.mxu0
        %v730 = vadd.f32 0.0, %v729
        %731 = vmatmul.f32.gmra.mxu0 %v610
        %v732 = vpop.f32.mrf.mxu0
        %v733 = vadd.f32 0.0, %v732
        %734 = vmatmul.f32.gmra.mxu0 %v611
        %v735 = vpop.f32.mrf.mxu0
        %v736 = vadd.f32 0.0, %v735
        %737 = vmatmul.f32.gmra.mxu0 %v612
        %v738 = vpop.f32.mrf.mxu0
        %v739 = vadd.f32 0.0, %v738
        %740 = vmatmul.f32.gmra.mxu0 %v613
        %v741 = vpop.f32.mrf.mxu0
        %v742 = vadd.f32 0.0, %v741
        %743 = vmatmul.f32.gmra.mxu0 %v614
        %v744 = vpop.f32.mrf.mxu0
        %v745 = vadd.f32 0.0, %v744
        %746 = vmatmul.f32.gmra.mxu0 %v615
        %v747 = vpop.f32.mrf.mxu0
        %v748 = vadd.f32 0.0, %v747
        %749 = vmatmul.f32.gmra.mxu0 %v616
        %v750 = vpop.f32.mrf.mxu0
        %v751 = vadd.f32 0.0, %v750
        %752 = vmatmul.f32.gmra.mxu0 %v617
        %v753 = vpop.f32.mrf.mxu0
        %v754 = vadd.f32 0.0, %v753
        %755 = vmatmul.f32.gmra.mxu0 %v618
        %v756 = vpop.f32.mrf.mxu0
        %v757 = vadd.f32 0.0, %v756
        %758 = vmatmul.f32.gmra.mxu0 %v619
        %v759 = vpop.f32.mrf.mxu0
        %v760 = vadd.f32 0.0, %v759
        %761 = vdwg.mxu0
        %v762 = vadd.f32 %v548, %v655
        %v763 = vadd.f32 %v549, %v658
        %v764 = vadd.f32 %v550, %v661
        %v765 = vadd.f32 %v551, %v664
        %v766 = vadd.f32 %v552, %v667
        %v767 = vadd.f32 %v553, %v670
        %v768 = vadd.f32 %v554, %v673
        %v769 = vadd.f32 %v555, %v676
        %v770 = vadd.f32 %v556, %v679
        %v771 = vadd.f32 %v557, %v682
        %v772 = vadd.f32 %v558, %v685
        %v773 = vadd.f32 %v559, %v688
        %v774 = vadd.f32 %v560, %v691
        %v775 = vadd.f32 %v561, %v694
        %v776 = vadd.f32 %v562, %v697
        %v777 = vadd.f32 %v563, %v700
        %v778 = vadd.f32 %v564, %v703
        %v779 = vadd.f32 %v565, %v706
        %v780 = vadd.f32 %v566, %v709
        %v781 = vadd.f32 %v567, %v712
        %v782 = vadd.f32 %v568, %v715
        %v783 = vadd.f32 %v569, %v718
        %v784 = vadd.f32 %v570, %v721
        %v785 = vadd.f32 %v571, %v724
        %v786 = vadd.f32 %v572, %v727
        %v787 = vadd.f32 %v573, %v730
        %v788 = vadd.f32 %v574, %v733
        %v789 = vadd.f32 %v575, %v736
        %v790 = vadd.f32 %v576, %v739
        %v791 = vadd.f32 %v577, %v742
        %v792 = vadd.f32 %v578, %v745
        %v793 = vadd.f32 %v579, %v748
        %v794 = vadd.f32 %v580, %v751
        %v795 = vadd.f32 %v581, %v754
        %v796 = vadd.f32 %v582, %v757
        %v797 = vadd.f32 %v583, %v760
        %798 = vst [vmem:[#allocation2] sm:$0xff] %v762
        %799 = vst [vmem:[#allocation2 + $0x8] sm:$0xff] %v763
        %800 = vst [vmem:[#allocation2 + $0x10] sm:$0xff] %v764
        %801 = vst [vmem:[#allocation2 + $0x18] sm:$0xff] %v765
        %802 = vst [vmem:[#allocation2 + $0x20] sm:$0xff] %v766
        %803 = vst [vmem:[#allocation2 + $0x28] sm:$0xff] %v767
        %804 = vst [vmem:[#allocation2 + $0x30] sm:$0xff] %v768
        %805 = vst [vmem:[#allocation2 + $0x38] sm:$0xff] %v769
        %806 = vst [vmem:[#allocation2 + $0x40] sm:$0xff] %v770
        %807 = vst [vmem:[#allocation2 + $0x48] sm:$0xff] %v771
        %808 = vst [vmem:[#allocation2 + $0x50] sm:$0xff] %v772
        %809 = vst [vmem:[#allocation2 + $0x58] sm:$0xff] %v773
        %810 = vst [vmem:[#allocation2 + $0x60] sm:$0xff] %v774
        %811 = vst [vmem:[#allocation2 + $0x68] sm:$0xff] %v775
        %812 = vst [vmem:[#allocation2 + $0x70] sm:$0xff] %v776
        %813 = vst [vmem:[#allocation2 + $0x78] sm:$0xff] %v777
        %814 = vst [vmem:[#allocation2 + $0x80] sm:$0xff] %v778
        %815 = vst [vmem:[#allocation2 + $0x88] sm:$0xff] %v779
        %816 = vst [vmem:[#allocation2 + $0x90] sm:$0xff] %v780
        %817 = vst [vmem:[#allocation2 + $0x98] sm:$0xff] %v781
        %818 = vst [vmem:[#allocation2 + $0xa0] sm:$0xff] %v782
        %819 = vst [vmem:[#allocation2 + $0xa8] sm:$0xff] %v783
        %820 = vst [vmem:[#allocation2 + $0xb0] sm:$0xff] %v784
        %821 = vst [vmem:[#allocation2 + $0xb8] sm:$0xff] %v785
        %822 = vst [vmem:[#allocation2 + $0xc0] sm:$0xff] %v786
        %823 = vst [vmem:[#allocation2 + $0xc8] sm:$0xff] %v787
        %824 = vst [vmem:[#allocation2 + $0xd0] sm:$0xff] %v788
        %825 = vst [vmem:[#allocation2 + $0xd8] sm:$0xff] %v789
        %826 = vst [vmem:[#allocation2 + $0xe0] sm:$0xff] %v790
        %827 = vst [vmem:[#allocation2 + $0xe8] sm:$0xff] %v791
        %828 = vst [vmem:[#allocation2 + $0xf0] sm:$0xff] %v792
        %829 = vst [vmem:[#allocation2 + $0xf8] sm:$0xff] %v793
        %830 = vst [vmem:[#allocation2 + $0x100] sm:$0xff] %v794
        %831 = vst [vmem:[#allocation2 + $0x108] sm:$0xff] %v795
        %832 = vst [vmem:[#allocation2 + $0x110] sm:$0xff] %v796
        %833 = vst [vmem:[#allocation2 + $0x118] sm:$0xff] %v797
        %v834 = vld [vmem:[#allocation2] sm:$0xff]
        %v835 = vld [vmem:[#allocation2 + $0x8] sm:$0xff]
        %v836 = vld [vmem:[#allocation2 + $0x10] sm:$0xff]
        %v837 = vld [vmem:[#allocation2 + $0x18] sm:$0xff]
        %v838 = vld [vmem:[#allocation2 + $0x20] sm:$0xff]
        %v839 = vld [vmem:[#allocation2 + $0x28] sm:$0xff]
        %v840 = vld [vmem:[#allocation2 + $0x30] sm:$0xff]
        %v841 = vld [vmem:[#allocation2 + $0x38] sm:$0xff]
        %v842 = vld [vmem:[#allocation2 + $0x40] sm:$0xff]
        %v843 = vld [vmem:[#allocation2 + $0x48] sm:$0xff]
        %v844 = vld [vmem:[#allocation2 + $0x50] sm:$0xff]
        %v845 = vld [vmem:[#allocation2 + $0x58] sm:$0xff]
        %v846 = vld [vmem:[#allocation2 + $0x60] sm:$0xff]
        %v847 = vld [vmem:[#allocation2 + $0x68] sm:$0xff]
        %v848 = vld [vmem:[#allocation2 + $0x70] sm:$0xff]
        %v849 = vld [vmem:[#allocation2 + $0x78] sm:$0xff]
        %v850 = vld [vmem:[#allocation2 + $0x80] sm:$0xff]
        %v851 = vld [vmem:[#allocation2 + $0x88] sm:$0xff]
        %v852 = vld [vmem:[#allocation2 + $0x90] sm:$0xff]
        %v853 = vld [vmem:[#allocation2 + $0x98] sm:$0xff]
        %v854 = vld [vmem:[#allocation2 + $0xa0] sm:$0xff]
        %v855 = vld [vmem:[#allocation2 + $0xa8] sm:$0xff]
        %v856 = vld [vmem:[#allocation2 + $0xb0] sm:$0xff]
        %v857 = vld [vmem:[#allocation2 + $0xb8] sm:$0xff]
        %v858 = vld [vmem:[#allocation2 + $0xc0] sm:$0xff]
        %v859 = vld [vmem:[#allocation2 + $0xc8] sm:$0xff]
        %v860 = vld [vmem:[#allocation2 + $0xd0] sm:$0xff]
        %v861 = vld [vmem:[#allocation2 + $0xd8] sm:$0xff]
        %v862 = vld [vmem:[#allocation2 + $0xe0] sm:$0xff]
        %v863 = vld [vmem:[#allocation2 + $0xe8] sm:$0xff]
        %v864 = vld [vmem:[#allocation2 + $0xf0] sm:$0xff]
        %v865 = vld [vmem:[#allocation2 + $0xf8] sm:$0xff]
        %v866 = vld [vmem:[#allocation2 + $0x100] sm:$0xff]
        %v867 = vld [vmem:[#allocation2 + $0x108] sm:$0xff]
        %v868 = vld [vmem:[#allocation2 + $0x110] sm:$0xff]
        %v869 = vld [vmem:[#allocation2 + $0x118] sm:$0xff]
        %v870 = vld [vmem:[%s222 + $0x2] sm:$0xff]
        %v871 = vld [vmem:[%s222 + $0xa] sm:$0xff]
        %v872 = vld [vmem:[%s222 + $0x12] sm:$0xff]
        %v873 = vld [vmem:[%s222 + $0x1a] sm:$0xff]
        %v874 = vld [vmem:[%s222 + $0x22] sm:$0xff]
        %v875 = vld [vmem:[%s222 + $0x2a] sm:$0xff]
        %v876 = vld [vmem:[%s222 + $0x32] sm:$0xff]
        %v877 = vld [vmem:[%s222 + $0x3a] sm:$0xff]
        %v878 = vld [vmem:[%s222 + $0x42] sm:$0xff]
        %v879 = vld [vmem:[%s222 + $0x4a] sm:$0xff]
        %v880 = vld [vmem:[%s222 + $0x52] sm:$0xff]
        %v881 = vld [vmem:[%s222 + $0x5a] sm:$0xff]
        %v882 = vld [vmem:[%s222 + $0x62] sm:$0xff]
        %v883 = vld [vmem:[%s222 + $0x6a] sm:$0xff]
        %v884 = vld [vmem:[%s222 + $0x72] sm:$0xff]
        %v885 = vld [vmem:[%s222 + $0x7a] sm:$0xff]
        %v886 = vld [vmem:[%s222 + $0x82] sm:$0xff]
        %v887 = vld [vmem:[%s222 + $0x8a] sm:$0xff]
        %v888 = vld [vmem:[%s222 + $0x92] sm:$0xff]
        %v889 = vld [vmem:[%s222 + $0x9a] sm:$0xff]
        %v890 = vld [vmem:[%s222 + $0xa2] sm:$0xff]
        %v891 = vld [vmem:[%s222 + $0xaa] sm:$0xff]
        %v892 = vld [vmem:[%s222 + $0xb2] sm:$0xff]
        %v893 = vld [vmem:[%s222 + $0xba] sm:$0xff]
        %v894 = vld [vmem:[%s222 + $0xc2] sm:$0xff]
        %v895 = vld [vmem:[%s222 + $0xca] sm:$0xff]
        %v896 = vld [vmem:[%s222 + $0xd2] sm:$0xff]
        %v897 = vld [vmem:[%s222 + $0xda] sm:$0xff]
        %v898 = vld [vmem:[%s222 + $0xe2] sm:$0xff]
        %v899 = vld [vmem:[%s222 + $0xea] sm:$0xff]
        %v900 = vld [vmem:[%s222 + $0xf2] sm:$0xff]
        %v901 = vld [vmem:[%s222 + $0xfa] sm:$0xff]
        %v902 = vld [vmem:[%s222 + $0x102] sm:$0xff]
        %v903 = vld [vmem:[%s222 + $0x10a] sm:$0xff]
        %v904 = vld [vmem:[%s222 + $0x112] sm:$0xff]
        %v905 = vld [vmem:[%s222 + $0x11a] sm:$0xff]
        %s906 = scalar_lea.vmem %s1, 256
        %v907 = vld [vmem:[%s906] sm:$0xff]
        %v908 = vld [vmem:[%s906 + $0x8] sm:$0xff]
        %v909 = vld [vmem:[%s906 + $0x10] sm:$0xff]
        %v910 = vld [vmem:[%s906 + $0x18] sm:$0xff]
        %v911 = vld [vmem:[%s906 + $0x20] sm:$0xff]
        %v912 = vld [vmem:[%s906 + $0x28] sm:$0xff]
        %v913 = vld [vmem:[%s906 + $0x30] sm:$0xff]
        %v914 = vld [vmem:[%s906 + $0x38] sm:$0xff]
        %v915 = vld [vmem:[%s906 + $0x40] sm:$0xff]
        %v916 = vld [vmem:[%s906 + $0x48] sm:$0xff]
        %v917 = vld [vmem:[%s906 + $0x50] sm:$0xff]
        %v918 = vld [vmem:[%s906 + $0x58] sm:$0xff]
        %v919 = vld [vmem:[%s906 + $0x60] sm:$0xff]
        %v920 = vld [vmem:[%s906 + $0x68] sm:$0xff]
        %v921 = vld [vmem:[%s906 + $0x70] sm:$0xff]
        %v922 = vld [vmem:[%s906 + $0x78] sm:$0xff]
        %923 = vmatpush.msra.mxu0 %v922
        %924 = vmatpush.msra.mxu0 %v921
        %925 = vmatpush.msra.mxu0 %v920
        %926 = vmatpush.msra.mxu0 %v919
        %927 = vmatpush.msra.mxu0 %v918
        %928 = vmatpush.msra.mxu0 %v917
        %929 = vmatpush.msra.mxu0 %v916
        %930 = vmatpush.msra.mxu0 %v915
        %931 = vmatpush.msra.mxu0 %v914
        %932 = vmatpush.msra.mxu0 %v913
        %933 = vmatpush.msra.mxu0 %v912
        %934 = vmatpush.msra.mxu0 %v911
        %935 = vmatpush.msra.mxu0 %v910
        %936 = vmatpush.msra.mxu0 %v909
        %937 = vmatpush.msra.mxu0 %v908
        %938 = vmatpush.msra.mxu0 %v907
        %939 = vmatmul.f32.gmra.mxu0 %v870
        %v940 = vpop.f32.mrf.mxu0
        %v941 = vadd.f32 0.0, %v940
        %942 = vmatmul.f32.gmra.mxu0 %v871
        %v943 = vpop.f32.mrf.mxu0
        %v944 = vadd.f32 0.0, %v943
        %945 = vmatmul.f32.gmra.mxu0 %v872
        %v946 = vpop.f32.mrf.mxu0
        %v947 = vadd.f32 0.0, %v946
        %948 = vmatmul.f32.gmra.mxu0 %v873
        %v949 = vpop.f32.mrf.mxu0
        %v950 = vadd.f32 0.0, %v949
        %951 = vmatmul.f32.gmra.mxu0 %v874
        %v952 = vpop.f32.mrf.mxu0
        %v953 = vadd.f32 0.0, %v952
        %954 = vmatmul.f32.gmra.mxu0 %v875
        %v955 = vpop.f32.mrf.mxu0
        %v956 = vadd.f32 0.0, %v955
        %957 = vmatmul.f32.gmra.mxu0 %v876
        %v958 = vpop.f32.mrf.mxu0
        %v959 = vadd.f32 0.0, %v958
        %960 = vmatmul.f32.gmra.mxu0 %v877
        %v961 = vpop.f32.mrf.mxu0
        %v962 = vadd.f32 0.0, %v961
        %963 = vmatmul.f32.gmra.mxu0 %v878
        %v964 = vpop.f32.mrf.mxu0
        %v965 = vadd.f32 0.0, %v964
        %966 = vmatmul.f32.gmra.mxu0 %v879
        %v967 = vpop.f32.mrf.mxu0
        %v968 = vadd.f32 0.0, %v967
        %969 = vmatmul.f32.gmra.mxu0 %v880
        %v970 = vpop.f32.mrf.mxu0
        %v971 = vadd.f32 0.0, %v970
        %972 = vmatmul.f32.gmra.mxu0 %v881
        %v973 = vpop.f32.mrf.mxu0
        %v974 = vadd.f32 0.0, %v973
        %975 = vmatmul.f32.gmra.mxu0 %v882
        %v976 = vpop.f32.mrf.mxu0
        %v977 = vadd.f32 0.0, %v976
        %978 = vmatmul.f32.gmra.mxu0 %v883
        %v979 = vpop.f32.mrf.mxu0
        %v980 = vadd.f32 0.0, %v979
        %981 = vmatmul.f32.gmra.mxu0 %v884
        %v982 = vpop.f32.mrf.mxu0
        %v983 = vadd.f32 0.0, %v982
        %984 = vmatmul.f32.gmra.mxu0 %v885
        %v985 = vpop.f32.mrf.mxu0
        %v986 = vadd.f32 0.0, %v985
        %987 = vmatmul.f32.gmra.mxu0 %v886
        %v988 = vpop.f32.mrf.mxu0
        %v989 = vadd.f32 0.0, %v988
        %990 = vmatmul.f32.gmra.mxu0 %v887
        %v991 = vpop.f32.mrf.mxu0
        %v992 = vadd.f32 0.0, %v991
        %993 = vmatmul.f32.gmra.mxu0 %v888
        %v994 = vpop.f32.mrf.mxu0
        %v995 = vadd.f32 0.0, %v994
        %996 = vmatmul.f32.gmra.mxu0 %v889
        %v997 = vpop.f32.mrf.mxu0
        %v998 = vadd.f32 0.0, %v997
        %999 = vmatmul.f32.gmra.mxu0 %v890
        %v1000 = vpop.f32.mrf.mxu0
        %v1001 = vadd.f32 0.0, %v1000
        %1002 = vmatmul.f32.gmra.mxu0 %v891
        %v1003 = vpop.f32.mrf.mxu0
        %v1004 = vadd.f32 0.0, %v1003
        %1005 = vmatmul.f32.gmra.mxu0 %v892
        %v1006 = vpop.f32.mrf.mxu0
        %v1007 = vadd.f32 0.0, %v1006
        %1008 = vmatmul.f32.gmra.mxu0 %v893
        %v1009 = vpop.f32.mrf.mxu0
        %v1010 = vadd.f32 0.0, %v1009
        %1011 = vmatmul.f32.gmra.mxu0 %v894
        %v1012 = vpop.f32.mrf.mxu0
        %v1013 = vadd.f32 0.0, %v1012
        %1014 = vmatmul.f32.gmra.mxu0 %v895
        %v1015 = vpop.f32.mrf.mxu0
        %v1016 = vadd.f32 0.0, %v1015
        %1017 = vmatmul.f32.gmra.mxu0 %v896
        %v1018 = vpop.f32.mrf.mxu0
        %v1019 = vadd.f32 0.0, %v1018
        %1020 = vmatmul.f32.gmra.mxu0 %v897
        %v1021 = vpop.f32.mrf.mxu0
        %v1022 = vadd.f32 0.0, %v1021
        %1023 = vmatmul.f32.gmra.mxu0 %v898
        %v1024 = vpop.f32.mrf.mxu0
        %v1025 = vadd.f32 0.0, %v1024
        %1026 = vmatmul.f32.gmra.mxu0 %v899
        %v1027 = vpop.f32.mrf.mxu0
        %v1028 = vadd.f32 0.0, %v1027
        %1029 = vmatmul.f32.gmra.mxu0 %v900
        %v1030 = vpop.f32.mrf.mxu0
        %v1031 = vadd.f32 0.0, %v1030
        %1032 = vmatmul.f32.gmra.mxu0 %v901
        %v1033 = vpop.f32.mrf.mxu0
        %v1034 = vadd.f32 0.0, %v1033
        %1035 = vmatmul.f32.gmra.mxu0 %v902
        %v1036 = vpop.f32.mrf.mxu0
        %v1037 = vadd.f32 0.0, %v1036
        %1038 = vmatmul.f32.gmra.mxu0 %v903
        %v1039 = vpop.f32.mrf.mxu0
        %v1040 = vadd.f32 0.0, %v1039
        %1041 = vmatmul.f32.gmra.mxu0 %v904
        %v1042 = vpop.f32.mrf.mxu0
        %v1043 = vadd.f32 0.0, %v1042
        %1044 = vmatmul.f32.gmra.mxu0 %v905
        %v1045 = vpop.f32.mrf.mxu0
        %v1046 = vadd.f32 0.0, %v1045
        %1047 = vdwg.mxu0
        %v1048 = vadd.f32 %v834, %v941
        %v1049 = vadd.f32 %v835, %v944
        %v1050 = vadd.f32 %v836, %v947
        %v1051 = vadd.f32 %v837, %v950
        %v1052 = vadd.f32 %v838, %v953
        %v1053 = vadd.f32 %v839, %v956
        %v1054 = vadd.f32 %v840, %v959
        %v1055 = vadd.f32 %v841, %v962
        %v1056 = vadd.f32 %v842, %v965
        %v1057 = vadd.f32 %v843, %v968
        %v1058 = vadd.f32 %v844, %v971
        %v1059 = vadd.f32 %v845, %v974
        %v1060 = vadd.f32 %v846, %v977
        %v1061 = vadd.f32 %v847, %v980
        %v1062 = vadd.f32 %v848, %v983
        %v1063 = vadd.f32 %v849, %v986
        %v1064 = vadd.f32 %v850, %v989
        %v1065 = vadd.f32 %v851, %v992
        %v1066 = vadd.f32 %v852, %v995
        %v1067 = vadd.f32 %v853, %v998
        %v1068 = vadd.f32 %v854, %v1001
        %v1069 = vadd.f32 %v855, %v1004
        %v1070 = vadd.f32 %v856, %v1007
        %v1071 = vadd.f32 %v857, %v1010
        %v1072 = vadd.f32 %v858, %v1013
        %v1073 = vadd.f32 %v859, %v1016
        %v1074 = vadd.f32 %v860, %v1019
        %v1075 = vadd.f32 %v861, %v1022
        %v1076 = vadd.f32 %v862, %v1025
        %v1077 = vadd.f32 %v863, %v1028
        %v1078 = vadd.f32 %v864, %v1031
        %v1079 = vadd.f32 %v865, %v1034
        %v1080 = vadd.f32 %v866, %v1037
        %v1081 = vadd.f32 %v867, %v1040
        %v1082 = vadd.f32 %v868, %v1043
        %v1083 = vadd.f32 %v869, %v1046
        %1084 = vst [vmem:[#allocation2] sm:$0xff] %v1048
        %1085 = vst [vmem:[#allocation2 + $0x8] sm:$0xff] %v1049
        %1086 = vst [vmem:[#allocation2 + $0x10] sm:$0xff] %v1050
        %1087 = vst [vmem:[#allocation2 + $0x18] sm:$0xff] %v1051
        %1088 = vst [vmem:[#allocation2 + $0x20] sm:$0xff] %v1052
        %1089 = vst [vmem:[#allocation2 + $0x28] sm:$0xff] %v1053
        %1090 = vst [vmem:[#allocation2 + $0x30] sm:$0xff] %v1054
        %1091 = vst [vmem:[#allocation2 + $0x38] sm:$0xff] %v1055
        %1092 = vst [vmem:[#allocation2 + $0x40] sm:$0xff] %v1056
        %1093 = vst [vmem:[#allocation2 + $0x48] sm:$0xff] %v1057
        %1094 = vst [vmem:[#allocation2 + $0x50] sm:$0xff] %v1058
        %1095 = vst [vmem:[#allocation2 + $0x58] sm:$0xff] %v1059
        %1096 = vst [vmem:[#allocation2 + $0x60] sm:$0xff] %v1060
        %1097 = vst [vmem:[#allocation2 + $0x68] sm:$0xff] %v1061
        %1098 = vst [vmem:[#allocation2 + $0x70] sm:$0xff] %v1062
        %1099 = vst [vmem:[#allocation2 + $0x78] sm:$0xff] %v1063
        %1100 = vst [vmem:[#allocation2 + $0x80] sm:$0xff] %v1064
        %1101 = vst [vmem:[#allocation2 + $0x88] sm:$0xff] %v1065
        %1102 = vst [vmem:[#allocation2 + $0x90] sm:$0xff] %v1066
        %1103 = vst [vmem:[#allocation2 + $0x98] sm:$0xff] %v1067
        %1104 = vst [vmem:[#allocation2 + $0xa0] sm:$0xff] %v1068
        %1105 = vst [vmem:[#allocation2 + $0xa8] sm:$0xff] %v1069
        %1106 = vst [vmem:[#allocation2 + $0xb0] sm:$0xff] %v1070
        %1107 = vst [vmem:[#allocation2 + $0xb8] sm:$0xff] %v1071
        %1108 = vst [vmem:[#allocation2 + $0xc0] sm:$0xff] %v1072
        %1109 = vst [vmem:[#allocation2 + $0xc8] sm:$0xff] %v1073
        %1110 = vst [vmem:[#allocation2 + $0xd0] sm:$0xff] %v1074
        %1111 = vst [vmem:[#allocation2 + $0xd8] sm:$0xff] %v1075
        %1112 = vst [vmem:[#allocation2 + $0xe0] sm:$0xff] %v1076
        %1113 = vst [vmem:[#allocation2 + $0xe8] sm:$0xff] %v1077
        %1114 = vst [vmem:[#allocation2 + $0xf0] sm:$0xff] %v1078
        %1115 = vst [vmem:[#allocation2 + $0xf8] sm:$0xff] %v1079
        %1116 = vst [vmem:[#allocation2 + $0x100] sm:$0xff] %v1080
        %1117 = vst [vmem:[#allocation2 + $0x108] sm:$0xff] %v1081
        %1118 = vst [vmem:[#allocation2 + $0x110] sm:$0xff] %v1082
        %1119 = vst [vmem:[#allocation2 + $0x118] sm:$0xff] %v1083
        %v1120 = vld [vmem:[#allocation2] sm:$0xff]
        %v1121 = vld [vmem:[#allocation2 + $0x8] sm:$0xff]
        %v1122 = vld [vmem:[#allocation2 + $0x10] sm:$0xff]
        %v1123 = vld [vmem:[#allocation2 + $0x18] sm:$0xff]
        %v1124 = vld [vmem:[#allocation2 + $0x20] sm:$0xff]
        %v1125 = vld [vmem:[#allocation2 + $0x28] sm:$0xff]
        %v1126 = vld [vmem:[#allocation2 + $0x30] sm:$0xff]
        %v1127 = vld [vmem:[#allocation2 + $0x38] sm:$0xff]
        %v1128 = vld [vmem:[#allocation2 + $0x40] sm:$0xff]
        %v1129 = vld [vmem:[#allocation2 + $0x48] sm:$0xff]
        %v1130 = vld [vmem:[#allocation2 + $0x50] sm:$0xff]
        %v1131 = vld [vmem:[#allocation2 + $0x58] sm:$0xff]
        %v1132 = vld [vmem:[#allocation2 + $0x60] sm:$0xff]
        %v1133 = vld [vmem:[#allocation2 + $0x68] sm:$0xff]
        %v1134 = vld [vmem:[#allocation2 + $0x70] sm:$0xff]
        %v1135 = vld [vmem:[#allocation2 + $0x78] sm:$0xff]
        %v1136 = vld [vmem:[#allocation2 + $0x80] sm:$0xff]
        %v1137 = vld [vmem:[#allocation2 + $0x88] sm:$0xff]
        %v1138 = vld [vmem:[#allocation2 + $0x90] sm:$0xff]
        %v1139 = vld [vmem:[#allocation2 + $0x98] sm:$0xff]
        %v1140 = vld [vmem:[#allocation2 + $0xa0] sm:$0xff]
        %v1141 = vld [vmem:[#allocation2 + $0xa8] sm:$0xff]
        %v1142 = vld [vmem:[#allocation2 + $0xb0] sm:$0xff]
        %v1143 = vld [vmem:[#allocation2 + $0xb8] sm:$0xff]
        %v1144 = vld [vmem:[#allocation2 + $0xc0] sm:$0xff]
        %v1145 = vld [vmem:[#allocation2 + $0xc8] sm:$0xff]
        %v1146 = vld [vmem:[#allocation2 + $0xd0] sm:$0xff]
        %v1147 = vld [vmem:[#allocation2 + $0xd8] sm:$0xff]
        %v1148 = vld [vmem:[#allocation2 + $0xe0] sm:$0xff]
        %v1149 = vld [vmem:[#allocation2 + $0xe8] sm:$0xff]
        %v1150 = vld [vmem:[#allocation2 + $0xf0] sm:$0xff]
        %v1151 = vld [vmem:[#allocation2 + $0xf8] sm:$0xff]
        %v1152 = vld [vmem:[#allocation2 + $0x100] sm:$0xff]
        %v1153 = vld [vmem:[#allocation2 + $0x108] sm:$0xff]
        %v1154 = vld [vmem:[#allocation2 + $0x110] sm:$0xff]
        %v1155 = vld [vmem:[#allocation2 + $0x118] sm:$0xff]
        %v1156 = vld [vmem:[%s222 + $0x12] sm:$0xff]
        %v1157 = vld [vmem:[%s222 + $0x1a] sm:$0xff]
        %v1158 = vld [vmem:[%s222 + $0x22] sm:$0xff]
        %v1159 = vld [vmem:[%s222 + $0x2a] sm:$0xff]
        %v1160 = vld [vmem:[%s222 + $0x32] sm:$0xff]
        %v1161 = vld [vmem:[%s222 + $0x3a] sm:$0xff]
        %v1162 = vld [vmem:[%s222 + $0x42] sm:$0xff]
        %v1163 = vld [vmem:[%s222 + $0x4a] sm:$0xff]
        %v1164 = vld [vmem:[%s222 + $0x52] sm:$0xff]
        %v1165 = vld [vmem:[%s222 + $0x5a] sm:$0xff]
        %v1166 = vld [vmem:[%s222 + $0x62] sm:$0xff]
        %v1167 = vld [vmem:[%s222 + $0x6a] sm:$0xff]
        %v1168 = vld [vmem:[%s222 + $0x72] sm:$0xff]
        %v1169 = vld [vmem:[%s222 + $0x7a] sm:$0xff]
        %v1170 = vld [vmem:[%s222 + $0x82] sm:$0xff]
        %v1171 = vld [vmem:[%s222 + $0x8a] sm:$0xff]
        %v1172 = vld [vmem:[%s222 + $0x92] sm:$0xff]
        %v1173 = vld [vmem:[%s222 + $0x9a] sm:$0xff]
        %v1174 = vld [vmem:[%s222 + $0xa2] sm:$0xff]
        %v1175 = vld [vmem:[%s222 + $0xaa] sm:$0xff]
        %v1176 = vld [vmem:[%s222 + $0xb2] sm:$0xff]
        %v1177 = vld [vmem:[%s222 + $0xba] sm:$0xff]
        %v1178 = vld [vmem:[%s222 + $0xc2] sm:$0xff]
        %v1179 = vld [vmem:[%s222 + $0xca] sm:$0xff]
        %v1180 = vld [vmem:[%s222 + $0xd2] sm:$0xff]
        %v1181 = vld [vmem:[%s222 + $0xda] sm:$0xff]
        %v1182 = vld [vmem:[%s222 + $0xe2] sm:$0xff]
        %v1183 = vld [vmem:[%s222 + $0xea] sm:$0xff]
        %v1184 = vld [vmem:[%s222 + $0xf2] sm:$0xff]
        %v1185 = vld [vmem:[%s222 + $0xfa] sm:$0xff]
        %v1186 = vld [vmem:[%s222 + $0x102] sm:$0xff]
        %v1187 = vld [vmem:[%s222 + $0x10a] sm:$0xff]
        %v1188 = vld [vmem:[%s222 + $0x112] sm:$0xff]
        %v1189 = vld [vmem:[%s222 + $0x11a] sm:$0xff]
        %v1190 = vld [vmem:[%s222 + $0x122] sm:$0xff]
        %v1191 = vld [vmem:[%s222 + $0x12a] sm:$0xff]
        %s1192 = scalar_lea.vmem %s1, 384
        %v1193 = vld [vmem:[%s1192] sm:$0xff]
        %v1194 = vld [vmem:[%s1192 + $0x8] sm:$0xff]
        %v1195 = vld [vmem:[%s1192 + $0x10] sm:$0xff]
        %v1196 = vld [vmem:[%s1192 + $0x18] sm:$0xff]
        %v1197 = vld [vmem:[%s1192 + $0x20] sm:$0xff]
        %v1198 = vld [vmem:[%s1192 + $0x28] sm:$0xff]
        %v1199 = vld [vmem:[%s1192 + $0x30] sm:$0xff]
        %v1200 = vld [vmem:[%s1192 + $0x38] sm:$0xff]
        %v1201 = vld [vmem:[%s1192 + $0x40] sm:$0xff]
        %v1202 = vld [vmem:[%s1192 + $0x48] sm:$0xff]
        %v1203 = vld [vmem:[%s1192 + $0x50] sm:$0xff]
        %v1204 = vld [vmem:[%s1192 + $0x58] sm:$0xff]
        %v1205 = vld [vmem:[%s1192 + $0x60] sm:$0xff]
        %v1206 = vld [vmem:[%s1192 + $0x68] sm:$0xff]
        %v1207 = vld [vmem:[%s1192 + $0x70] sm:$0xff]
        %v1208 = vld [vmem:[%s1192 + $0x78] sm:$0xff]
        %1209 = vmatpush.msra.mxu0 %v1208
        %1210 = vmatpush.msra.mxu0 %v1207
        %1211 = vmatpush.msra.mxu0 %v1206
        %1212 = vmatpush.msra.mxu0 %v1205
        %1213 = vmatpush.msra.mxu0 %v1204
        %1214 = vmatpush.msra.mxu0 %v1203
        %1215 = vmatpush.msra.mxu0 %v1202
        %1216 = vmatpush.msra.mxu0 %v1201
        %1217 = vmatpush.msra.mxu0 %v1200
        %1218 = vmatpush.msra.mxu0 %v1199
        %1219 = vmatpush.msra.mxu0 %v1198
        %1220 = vmatpush.msra.mxu0 %v1197
        %1221 = vmatpush.msra.mxu0 %v1196
        %1222 = vmatpush.msra.mxu0 %v1195
        %1223 = vmatpush.msra.mxu0 %v1194
        %1224 = vmatpush.msra.mxu0 %v1193
        %1225 = vmatmul.f32.gmra.mxu0 %v1156
        %v1226 = vpop.f32.mrf.mxu0
        %v1227 = vadd.f32 0.0, %v1226
        %1228 = vmatmul.f32.gmra.mxu0 %v1157
        %v1229 = vpop.f32.mrf.mxu0
        %v1230 = vadd.f32 0.0, %v1229
        %1231 = vmatmul.f32.gmra.mxu0 %v1158
        %v1232 = vpop.f32.mrf.mxu0
        %v1233 = vadd.f32 0.0, %v1232
        %1234 = vmatmul.f32.gmra.mxu0 %v1159
        %v1235 = vpop.f32.mrf.mxu0
        %v1236 = vadd.f32 0.0, %v1235
        %1237 = vmatmul.f32.gmra.mxu0 %v1160
        %v1238 = vpop.f32.mrf.mxu0
        %v1239 = vadd.f32 0.0, %v1238
        %1240 = vmatmul.f32.gmra.mxu0 %v1161
        %v1241 = vpop.f32.mrf.mxu0
        %v1242 = vadd.f32 0.0, %v1241
        %1243 = vmatmul.f32.gmra.mxu0 %v1162
        %v1244 = vpop.f32.mrf.mxu0
        %v1245 = vadd.f32 0.0, %v1244
        %1246 = vmatmul.f32.gmra.mxu0 %v1163
        %v1247 = vpop.f32.mrf.mxu0
        %v1248 = vadd.f32 0.0, %v1247
        %1249 = vmatmul.f32.gmra.mxu0 %v1164
        %v1250 = vpop.f32.mrf.mxu0
        %v1251 = vadd.f32 0.0, %v1250
        %1252 = vmatmul.f32.gmra.mxu0 %v1165
        %v1253 = vpop.f32.mrf.mxu0
        %v1254 = vadd.f32 0.0, %v1253
        %1255 = vmatmul.f32.gmra.mxu0 %v1166
        %v1256 = vpop.f32.mrf.mxu0
        %v1257 = vadd.f32 0.0, %v1256
        %1258 = vmatmul.f32.gmra.mxu0 %v1167
        %v1259 = vpop.f32.mrf.mxu0
        %v1260 = vadd.f32 0.0, %v1259
        %1261 = vmatmul.f32.gmra.mxu0 %v1168
        %v1262 = vpop.f32.mrf.mxu0
        %v1263 = vadd.f32 0.0, %v1262
        %1264 = vmatmul.f32.gmra.mxu0 %v1169
        %v1265 = vpop.f32.mrf.mxu0
        %v1266 = vadd.f32 0.0, %v1265
        %1267 = vmatmul.f32.gmra.mxu0 %v1170
        %v1268 = vpop.f32.mrf.mxu0
        %v1269 = vadd.f32 0.0, %v1268
        %1270 = vmatmul.f32.gmra.mxu0 %v1171
        %v1271 = vpop.f32.mrf.mxu0
        %v1272 = vadd.f32 0.0, %v1271
        %1273 = vmatmul.f32.gmra.mxu0 %v1172
        %v1274 = vpop.f32.mrf.mxu0
        %v1275 = vadd.f32 0.0, %v1274
        %1276 = vmatmul.f32.gmra.mxu0 %v1173
        %v1277 = vpop.f32.mrf.mxu0
        %v1278 = vadd.f32 0.0, %v1277
        %1279 = vmatmul.f32.gmra.mxu0 %v1174
        %v1280 = vpop.f32.mrf.mxu0
        %v1281 = vadd.f32 0.0, %v1280
        %1282 = vmatmul.f32.gmra.mxu0 %v1175
        %v1283 = vpop.f32.mrf.mxu0
        %v1284 = vadd.f32 0.0, %v1283
        %1285 = vmatmul.f32.gmra.mxu0 %v1176
        %v1286 = vpop.f32.mrf.mxu0
        %v1287 = vadd.f32 0.0, %v1286
        %1288 = vmatmul.f32.gmra.mxu0 %v1177
        %v1289 = vpop.f32.mrf.mxu0
        %v1290 = vadd.f32 0.0, %v1289
        %1291 = vmatmul.f32.gmra.mxu0 %v1178
        %v1292 = vpop.f32.mrf.mxu0
        %v1293 = vadd.f32 0.0, %v1292
        %1294 = vmatmul.f32.gmra.mxu0 %v1179
        %v1295 = vpop.f32.mrf.mxu0
        %v1296 = vadd.f32 0.0, %v1295
        %1297 = vmatmul.f32.gmra.mxu0 %v1180
        %v1298 = vpop.f32.mrf.mxu0
        %v1299 = vadd.f32 0.0, %v1298
        %1300 = vmatmul.f32.gmra.mxu0 %v1181
        %v1301 = vpop.f32.mrf.mxu0
        %v1302 = vadd.f32 0.0, %v1301
        %1303 = vmatmul.f32.gmra.mxu0 %v1182
        %v1304 = vpop.f32.mrf.mxu0
        %v1305 = vadd.f32 0.0, %v1304
        %1306 = vmatmul.f32.gmra.mxu0 %v1183
        %v1307 = vpop.f32.mrf.mxu0
        %v1308 = vadd.f32 0.0, %v1307
        %1309 = vmatmul.f32.gmra.mxu0 %v1184
        %v1310 = vpop.f32.mrf.mxu0
        %v1311 = vadd.f32 0.0, %v1310
        %1312 = vmatmul.f32.gmra.mxu0 %v1185
        %v1313 = vpop.f32.mrf.mxu0
        %v1314 = vadd.f32 0.0, %v1313
        %1315 = vmatmul.f32.gmra.mxu0 %v1186
        %v1316 = vpop.f32.mrf.mxu0
        %v1317 = vadd.f32 0.0, %v1316
        %1318 = vmatmul.f32.gmra.mxu0 %v1187
        %v1319 = vpop.f32.mrf.mxu0
        %v1320 = vadd.f32 0.0, %v1319
        %1321 = vmatmul.f32.gmra.mxu0 %v1188
        %v1322 = vpop.f32.mrf.mxu0
        %v1323 = vadd.f32 0.0, %v1322
        %1324 = vmatmul.f32.gmra.mxu0 %v1189
        %v1325 = vpop.f32.mrf.mxu0
        %v1326 = vadd.f32 0.0, %v1325
        %1327 = vmatmul.f32.gmra.mxu0 %v1190
        %v1328 = vpop.f32.mrf.mxu0
        %v1329 = vadd.f32 0.0, %v1328
        %1330 = vmatmul.f32.gmra.mxu0 %v1191
        %v1331 = vpop.f32.mrf.mxu0
        %v1332 = vadd.f32 0.0, %v1331
        %1333 = vdwg.mxu0
        %v1334 = vadd.f32 %v1120, %v1227
        %v1335 = vadd.f32 %v1121, %v1230
        %v1336 = vadd.f32 %v1122, %v1233
        %v1337 = vadd.f32 %v1123, %v1236
        %v1338 = vadd.f32 %v1124, %v1239
        %v1339 = vadd.f32 %v1125, %v1242
        %v1340 = vadd.f32 %v1126, %v1245
        %v1341 = vadd.f32 %v1127, %v1248
        %v1342 = vadd.f32 %v1128, %v1251
        %v1343 = vadd.f32 %v1129, %v1254
        %v1344 = vadd.f32 %v1130, %v1257
        %v1345 = vadd.f32 %v1131, %v1260
        %v1346 = vadd.f32 %v1132, %v1263
        %v1347 = vadd.f32 %v1133, %v1266
        %v1348 = vadd.f32 %v1134, %v1269
        %v1349 = vadd.f32 %v1135, %v1272
        %v1350 = vadd.f32 %v1136, %v1275
        %v1351 = vadd.f32 %v1137, %v1278
        %v1352 = vadd.f32 %v1138, %v1281
        %v1353 = vadd.f32 %v1139, %v1284
        %v1354 = vadd.f32 %v1140, %v1287
        %v1355 = vadd.f32 %v1141, %v1290
        %v1356 = vadd.f32 %v1142, %v1293
        %v1357 = vadd.f32 %v1143, %v1296
        %v1358 = vadd.f32 %v1144, %v1299
        %v1359 = vadd.f32 %v1145, %v1302
        %v1360 = vadd.f32 %v1146, %v1305
        %v1361 = vadd.f32 %v1147, %v1308
        %v1362 = vadd.f32 %v1148, %v1311
        %v1363 = vadd.f32 %v1149, %v1314
        %v1364 = vadd.f32 %v1150, %v1317
        %v1365 = vadd.f32 %v1151, %v1320
        %v1366 = vadd.f32 %v1152, %v1323
        %v1367 = vadd.f32 %v1153, %v1326
        %v1368 = vadd.f32 %v1154, %v1329
        %v1369 = vadd.f32 %v1155, %v1332
        %1370 = vst [vmem:[#allocation2] sm:$0xff] %v1334
        %1371 = vst [vmem:[#allocation2 + $0x8] sm:$0xff] %v1335
        %1372 = vst [vmem:[#allocation2 + $0x10] sm:$0xff] %v1336
        %1373 = vst [vmem:[#allocation2 + $0x18] sm:$0xff] %v1337
        %1374 = vst [vmem:[#allocation2 + $0x20] sm:$0xff] %v1338
        %1375 = vst [vmem:[#allocation2 + $0x28] sm:$0xff] %v1339
        %1376 = vst [vmem:[#allocation2 + $0x30] sm:$0xff] %v1340
        %1377 = vst [vmem:[#allocation2 + $0x38] sm:$0xff] %v1341
        %1378 = vst [vmem:[#allocation2 + $0x40] sm:$0xff] %v1342
        %1379 = vst [vmem:[#allocation2 + $0x48] sm:$0xff] %v1343
        %1380 = vst [vmem:[#allocation2 + $0x50] sm:$0xff] %v1344
        %1381 = vst [vmem:[#allocation2 + $0x58] sm:$0xff] %v1345
        %1382 = vst [vmem:[#allocation2 + $0x60] sm:$0xff] %v1346
        %1383 = vst [vmem:[#allocation2 + $0x68] sm:$0xff] %v1347
        %1384 = vst [vmem:[#allocation2 + $0x70] sm:$0xff] %v1348
        %1385 = vst [vmem:[#allocation2 + $0x78] sm:$0xff] %v1349
        %1386 = vst [vmem:[#allocation2 + $0x80] sm:$0xff] %v1350
        %1387 = vst [vmem:[#allocation2 + $0x88] sm:$0xff] %v1351
        %1388 = vst [vmem:[#allocation2 + $0x90] sm:$0xff] %v1352
        %1389 = vst [vmem:[#allocation2 + $0x98] sm:$0xff] %v1353
        %1390 = vst [vmem:[#allocation2 + $0xa0] sm:$0xff] %v1354
        %1391 = vst [vmem:[#allocation2 + $0xa8] sm:$0xff] %v1355
        %1392 = vst [vmem:[#allocation2 + $0xb0] sm:$0xff] %v1356
        %1393 = vst [vmem:[#allocation2 + $0xb8] sm:$0xff] %v1357
        %1394 = vst [vmem:[#allocation2 + $0xc0] sm:$0xff] %v1358
        %1395 = vst [vmem:[#allocation2 + $0xc8] sm:$0xff] %v1359
        %1396 = vst [vmem:[#allocation2 + $0xd0] sm:$0xff] %v1360
        %1397 = vst [vmem:[#allocation2 + $0xd8] sm:$0xff] %v1361
        %1398 = vst [vmem:[#allocation2 + $0xe0] sm:$0xff] %v1362
        %1399 = vst [vmem:[#allocation2 + $0xe8] sm:$0xff] %v1363
        %1400 = vst [vmem:[#allocation2 + $0xf0] sm:$0xff] %v1364
        %1401 = vst [vmem:[#allocation2 + $0xf8] sm:$0xff] %v1365
        %1402 = vst [vmem:[#allocation2 + $0x100] sm:$0xff] %v1366
        %1403 = vst [vmem:[#allocation2 + $0x108] sm:$0xff] %v1367
        %1404 = vst [vmem:[#allocation2 + $0x110] sm:$0xff] %v1368
        %1405 = vst [vmem:[#allocation2 + $0x118] sm:$0xff] %v1369
        %v1406 = vld [vmem:[#allocation2] sm:$0xff]
        %v1407 = vld [vmem:[#allocation2 + $0x8] sm:$0xff]
        %v1408 = vld [vmem:[#allocation2 + $0x10] sm:$0xff]
        %v1409 = vld [vmem:[#allocation2 + $0x18] sm:$0xff]
        %v1410 = vld [vmem:[#allocation2 + $0x20] sm:$0xff]
        %v1411 = vld [vmem:[#allocation2 + $0x28] sm:$0xff]
        %v1412 = vld [vmem:[#allocation2 + $0x30] sm:$0xff]
        %v1413 = vld [vmem:[#allocation2 + $0x38] sm:$0xff]
        %v1414 = vld [vmem:[#allocation2 + $0x40] sm:$0xff]
        %v1415 = vld [vmem:[#allocation2 + $0x48] sm:$0xff]
        %v1416 = vld [vmem:[#allocation2 + $0x50] sm:$0xff]
        %v1417 = vld [vmem:[#allocation2 + $0x58] sm:$0xff]
        %v1418 = vld [vmem:[#allocation2 + $0x60] sm:$0xff]
        %v1419 = vld [vmem:[#allocation2 + $0x68] sm:$0xff]
        %v1420 = vld [vmem:[#allocation2 + $0x70] sm:$0xff]
        %v1421 = vld [vmem:[#allocation2 + $0x78] sm:$0xff]
        %v1422 = vld [vmem:[#allocation2 + $0x80] sm:$0xff]
        %v1423 = vld [vmem:[#allocation2 + $0x88] sm:$0xff]
        %v1424 = vld [vmem:[#allocation2 + $0x90] sm:$0xff]
        %v1425 = vld [vmem:[#allocation2 + $0x98] sm:$0xff]
        %v1426 = vld [vmem:[#allocation2 + $0xa0] sm:$0xff]
        %v1427 = vld [vmem:[#allocation2 + $0xa8] sm:$0xff]
        %v1428 = vld [vmem:[#allocation2 + $0xb0] sm:$0xff]
        %v1429 = vld [vmem:[#allocation2 + $0xb8] sm:$0xff]
        %v1430 = vld [vmem:[#allocation2 + $0xc0] sm:$0xff]
        %v1431 = vld [vmem:[#allocation2 + $0xc8] sm:$0xff]
        %v1432 = vld [vmem:[#allocation2 + $0xd0] sm:$0xff]
        %v1433 = vld [vmem:[#allocation2 + $0xd8] sm:$0xff]
        %v1434 = vld [vmem:[#allocation2 + $0xe0] sm:$0xff]
        %v1435 = vld [vmem:[#allocation2 + $0xe8] sm:$0xff]
        %v1436 = vld [vmem:[#allocation2 + $0xf0] sm:$0xff]
        %v1437 = vld [vmem:[#allocation2 + $0xf8] sm:$0xff]
        %v1438 = vld [vmem:[#allocation2 + $0x100] sm:$0xff]
        %v1439 = vld [vmem:[#allocation2 + $0x108] sm:$0xff]
        %v1440 = vld [vmem:[#allocation2 + $0x110] sm:$0xff]
        %v1441 = vld [vmem:[#allocation2 + $0x118] sm:$0xff]
        %v1442 = vld [vmem:[%s222 + $0x13] sm:$0xff]
        %v1443 = vld [vmem:[%s222 + $0x1b] sm:$0xff]
        %v1444 = vld [vmem:[%s222 + $0x23] sm:$0xff]
        %v1445 = vld [vmem:[%s222 + $0x2b] sm:$0xff]
        %v1446 = vld [vmem:[%s222 + $0x33] sm:$0xff]
        %v1447 = vld [vmem:[%s222 + $0x3b] sm:$0xff]
        %v1448 = vld [vmem:[%s222 + $0x43] sm:$0xff]
        %v1449 = vld [vmem:[%s222 + $0x4b] sm:$0xff]
        %v1450 = vld [vmem:[%s222 + $0x53] sm:$0xff]
        %v1451 = vld [vmem:[%s222 + $0x5b] sm:$0xff]
        %v1452 = vld [vmem:[%s222 + $0x63] sm:$0xff]
        %v1453 = vld [vmem:[%s222 + $0x6b] sm:$0xff]
        %v1454 = vld [vmem:[%s222 + $0x73] sm:$0xff]
        %v1455 = vld [vmem:[%s222 + $0x7b] sm:$0xff]
        %v1456 = vld [vmem:[%s222 + $0x83] sm:$0xff]
        %v1457 = vld [vmem:[%s222 + $0x8b] sm:$0xff]
        %v1458 = vld [vmem:[%s222 + $0x93] sm:$0xff]
        %v1459 = vld [vmem:[%s222 + $0x9b] sm:$0xff]
        %v1460 = vld [vmem:[%s222 + $0xa3] sm:$0xff]
        %v1461 = vld [vmem:[%s222 + $0xab] sm:$0xff]
        %v1462 = vld [vmem:[%s222 + $0xb3] sm:$0xff]
        %v1463 = vld [vmem:[%s222 + $0xbb] sm:$0xff]
        %v1464 = vld [vmem:[%s222 + $0xc3] sm:$0xff]
        %v1465 = vld [vmem:[%s222 + $0xcb] sm:$0xff]
        %v1466 = vld [vmem:[%s222 + $0xd3] sm:$0xff]
        %v1467 = vld [vmem:[%s222 + $0xdb] sm:$0xff]
        %v1468 = vld [vmem:[%s222 + $0xe3] sm:$0xff]
        %v1469 = vld [vmem:[%s222 + $0xeb] sm:$0xff]
        %v1470 = vld [vmem:[%s222 + $0xf3] sm:$0xff]
        %v1471 = vld [vmem:[%s222 + $0xfb] sm:$0xff]
        %v1472 = vld [vmem:[%s222 + $0x103] sm:$0xff]
        %v1473 = vld [vmem:[%s222 + $0x10b] sm:$0xff]
        %v1474 = vld [vmem:[%s222 + $0x113] sm:$0xff]
        %v1475 = vld [vmem:[%s222 + $0x11b] sm:$0xff]
        %v1476 = vld [vmem:[%s222 + $0x123] sm:$0xff]
        %v1477 = vld [vmem:[%s222 + $0x12b] sm:$0xff]
        %s1478 = scalar_lea.vmem %s1, 512
        %v1479 = vld [vmem:[%s1478] sm:$0xff]
        %v1480 = vld [vmem:[%s1478 + $0x8] sm:$0xff]
        %v1481 = vld [vmem:[%s1478 + $0x10] sm:$0xff]
        %v1482 = vld [vmem:[%s1478 + $0x18] sm:$0xff]
        %v1483 = vld [vmem:[%s1478 + $0x20] sm:$0xff]
        %v1484 = vld [vmem:[%s1478 + $0x28] sm:$0xff]
        %v1485 = vld [vmem:[%s1478 + $0x30] sm:$0xff]
        %v1486 = vld [vmem:[%s1478 + $0x38] sm:$0xff]
        %v1487 = vld [vmem:[%s1478 + $0x40] sm:$0xff]
        %v1488 = vld [vmem:[%s1478 + $0x48] sm:$0xff]
        %v1489 = vld [vmem:[%s1478 + $0x50] sm:$0xff]
        %v1490 = vld [vmem:[%s1478 + $0x58] sm:$0xff]
        %v1491 = vld [vmem:[%s1478 + $0x60] sm:$0xff]
        %v1492 = vld [vmem:[%s1478 + $0x68] sm:$0xff]
        %v1493 = vld [vmem:[%s1478 + $0x70] sm:$0xff]
        %v1494 = vld [vmem:[%s1478 + $0x78] sm:$0xff]
        %1495 = vmatpush.msra.mxu0 %v1494
        %1496 = vmatpush.msra.mxu0 %v1493
        %1497 = vmatpush.msra.mxu0 %v1492
        %1498 = vmatpush.msra.mxu0 %v1491
        %1499 = vmatpush.msra.mxu0 %v1490
        %1500 = vmatpush.msra.mxu0 %v1489
        %1501 = vmatpush.msra.mxu0 %v1488
        %1502 = vmatpush.msra.mxu0 %v1487
        %1503 = vmatpush.msra.mxu0 %v1486
        %1504 = vmatpush.msra.mxu0 %v1485
        %1505 = vmatpush.msra.mxu0 %v1484
        %1506 = vmatpush.msra.mxu0 %v1483
        %1507 = vmatpush.msra.mxu0 %v1482
        %1508 = vmatpush.msra.mxu0 %v1481
        %1509 = vmatpush.msra.mxu0 %v1480
        %1510 = vmatpush.msra.mxu0 %v1479
        %1511 = vmatmul.f32.gmra.mxu0 %v1442
        %v1512 = vpop.f32.mrf.mxu0
        %v1513 = vadd.f32 0.0, %v1512
        %1514 = vmatmul.f32.gmra.mxu0 %v1443
        %v1515 = vpop.f32.mrf.mxu0
        %v1516 = vadd.f32 0.0, %v1515
        %1517 = vmatmul.f32.gmra.mxu0 %v1444
        %v1518 = vpop.f32.mrf.mxu0
        %v1519 = vadd.f32 0.0, %v1518
        %1520 = vmatmul.f32.gmra.mxu0 %v1445
        %v1521 = vpop.f32.mrf.mxu0
        %v1522 = vadd.f32 0.0, %v1521
        %1523 = vmatmul.f32.gmra.mxu0 %v1446
        %v1524 = vpop.f32.mrf.mxu0
        %v1525 = vadd.f32 0.0, %v1524
        %1526 = vmatmul.f32.gmra.mxu0 %v1447
        %v1527 = vpop.f32.mrf.mxu0
        %v1528 = vadd.f32 0.0, %v1527
        %1529 = vmatmul.f32.gmra.mxu0 %v1448
        %v1530 = vpop.f32.mrf.mxu0
        %v1531 = vadd.f32 0.0, %v1530
        %1532 = vmatmul.f32.gmra.mxu0 %v1449
        %v1533 = vpop.f32.mrf.mxu0
        %v1534 = vadd.f32 0.0, %v1533
        %1535 = vmatmul.f32.gmra.mxu0 %v1450
        %v1536 = vpop.f32.mrf.mxu0
        %v1537 = vadd.f32 0.0, %v1536
        %1538 = vmatmul.f32.gmra.mxu0 %v1451
        %v1539 = vpop.f32.mrf.mxu0
        %v1540 = vadd.f32 0.0, %v1539
        %1541 = vmatmul.f32.gmra.mxu0 %v1452
        %v1542 = vpop.f32.mrf.mxu0
        %v1543 = vadd.f32 0.0, %v1542
        %1544 = vmatmul.f32.gmra.mxu0 %v1453
        %v1545 = vpop.f32.mrf.mxu0
        %v1546 = vadd.f32 0.0, %v1545
        %1547 = vmatmul.f32.gmra.mxu0 %v1454
        %v1548 = vpop.f32.mrf.mxu0
        %v1549 = vadd.f32 0.0, %v1548
        %1550 = vmatmul.f32.gmra.mxu0 %v1455
        %v1551 = vpop.f32.mrf.mxu0
        %v1552 = vadd.f32 0.0, %v1551
        %1553 = vmatmul.f32.gmra.mxu0 %v1456
        %v1554 = vpop.f32.mrf.mxu0
        %v1555 = vadd.f32 0.0, %v1554
        %1556 = vmatmul.f32.gmra.mxu0 %v1457
        %v1557 = vpop.f32.mrf.mxu0
        %v1558 = vadd.f32 0.0, %v1557
        %1559 = vmatmul.f32.gmra.mxu0 %v1458
        %v1560 = vpop.f32.mrf.mxu0
        %v1561 = vadd.f32 0.0, %v1560
        %1562 = vmatmul.f32.gmra.mxu0 %v1459
        %v1563 = vpop.f32.mrf.mxu0
        %v1564 = vadd.f32 0.0, %v1563
        %1565 = vmatmul.f32.gmra.mxu0 %v1460
        %v1566 = vpop.f32.mrf.mxu0
        %v1567 = vadd.f32 0.0, %v1566
        %1568 = vmatmul.f32.gmra.mxu0 %v1461
        %v1569 = vpop.f32.mrf.mxu0
        %v1570 = vadd.f32 0.0, %v1569
        %1571 = vmatmul.f32.gmra.mxu0 %v1462
        %v1572 = vpop.f32.mrf.mxu0
        %v1573 = vadd.f32 0.0, %v1572
        %1574 = vmatmul.f32.gmra.mxu0 %v1463
        %v1575 = vpop.f32.mrf.mxu0
        %v1576 = vadd.f32 0.0, %v1575
        %1577 = vmatmul.f32.gmra.mxu0 %v1464
        %v1578 = vpop.f32.mrf.mxu0
        %v1579 = vadd.f32 0.0, %v1578
        %1580 = vmatmul.f32.gmra.mxu0 %v1465
        %v1581 = vpop.f32.mrf.mxu0
        %v1582 = vadd.f32 0.0, %v1581
        %1583 = vmatmul.f32.gmra.mxu0 %v1466
        %v1584 = vpop.f32.mrf.mxu0
        %v1585 = vadd.f32 0.0, %v1584
        %1586 = vmatmul.f32.gmra.mxu0 %v1467
        %v1587 = vpop.f32.mrf.mxu0
        %v1588 = vadd.f32 0.0, %v1587
        %1589 = vmatmul.f32.gmra.mxu0 %v1468
        %v1590 = vpop.f32.mrf.mxu0
        %v1591 = vadd.f32 0.0, %v1590
        %1592 = vmatmul.f32.gmra.mxu0 %v1469
        %v1593 = vpop.f32.mrf.mxu0
        %v1594 = vadd.f32 0.0, %v1593
        %1595 = vmatmul.f32.gmra.mxu0 %v1470
        %v1596 = vpop.f32.mrf.mxu0
        %v1597 = vadd.f32 0.0, %v1596
        %1598 = vmatmul.f32.gmra.mxu0 %v1471
        %v1599 = vpop.f32.mrf.mxu0
        %v1600 = vadd.f32 0.0, %v1599
        %1601 = vmatmul.f32.gmra.mxu0 %v1472
        %v1602 = vpop.f32.mrf.mxu0
        %v1603 = vadd.f32 0.0, %v1602
        %1604 = vmatmul.f32.gmra.mxu0 %v1473
        %v1605 = vpop.f32.mrf.mxu0
        %v1606 = vadd.f32 0.0, %v1605
        %1607 = vmatmul.f32.gmra.mxu0 %v1474
        %v1608 = vpop.f32.mrf.mxu0
        %v1609 = vadd.f32 0.0, %v1608
        %1610 = vmatmul.f32.gmra.mxu0 %v1475
        %v1611 = vpop.f32.mrf.mxu0
        %v1612 = vadd.f32 0.0, %v1611
        %1613 = vmatmul.f32.gmra.mxu0 %v1476
        %v1614 = vpop.f32.mrf.mxu0
        %v1615 = vadd.f32 0.0, %v1614
        %1616 = vmatmul.f32.gmra.mxu0 %v1477
        %v1617 = vpop.f32.mrf.mxu0
        %v1618 = vadd.f32 0.0, %v1617
        %1619 = vdwg.mxu0
        %v1620 = vadd.f32 %v1406, %v1513
        %v1621 = vadd.f32 %v1407, %v1516
        %v1622 = vadd.f32 %v1408, %v1519
        %v1623 = vadd.f32 %v1409, %v1522
        %v1624 = vadd.f32 %v1410, %v1525
        %v1625 = vadd.f32 %v1411, %v1528
        %v1626 = vadd.f32 %v1412, %v1531
        %v1627 = vadd.f32 %v1413, %v1534
        %v1628 = vadd.f32 %v1414, %v1537
        %v1629 = vadd.f32 %v1415, %v1540
        %v1630 = vadd.f32 %v1416, %v1543
        %v1631 = vadd.f32 %v1417, %v1546
        %v1632 = vadd.f32 %v1418, %v1549
        %v1633 = vadd.f32 %v1419, %v1552
        %v1634 = vadd.f32 %v1420, %v1555
        %v1635 = vadd.f32 %v1421, %v1558
        %v1636 = vadd.f32 %v1422, %v1561
        %v1637 = vadd.f32 %v1423, %v1564
        %v1638 = vadd.f32 %v1424, %v1567
        %v1639 = vadd.f32 %v1425, %v1570
        %v1640 = vadd.f32 %v1426, %v1573
        %v1641 = vadd.f32 %v1427, %v1576
        %v1642 = vadd.f32 %v1428, %v1579
        %v1643 = vadd.f32 %v1429, %v1582
        %v1644 = vadd.f32 %v1430, %v1585
        %v1645 = vadd.f32 %v1431, %v1588
        %v1646 = vadd.f32 %v1432, %v1591
        %v1647 = vadd.f32 %v1433, %v1594
        %v1648 = vadd.f32 %v1434, %v1597
        %v1649 = vadd.f32 %v1435, %v1600
        %v1650 = vadd.f32 %v1436, %v1603
        %v1651 = vadd.f32 %v1437, %v1606
        %v1652 = vadd.f32 %v1438, %v1609
        %v1653 = vadd.f32 %v1439, %v1612
        %v1654 = vadd.f32 %v1440, %v1615
        %v1655 = vadd.f32 %v1441, %v1618
        %1656 = vst [vmem:[#allocation2] sm:$0xff] %v1620
        %1657 = vst [vmem:[#allocation2 + $0x8] sm:$0xff] %v1621
        %1658 = vst [vmem:[#allocation2 + $0x10] sm:$0xff] %v1622
        %1659 = vst [vmem:[#allocation2 + $0x18] sm:$0xff] %v1623
        %1660 = vst [vmem:[#allocation2 + $0x20] sm:$0xff] %v1624
        %1661 = vst [vmem:[#allocation2 + $0x28] sm:$0xff] %v1625
        %1662 = vst [vmem:[#allocation2 + $0x30] sm:$0xff] %v1626
        %1663 = vst [vmem:[#allocation2 + $0x38] sm:$0xff] %v1627
        %1664 = vst [vmem:[#allocation2 + $0x40] sm:$0xff] %v1628
        %1665 = vst [vmem:[#allocation2 + $0x48] sm:$0xff] %v1629
        %1666 = vst [vmem:[#allocation2 + $0x50] sm:$0xff] %v1630
        %1667 = vst [vmem:[#allocation2 + $0x58] sm:$0xff] %v1631
        %1668 = vst [vmem:[#allocation2 + $0x60] sm:$0xff] %v1632
        %1669 = vst [vmem:[#allocation2 + $0x68] sm:$0xff] %v1633
        %1670 = vst [vmem:[#allocation2 + $0x70] sm:$0xff] %v1634
        %1671 = vst [vmem:[#allocation2 + $0x78] sm:$0xff] %v1635
        %1672 = vst [vmem:[#allocation2 + $0x80] sm:$0xff] %v1636
        %1673 = vst [vmem:[#allocation2 + $0x88] sm:$0xff] %v1637
        %1674 = vst [vmem:[#allocation2 + $0x90] sm:$0xff] %v1638
        %1675 = vst [vmem:[#allocation2 + $0x98] sm:$0xff] %v1639
        %1676 = vst [vmem:[#allocation2 + $0xa0] sm:$0xff] %v1640
        %1677 = vst [vmem:[#allocation2 + $0xa8] sm:$0xff] %v1641
        %1678 = vst [vmem:[#allocation2 + $0xb0] sm:$0xff] %v1642
        %1679 = vst [vmem:[#allocation2 + $0xb8] sm:$0xff] %v1643
        %1680 = vst [vmem:[#allocation2 + $0xc0] sm:$0xff] %v1644
        %1681 = vst [vmem:[#allocation2 + $0xc8] sm:$0xff] %v1645
        %1682 = vst [vmem:[#allocation2 + $0xd0] sm:$0xff] %v1646
        %1683 = vst [vmem:[#allocation2 + $0xd8] sm:$0xff] %v1647
        %1684 = vst [vmem:[#allocation2 + $0xe0] sm:$0xff] %v1648
        %1685 = vst [vmem:[#allocation2 + $0xe8] sm:$0xff] %v1649
        %1686 = vst [vmem:[#allocation2 + $0xf0] sm:$0xff] %v1650
        %1687 = vst [vmem:[#allocation2 + $0xf8] sm:$0xff] %v1651
        %1688 = vst [vmem:[#allocation2 + $0x100] sm:$0xff] %v1652
        %1689 = vst [vmem:[#allocation2 + $0x108] sm:$0xff] %v1653
        %1690 = vst [vmem:[#allocation2 + $0x110] sm:$0xff] %v1654
        %1691 = vst [vmem:[#allocation2 + $0x118] sm:$0xff] %v1655
        %v1692 = vld [vmem:[#allocation2] sm:$0xff]
        %v1693 = vld [vmem:[#allocation2 + $0x8] sm:$0xff]
        %v1694 = vld [vmem:[#allocation2 + $0x10] sm:$0xff]
        %v1695 = vld [vmem:[#allocation2 + $0x18] sm:$0xff]
        %v1696 = vld [vmem:[#allocation2 + $0x20] sm:$0xff]
        %v1697 = vld [vmem:[#allocation2 + $0x28] sm:$0xff]
        %v1698 = vld [vmem:[#allocation2 + $0x30] sm:$0xff]
        %v1699 = vld [vmem:[#allocation2 + $0x38] sm:$0xff]
        %v1700 = vld [vmem:[#allocation2 + $0x40] sm:$0xff]
        %v1701 = vld [vmem:[#allocation2 + $0x48] sm:$0xff]
        %v1702 = vld [vmem:[#allocation2 + $0x50] sm:$0xff]
        %v1703 = vld [vmem:[#allocation2 + $0x58] sm:$0xff]
        %v1704 = vld [vmem:[#allocation2 + $0x60] sm:$0xff]
        %v1705 = vld [vmem:[#allocation2 + $0x68] sm:$0xff]
        %v1706 = vld [vmem:[#allocation2 + $0x70] sm:$0xff]
        %v1707 = vld [vmem:[#allocation2 + $0x78] sm:$0xff]
        %v1708 = vld [vmem:[#allocation2 + $0x80] sm:$0xff]
        %v1709 = vld [vmem:[#allocation2 + $0x88] sm:$0xff]
        %v1710 = vld [vmem:[#allocation2 + $0x90] sm:$0xff]
        %v1711 = vld [vmem:[#allocation2 + $0x98] sm:$0xff]
        %v1712 = vld [vmem:[#allocation2 + $0xa0] sm:$0xff]
        %v1713 = vld [vmem:[#allocation2 + $0xa8] sm:$0xff]
        %v1714 = vld [vmem:[#allocation2 + $0xb0] sm:$0xff]
        %v1715 = vld [vmem:[#allocation2 + $0xb8] sm:$0xff]
        %v1716 = vld [vmem:[#allocation2 + $0xc0] sm:$0xff]
        %v1717 = vld [vmem:[#allocation2 + $0xc8] sm:$0xff]
        %v1718 = vld [vmem:[#allocation2 + $0xd0] sm:$0xff]
        %v1719 = vld [vmem:[#allocation2 + $0xd8] sm:$0xff]
        %v1720 = vld [vmem:[#allocation2 + $0xe0] sm:$0xff]
        %v1721 = vld [vmem:[#allocation2 + $0xe8] sm:$0xff]
        %v1722 = vld [vmem:[#allocation2 + $0xf0] sm:$0xff]
        %v1723 = vld [vmem:[#allocation2 + $0xf8] sm:$0xff]
        %v1724 = vld [vmem:[#allocation2 + $0x100] sm:$0xff]
        %v1725 = vld [vmem:[#allocation2 + $0x108] sm:$0xff]
        %v1726 = vld [vmem:[#allocation2 + $0x110] sm:$0xff]
        %v1727 = vld [vmem:[#allocation2 + $0x118] sm:$0xff]
        %v1728 = vld [vmem:[%s222 + $0x14] sm:$0xff]
        %v1729 = vld [vmem:[%s222 + $0x1c] sm:$0xff]
        %v1730 = vld [vmem:[%s222 + $0x24] sm:$0xff]
        %v1731 = vld [vmem:[%s222 + $0x2c] sm:$0xff]
        %v1732 = vld [vmem:[%s222 + $0x34] sm:$0xff]
        %v1733 = vld [vmem:[%s222 + $0x3c] sm:$0xff]
        %v1734 = vld [vmem:[%s222 + $0x44] sm:$0xff]
        %v1735 = vld [vmem:[%s222 + $0x4c] sm:$0xff]
        %v1736 = vld [vmem:[%s222 + $0x54] sm:$0xff]
        %v1737 = vld [vmem:[%s222 + $0x5c] sm:$0xff]
        %v1738 = vld [vmem:[%s222 + $0x64] sm:$0xff]
        %v1739 = vld [vmem:[%s222 + $0x6c] sm:$0xff]
        %v1740 = vld [vmem:[%s222 + $0x74] sm:$0xff]
        %v1741 = vld [vmem:[%s222 + $0x7c] sm:$0xff]
        %v1742 = vld [vmem:[%s222 + $0x84] sm:$0xff]
        %v1743 = vld [vmem:[%s222 + $0x8c] sm:$0xff]
        %v1744 = vld [vmem:[%s222 + $0x94] sm:$0xff]
        %v1745 = vld [vmem:[%s222 + $0x9c] sm:$0xff]
        %v1746 = vld [vmem:[%s222 + $0xa4] sm:$0xff]
        %v1747 = vld [vmem:[%s222 + $0xac] sm:$0xff]
        %v1748 = vld [vmem:[%s222 + $0xb4] sm:$0xff]
        %v1749 = vld [vmem:[%s222 + $0xbc] sm:$0xff]
        %v1750 = vld [vmem:[%s222 + $0xc4] sm:$0xff]
        %v1751 = vld [vmem:[%s222 + $0xcc] sm:$0xff]
        %v1752 = vld [vmem:[%s222 + $0xd4] sm:$0xff]
        %v1753 = vld [vmem:[%s222 + $0xdc] sm:$0xff]
        %v1754 = vld [vmem:[%s222 + $0xe4] sm:$0xff]
        %v1755 = vld [vmem:[%s222 + $0xec] sm:$0xff]
        %v1756 = vld [vmem:[%s222 + $0xf4] sm:$0xff]
        %v1757 = vld [vmem:[%s222 + $0xfc] sm:$0xff]
        %v1758 = vld [vmem:[%s222 + $0x104] sm:$0xff]
        %v1759 = vld [vmem:[%s222 + $0x10c] sm:$0xff]
        %v1760 = vld [vmem:[%s222 + $0x114] sm:$0xff]
        %v1761 = vld [vmem:[%s222 + $0x11c] sm:$0xff]
        %v1762 = vld [vmem:[%s222 + $0x124] sm:$0xff]
        %v1763 = vld [vmem:[%s222 + $0x12c] sm:$0xff]
        %s1764 = scalar_lea.vmem %s1, 640
        %v1765 = vld [vmem:[%s1764] sm:$0xff]
        %v1766 = vld [vmem:[%s1764 + $0x8] sm:$0xff]
        %v1767 = vld [vmem:[%s1764 + $0x10] sm:$0xff]
        %v1768 = vld [vmem:[%s1764 + $0x18] sm:$0xff]
        %v1769 = vld [vmem:[%s1764 + $0x20] sm:$0xff]
        %v1770 = vld [vmem:[%s1764 + $0x28] sm:$0xff]
        %v1771 = vld [vmem:[%s1764 + $0x30] sm:$0xff]
        %v1772 = vld [vmem:[%s1764 + $0x38] sm:$0xff]
        %v1773 = vld [vmem:[%s1764 + $0x40] sm:$0xff]
        %v1774 = vld [vmem:[%s1764 + $0x48] sm:$0xff]
        %v1775 = vld [vmem:[%s1764 + $0x50] sm:$0xff]
        %v1776 = vld [vmem:[%s1764 + $0x58] sm:$0xff]
        %v1777 = vld [vmem:[%s1764 + $0x60] sm:$0xff]
        %v1778 = vld [vmem:[%s1764 + $0x68] sm:$0xff]
        %v1779 = vld [vmem:[%s1764 + $0x70] sm:$0xff]
        %v1780 = vld [vmem:[%s1764 + $0x78] sm:$0xff]
        %1781 = vmatpush.msra.mxu0 %v1780
        %1782 = vmatpush.msra.mxu0 %v1779
        %1783 = vmatpush.msra.mxu0 %v1778
        %1784 = vmatpush.msra.mxu0 %v1777
        %1785 = vmatpush.msra.mxu0 %v1776
        %1786 = vmatpush.msra.mxu0 %v1775
        %1787 = vmatpush.msra.mxu0 %v1774
        %1788 = vmatpush.msra.mxu0 %v1773
        %1789 = vmatpush.msra.mxu0 %v1772
        %1790 = vmatpush.msra.mxu0 %v1771
        %1791 = vmatpush.msra.mxu0 %v1770
        %1792 = vmatpush.msra.mxu0 %v1769
        %1793 = vmatpush.msra.mxu0 %v1768
        %1794 = vmatpush.msra.mxu0 %v1767
        %1795 = vmatpush.msra.mxu0 %v1766
        %1796 = vmatpush.msra.mxu0 %v1765
        %1797 = vmatmul.f32.gmra.mxu0 %v1728
        %v1798 = vpop.f32.mrf.mxu0
        %v1799 = vadd.f32 0.0, %v1798
        %1800 = vmatmul.f32.gmra.mxu0 %v1729
        %v1801 = vpop.f32.mrf.mxu0
        %v1802 = vadd.f32 0.0, %v1801
        %1803 = vmatmul.f32.gmra.mxu0 %v1730
        %v1804 = vpop.f32.mrf.mxu0
        %v1805 = vadd.f32 0.0, %v1804
        %1806 = vmatmul.f32.gmra.mxu0 %v1731
        %v1807 = vpop.f32.mrf.mxu0
        %v1808 = vadd.f32 0.0, %v1807
        %1809 = vmatmul.f32.gmra.mxu0 %v1732
        %v1810 = vpop.f32.mrf.mxu0
        %v1811 = vadd.f32 0.0, %v1810
        %1812 = vmatmul.f32.gmra.mxu0 %v1733
        %v1813 = vpop.f32.mrf.mxu0
        %v1814 = vadd.f32 0.0, %v1813
        %1815 = vmatmul.f32.gmra.mxu0 %v1734
        %v1816 = vpop.f32.mrf.mxu0
        %v1817 = vadd.f32 0.0, %v1816
        %1818 = vmatmul.f32.gmra.mxu0 %v1735
        %v1819 = vpop.f32.mrf.mxu0
        %v1820 = vadd.f32 0.0, %v1819
        %1821 = vmatmul.f32.gmra.mxu0 %v1736
        %v1822 = vpop.f32.mrf.mxu0
        %v1823 = vadd.f32 0.0, %v1822
        %1824 = vmatmul.f32.gmra.mxu0 %v1737
        %v1825 = vpop.f32.mrf.mxu0
        %v1826 = vadd.f32 0.0, %v1825
        %1827 = vmatmul.f32.gmra.mxu0 %v1738
        %v1828 = vpop.f32.mrf.mxu0
        %v1829 = vadd.f32 0.0, %v1828
        %1830 = vmatmul.f32.gmra.mxu0 %v1739
        %v1831 = vpop.f32.mrf.mxu0
        %v1832 = vadd.f32 0.0, %v1831
        %1833 = vmatmul.f32.gmra.mxu0 %v1740
        %v1834 = vpop.f32.mrf.mxu0
        %v1835 = vadd.f32 0.0, %v1834
        %1836 = vmatmul.f32.gmra.mxu0 %v1741
        %v1837 = vpop.f32.mrf.mxu0
        %v1838 = vadd.f32 0.0, %v1837
        %1839 = vmatmul.f32.gmra.mxu0 %v1742
        %v1840 = vpop.f32.mrf.mxu0
        %v1841 = vadd.f32 0.0, %v1840
        %1842 = vmatmul.f32.gmra.mxu0 %v1743
        %v1843 = vpop.f32.mrf.mxu0
        %v1844 = vadd.f32 0.0, %v1843
        %1845 = vmatmul.f32.gmra.mxu0 %v1744
        %v1846 = vpop.f32.mrf.mxu0
        %v1847 = vadd.f32 0.0, %v1846
        %1848 = vmatmul.f32.gmra.mxu0 %v1745
        %v1849 = vpop.f32.mrf.mxu0
        %v1850 = vadd.f32 0.0, %v1849
        %1851 = vmatmul.f32.gmra.mxu0 %v1746
        %v1852 = vpop.f32.mrf.mxu0
        %v1853 = vadd.f32 0.0, %v1852
        %1854 = vmatmul.f32.gmra.mxu0 %v1747
        %v1855 = vpop.f32.mrf.mxu0
        %v1856 = vadd.f32 0.0, %v1855
        %1857 = vmatmul.f32.gmra.mxu0 %v1748
        %v1858 = vpop.f32.mrf.mxu0
        %v1859 = vadd.f32 0.0, %v1858
        %1860 = vmatmul.f32.gmra.mxu0 %v1749
        %v1861 = vpop.f32.mrf.mxu0
        %v1862 = vadd.f32 0.0, %v1861
        %1863 = vmatmul.f32.gmra.mxu0 %v1750
        %v1864 = vpop.f32.mrf.mxu0
        %v1865 = vadd.f32 0.0, %v1864
        %1866 = vmatmul.f32.gmra.mxu0 %v1751
        %v1867 = vpop.f32.mrf.mxu0
        %v1868 = vadd.f32 0.0, %v1867
        %1869 = vmatmul.f32.gmra.mxu0 %v1752
        %v1870 = vpop.f32.mrf.mxu0
        %v1871 = vadd.f32 0.0, %v1870
        %1872 = vmatmul.f32.gmra.mxu0 %v1753
        %v1873 = vpop.f32.mrf.mxu0
        %v1874 = vadd.f32 0.0, %v1873
        %1875 = vmatmul.f32.gmra.mxu0 %v1754
        %v1876 = vpop.f32.mrf.mxu0
        %v1877 = vadd.f32 0.0, %v1876
        %1878 = vmatmul.f32.gmra.mxu0 %v1755
        %v1879 = vpop.f32.mrf.mxu0
        %v1880 = vadd.f32 0.0, %v1879
        %1881 = vmatmul.f32.gmra.mxu0 %v1756
        %v1882 = vpop.f32.mrf.mxu0
        %v1883 = vadd.f32 0.0, %v1882
        %1884 = vmatmul.f32.gmra.mxu0 %v1757
        %v1885 = vpop.f32.mrf.mxu0
        %v1886 = vadd.f32 0.0, %v1885
        %1887 = vmatmul.f32.gmra.mxu0 %v1758
        %v1888 = vpop.f32.mrf.mxu0
        %v1889 = vadd.f32 0.0, %v1888
        %1890 = vmatmul.f32.gmra.mxu0 %v1759
        %v1891 = vpop.f32.mrf.mxu0
        %v1892 = vadd.f32 0.0, %v1891
        %1893 = vmatmul.f32.gmra.mxu0 %v1760
        %v1894 = vpop.f32.mrf.mxu0
        %v1895 = vadd.f32 0.0, %v1894
        %1896 = vmatmul.f32.gmra.mxu0 %v1761
        %v1897 = vpop.f32.mrf.mxu0
        %v1898 = vadd.f32 0.0, %v1897
        %1899 = vmatmul.f32.gmra.mxu0 %v1762
        %v1900 = vpop.f32.mrf.mxu0
        %v1901 = vadd.f32 0.0, %v1900
        %1902 = vmatmul.f32.gmra.mxu0 %v1763
        %v1903 = vpop.f32.mrf.mxu0
        %v1904 = vadd.f32 0.0, %v1903
        %1905 = vdwg.mxu0
        %v1906 = vadd.f32 %v1692, %v1799
        %v1907 = vadd.f32 %v1693, %v1802
        %v1908 = vadd.f32 %v1694, %v1805
        %v1909 = vadd.f32 %v1695, %v1808
        %v1910 = vadd.f32 %v1696, %v1811
        %v1911 = vadd.f32 %v1697, %v1814
        %v1912 = vadd.f32 %v1698, %v1817
        %v1913 = vadd.f32 %v1699, %v1820
        %v1914 = vadd.f32 %v1700, %v1823
        %v1915 = vadd.f32 %v1701, %v1826
        %v1916 = vadd.f32 %v1702, %v1829
        %v1917 = vadd.f32 %v1703, %v1832
        %v1918 = vadd.f32 %v1704, %v1835
        %v1919 = vadd.f32 %v1705, %v1838
        %v1920 = vadd.f32 %v1706, %v1841
        %v1921 = vadd.f32 %v1707, %v1844
        %v1922 = vadd.f32 %v1708, %v1847
        %v1923 = vadd.f32 %v1709, %v1850
        %v1924 = vadd.f32 %v1710, %v1853
        %v1925 = vadd.f32 %v1711, %v1856
        %v1926 = vadd.f32 %v1712, %v1859
        %v1927 = vadd.f32 %v1713, %v1862
        %v1928 = vadd.f32 %v1714, %v1865
        %v1929 = vadd.f32 %v1715, %v1868
        %v1930 = vadd.f32 %v1716, %v1871
        %v1931 = vadd.f32 %v1717, %v1874
        %v1932 = vadd.f32 %v1718, %v1877
        %v1933 = vadd.f32 %v1719, %v1880
        %v1934 = vadd.f32 %v1720, %v1883
        %v1935 = vadd.f32 %v1721, %v1886
        %v1936 = vadd.f32 %v1722, %v1889
        %v1937 = vadd.f32 %v1723, %v1892
        %v1938 = vadd.f32 %v1724, %v1895
        %v1939 = vadd.f32 %v1725, %v1898
        %v1940 = vadd.f32 %v1726, %v1901
        %v1941 = vadd.f32 %v1727, %v1904
        %1942 = vst [vmem:[#allocation2] sm:$0xff] %v1906
        %1943 = vst [vmem:[#allocation2 + $0x8] sm:$0xff] %v1907
        %1944 = vst [vmem:[#allocation2 + $0x10] sm:$0xff] %v1908
        %1945 = vst [vmem:[#allocation2 + $0x18] sm:$0xff] %v1909
        %1946 = vst [vmem:[#allocation2 + $0x20] sm:$0xff] %v1910
        %1947 = vst [vmem:[#allocation2 + $0x28] sm:$0xff] %v1911
        %1948 = vst [vmem:[#allocation2 + $0x30] sm:$0xff] %v1912
        %1949 = vst [vmem:[#allocation2 + $0x38] sm:$0xff] %v1913
        %1950 = vst [vmem:[#allocation2 + $0x40] sm:$0xff] %v1914
        %1951 = vst [vmem:[#allocation2 + $0x48] sm:$0xff] %v1915
        %1952 = vst [vmem:[#allocation2 + $0x50] sm:$0xff] %v1916
        %1953 = vst [vmem:[#allocation2 + $0x58] sm:$0xff] %v1917
        %1954 = vst [vmem:[#allocation2 + $0x60] sm:$0xff] %v1918
        %1955 = vst [vmem:[#allocation2 + $0x68] sm:$0xff] %v1919
        %1956 = vst [vmem:[#allocation2 + $0x70] sm:$0xff] %v1920
        %1957 = vst [vmem:[#allocation2 + $0x78] sm:$0xff] %v1921
        %1958 = vst [vmem:[#allocation2 + $0x80] sm:$0xff] %v1922
        %1959 = vst [vmem:[#allocation2 + $0x88] sm:$0xff] %v1923
        %1960 = vst [vmem:[#allocation2 + $0x90] sm:$0xff] %v1924
        %1961 = vst [vmem:[#allocation2 + $0x98] sm:$0xff] %v1925
        %1962 = vst [vmem:[#allocation2 + $0xa0] sm:$0xff] %v1926
        %1963 = vst [vmem:[#allocation2 + $0xa8] sm:$0xff] %v1927
        %1964 = vst [vmem:[#allocation2 + $0xb0] sm:$0xff] %v1928
        %1965 = vst [vmem:[#allocation2 + $0xb8] sm:$0xff] %v1929
        %1966 = vst [vmem:[#allocation2 + $0xc0] sm:$0xff] %v1930
        %1967 = vst [vmem:[#allocation2 + $0xc8] sm:$0xff] %v1931
        %1968 = vst [vmem:[#allocation2 + $0xd0] sm:$0xff] %v1932
        %1969 = vst [vmem:[#allocation2 + $0xd8] sm:$0xff] %v1933
        %1970 = vst [vmem:[#allocation2 + $0xe0] sm:$0xff] %v1934
        %1971 = vst [vmem:[#allocation2 + $0xe8] sm:$0xff] %v1935
        %1972 = vst [vmem:[#allocation2 + $0xf0] sm:$0xff] %v1936
        %1973 = vst [vmem:[#allocation2 + $0xf8] sm:$0xff] %v1937
        %1974 = vst [vmem:[#allocation2 + $0x100] sm:$0xff] %v1938
        %1975 = vst [vmem:[#allocation2 + $0x108] sm:$0xff] %v1939
        %1976 = vst [vmem:[#allocation2 + $0x110] sm:$0xff] %v1940
        %1977 = vst [vmem:[#allocation2 + $0x118] sm:$0xff] %v1941
        %v1978 = vld [vmem:[#allocation2] sm:$0xff]
        %v1979 = vld [vmem:[#allocation2 + $0x8] sm:$0xff]
        %v1980 = vld [vmem:[#allocation2 + $0x10] sm:$0xff]
        %v1981 = vld [vmem:[#allocation2 + $0x18] sm:$0xff]
        %v1982 = vld [vmem:[#allocation2 + $0x20] sm:$0xff]
        %v1983 = vld [vmem:[#allocation2 + $0x28] sm:$0xff]
        %v1984 = vld [vmem:[#allocation2 + $0x30] sm:$0xff]
        %v1985 = vld [vmem:[#allocation2 + $0x38] sm:$0xff]
        %v1986 = vld [vmem:[#allocation2 + $0x40] sm:$0xff]
        %v1987 = vld [vmem:[#allocation2 + $0x48] sm:$0xff]
        %v1988 = vld [vmem:[#allocation2 + $0x50] sm:$0xff]
        %v1989 = vld [vmem:[#allocation2 + $0x58] sm:$0xff]
        %v1990 = vld [vmem:[#allocation2 + $0x60] sm:$0xff]
        %v1991 = vld [vmem:[#allocation2 + $0x68] sm:$0xff]
        %v1992 = vld [vmem:[#allocation2 + $0x70] sm:$0xff]
        %v1993 = vld [vmem:[#allocation2 + $0x78] sm:$0xff]
        %v1994 = vld [vmem:[#allocation2 + $0x80] sm:$0xff]
        %v1995 = vld [vmem:[#allocation2 + $0x88] sm:$0xff]
        %v1996 = vld [vmem:[#allocation2 + $0x90] sm:$0xff]
        %v1997 = vld [vmem:[#allocation2 + $0x98] sm:$0xff]
        %v1998 = vld [vmem:[#allocation2 + $0xa0] sm:$0xff]
        %v1999 = vld [vmem:[#allocation2 + $0xa8] sm:$0xff]
        %v2000 = vld [vmem:[#allocation2 + $0xb0] sm:$0xff]
        %v2001 = vld [vmem:[#allocation2 + $0xb8] sm:$0xff]
        %v2002 = vld [vmem:[#allocation2 + $0xc0] sm:$0xff]
        %v2003 = vld [vmem:[#allocation2 + $0xc8] sm:$0xff]
        %v2004 = vld [vmem:[#allocation2 + $0xd0] sm:$0xff]
        %v2005 = vld [vmem:[#allocation2 + $0xd8] sm:$0xff]
        %v2006 = vld [vmem:[#allocation2 + $0xe0] sm:$0xff]
        %v2007 = vld [vmem:[#allocation2 + $0xe8] sm:$0xff]
        %v2008 = vld [vmem:[#allocation2 + $0xf0] sm:$0xff]
        %v2009 = vld [vmem:[#allocation2 + $0xf8] sm:$0xff]
        %v2010 = vld [vmem:[#allocation2 + $0x100] sm:$0xff]
        %v2011 = vld [vmem:[#allocation2 + $0x108] sm:$0xff]
        %v2012 = vld [vmem:[#allocation2 + $0x110] sm:$0xff]
        %v2013 = vld [vmem:[#allocation2 + $0x118] sm:$0xff]
        %v2014 = vld [vmem:[%s222 + $0x24] sm:$0xff]
        %v2015 = vld [vmem:[%s222 + $0x2c] sm:$0xff]
        %v2016 = vld [vmem:[%s222 + $0x34] sm:$0xff]
        %v2017 = vld [vmem:[%s222 + $0x3c] sm:$0xff]
        %v2018 = vld [vmem:[%s222 + $0x44] sm:$0xff]
        %v2019 = vld [vmem:[%s222 + $0x4c] sm:$0xff]
        %v2020 = vld [vmem:[%s222 + $0x54] sm:$0xff]
        %v2021 = vld [vmem:[%s222 + $0x5c] sm:$0xff]
        %v2022 = vld [vmem:[%s222 + $0x64] sm:$0xff]
        %v2023 = vld [vmem:[%s222 + $0x6c] sm:$0xff]
        %v2024 = vld [vmem:[%s222 + $0x74] sm:$0xff]
        %v2025 = vld [vmem:[%s222 + $0x7c] sm:$0xff]
        %v2026 = vld [vmem:[%s222 + $0x84] sm:$0xff]
        %v2027 = vld [vmem:[%s222 + $0x8c] sm:$0xff]
        %v2028 = vld [vmem:[%s222 + $0x94] sm:$0xff]
        %v2029 = vld [vmem:[%s222 + $0x9c] sm:$0xff]
        %v2030 = vld [vmem:[%s222 + $0xa4] sm:$0xff]
        %v2031 = vld [vmem:[%s222 + $0xac] sm:$0xff]
        %v2032 = vld [vmem:[%s222 + $0xb4] sm:$0xff]
        %v2033 = vld [vmem:[%s222 + $0xbc] sm:$0xff]
        %v2034 = vld [vmem:[%s222 + $0xc4] sm:$0xff]
        %v2035 = vld [vmem:[%s222 + $0xcc] sm:$0xff]
        %v2036 = vld [vmem:[%s222 + $0xd4] sm:$0xff]
        %v2037 = vld [vmem:[%s222 + $0xdc] sm:$0xff]
        %v2038 = vld [vmem:[%s222 + $0xe4] sm:$0xff]
        %v2039 = vld [vmem:[%s222 + $0xec] sm:$0xff]
        %v2040 = vld [vmem:[%s222 + $0xf4] sm:$0xff]
        %v2041 = vld [vmem:[%s222 + $0xfc] sm:$0xff]
        %v2042 = vld [vmem:[%s222 + $0x104] sm:$0xff]
        %v2043 = vld [vmem:[%s222 + $0x10c] sm:$0xff]
        %v2044 = vld [vmem:[%s222 + $0x114] sm:$0xff]
        %v2045 = vld [vmem:[%s222 + $0x11c] sm:$0xff]
        %v2046 = vld [vmem:[%s222 + $0x124] sm:$0xff]
        %v2047 = vld [vmem:[%s222 + $0x12c] sm:$0xff]
        %v2048 = vld [vmem:[%s222 + $0x134] sm:$0xff]
        %v2049 = vld [vmem:[%s222 + $0x13c] sm:$0xff]
        %s2050 = scalar_lea.vmem %s1, 768
        %v2051 = vld [vmem:[%s2050] sm:$0xff]
        %v2052 = vld [vmem:[%s2050 + $0x8] sm:$0xff]
        %v2053 = vld [vmem:[%s2050 + $0x10] sm:$0xff]
        %v2054 = vld [vmem:[%s2050 + $0x18] sm:$0xff]
        %v2055 = vld [vmem:[%s2050 + $0x20] sm:$0xff]
        %v2056 = vld [vmem:[%s2050 + $0x28] sm:$0xff]
        %v2057 = vld [vmem:[%s2050 + $0x30] sm:$0xff]
        %v2058 = vld [vmem:[%s2050 + $0x38] sm:$0xff]
        %v2059 = vld [vmem:[%s2050 + $0x40] sm:$0xff]
        %v2060 = vld [vmem:[%s2050 + $0x48] sm:$0xff]
        %v2061 = vld [vmem:[%s2050 + $0x50] sm:$0xff]
        %v2062 = vld [vmem:[%s2050 + $0x58] sm:$0xff]
        %v2063 = vld [vmem:[%s2050 + $0x60] sm:$0xff]
        %v2064 = vld [vmem:[%s2050 + $0x68] sm:$0xff]
        %v2065 = vld [vmem:[%s2050 + $0x70] sm:$0xff]
        %v2066 = vld [vmem:[%s2050 + $0x78] sm:$0xff]
        %2067 = vmatpush.msra.mxu0 %v2066
        %2068 = vmatpush.msra.mxu0 %v2065
        %2069 = vmatpush.msra.mxu0 %v2064
        %2070 = vmatpush.msra.mxu0 %v2063
        %2071 = vmatpush.msra.mxu0 %v2062
        %2072 = vmatpush.msra.mxu0 %v2061
        %2073 = vmatpush.msra.mxu0 %v2060
        %2074 = vmatpush.msra.mxu0 %v2059
        %2075 = vmatpush.msra.mxu0 %v2058
        %2076 = vmatpush.msra.mxu0 %v2057
        %2077 = vmatpush.msra.mxu0 %v2056
        %2078 = vmatpush.msra.mxu0 %v2055
        %2079 = vmatpush.msra.mxu0 %v2054
        %2080 = vmatpush.msra.mxu0 %v2053
        %2081 = vmatpush.msra.mxu0 %v2052
        %2082 = vmatpush.msra.mxu0 %v2051
        %2083 = vmatmul.f32.gmra.mxu0 %v2014
        %v2084 = vpop.f32.mrf.mxu0
        %v2085 = vadd.f32 0.0, %v2084
        %2086 = vmatmul.f32.gmra.mxu0 %v2015
        %v2087 = vpop.f32.mrf.mxu0
        %v2088 = vadd.f32 0.0, %v2087
        %2089 = vmatmul.f32.gmra.mxu0 %v2016
        %v2090 = vpop.f32.mrf.mxu0
        %v2091 = vadd.f32 0.0, %v2090
        %2092 = vmatmul.f32.gmra.mxu0 %v2017
        %v2093 = vpop.f32.mrf.mxu0
        %v2094 = vadd.f32 0.0, %v2093
        %2095 = vmatmul.f32.gmra.mxu0 %v2018
        %v2096 = vpop.f32.mrf.mxu0
        %v2097 = vadd.f32 0.0, %v2096
        %2098 = vmatmul.f32.gmra.mxu0 %v2019
        %v2099 = vpop.f32.mrf.mxu0
        %v2100 = vadd.f32 0.0, %v2099
        %2101 = vmatmul.f32.gmra.mxu0 %v2020
        %v2102 = vpop.f32.mrf.mxu0
        %v2103 = vadd.f32 0.0, %v2102
        %2104 = vmatmul.f32.gmra.mxu0 %v2021
        %v2105 = vpop.f32.mrf.mxu0
        %v2106 = vadd.f32 0.0, %v2105
        %2107 = vmatmul.f32.gmra.mxu0 %v2022
        %v2108 = vpop.f32.mrf.mxu0
        %v2109 = vadd.f32 0.0, %v2108
        %2110 = vmatmul.f32.gmra.mxu0 %v2023
        %v2111 = vpop.f32.mrf.mxu0
        %v2112 = vadd.f32 0.0, %v2111
        %2113 = vmatmul.f32.gmra.mxu0 %v2024
        %v2114 = vpop.f32.mrf.mxu0
        %v2115 = vadd.f32 0.0, %v2114
        %2116 = vmatmul.f32.gmra.mxu0 %v2025
        %v2117 = vpop.f32.mrf.mxu0
        %v2118 = vadd.f32 0.0, %v2117
        %2119 = vmatmul.f32.gmra.mxu0 %v2026
        %v2120 = vpop.f32.mrf.mxu0
        %v2121 = vadd.f32 0.0, %v2120
        %2122 = vmatmul.f32.gmra.mxu0 %v2027
        %v2123 = vpop.f32.mrf.mxu0
        %v2124 = vadd.f32 0.0, %v2123
        %2125 = vmatmul.f32.gmra.mxu0 %v2028
        %v2126 = vpop.f32.mrf.mxu0
        %v2127 = vadd.f32 0.0, %v2126
        %2128 = vmatmul.f32.gmra.mxu0 %v2029
        %v2129 = vpop.f32.mrf.mxu0
        %v2130 = vadd.f32 0.0, %v2129
        %2131 = vmatmul.f32.gmra.mxu0 %v2030
        %v2132 = vpop.f32.mrf.mxu0
        %v2133 = vadd.f32 0.0, %v2132
        %2134 = vmatmul.f32.gmra.mxu0 %v2031
        %v2135 = vpop.f32.mrf.mxu0
        %v2136 = vadd.f32 0.0, %v2135
        %2137 = vmatmul.f32.gmra.mxu0 %v2032
        %v2138 = vpop.f32.mrf.mxu0
        %v2139 = vadd.f32 0.0, %v2138
        %2140 = vmatmul.f32.gmra.mxu0 %v2033
        %v2141 = vpop.f32.mrf.mxu0
        %v2142 = vadd.f32 0.0, %v2141
        %2143 = vmatmul.f32.gmra.mxu0 %v2034
        %v2144 = vpop.f32.mrf.mxu0
        %v2145 = vadd.f32 0.0, %v2144
        %2146 = vmatmul.f32.gmra.mxu0 %v2035
        %v2147 = vpop.f32.mrf.mxu0
        %v2148 = vadd.f32 0.0, %v2147
        %2149 = vmatmul.f32.gmra.mxu0 %v2036
        %v2150 = vpop.f32.mrf.mxu0
        %v2151 = vadd.f32 0.0, %v2150
        %2152 = vmatmul.f32.gmra.mxu0 %v2037
        %v2153 = vpop.f32.mrf.mxu0
        %v2154 = vadd.f32 0.0, %v2153
        %2155 = vmatmul.f32.gmra.mxu0 %v2038
        %v2156 = vpop.f32.mrf.mxu0
        %v2157 = vadd.f32 0.0, %v2156
        %2158 = vmatmul.f32.gmra.mxu0 %v2039
        %v2159 = vpop.f32.mrf.mxu0
        %v2160 = vadd.f32 0.0, %v2159
        %2161 = vmatmul.f32.gmra.mxu0 %v2040
        %v2162 = vpop.f32.mrf.mxu0
        %v2163 = vadd.f32 0.0, %v2162
        %2164 = vmatmul.f32.gmra.mxu0 %v2041
        %v2165 = vpop.f32.mrf.mxu0
        %v2166 = vadd.f32 0.0, %v2165
        %2167 = vmatmul.f32.gmra.mxu0 %v2042
        %v2168 = vpop.f32.mrf.mxu0
        %v2169 = vadd.f32 0.0, %v2168
        %2170 = vmatmul.f32.gmra.mxu0 %v2043
        %v2171 = vpop.f32.mrf.mxu0
        %v2172 = vadd.f32 0.0, %v2171
        %2173 = vmatmul.f32.gmra.mxu0 %v2044
        %v2174 = vpop.f32.mrf.mxu0
        %v2175 = vadd.f32 0.0, %v2174
        %2176 = vmatmul.f32.gmra.mxu0 %v2045
        %v2177 = vpop.f32.mrf.mxu0
        %v2178 = vadd.f32 0.0, %v2177
        %2179 = vmatmul.f32.gmra.mxu0 %v2046
        %v2180 = vpop.f32.mrf.mxu0
        %v2181 = vadd.f32 0.0, %v2180
        %2182 = vmatmul.f32.gmra.mxu0 %v2047
        %v2183 = vpop.f32.mrf.mxu0
        %v2184 = vadd.f32 0.0, %v2183
        %2185 = vmatmul.f32.gmra.mxu0 %v2048
        %v2186 = vpop.f32.mrf.mxu0
        %v2187 = vadd.f32 0.0, %v2186
        %2188 = vmatmul.f32.gmra.mxu0 %v2049
        %v2189 = vpop.f32.mrf.mxu0
        %v2190 = vadd.f32 0.0, %v2189
        %2191 = vdwg.mxu0
        %v2192 = vadd.f32 %v1978, %v2085
        %v2193 = vadd.f32 %v1979, %v2088
        %v2194 = vadd.f32 %v1980, %v2091
        %v2195 = vadd.f32 %v1981, %v2094
        %v2196 = vadd.f32 %v1982, %v2097
        %v2197 = vadd.f32 %v1983, %v2100
        %v2198 = vadd.f32 %v1984, %v2103
        %v2199 = vadd.f32 %v1985, %v2106
        %v2200 = vadd.f32 %v1986, %v2109
        %v2201 = vadd.f32 %v1987, %v2112
        %v2202 = vadd.f32 %v1988, %v2115
        %v2203 = vadd.f32 %v1989, %v2118
        %v2204 = vadd.f32 %v1990, %v2121
        %v2205 = vadd.f32 %v1991, %v2124
        %v2206 = vadd.f32 %v1992, %v2127
        %v2207 = vadd.f32 %v1993, %v2130
        %v2208 = vadd.f32 %v1994, %v2133
        %v2209 = vadd.f32 %v1995, %v2136
        %v2210 = vadd.f32 %v1996, %v2139
        %v2211 = vadd.f32 %v1997, %v2142
        %v2212 = vadd.f32 %v1998, %v2145
        %v2213 = vadd.f32 %v1999, %v2148
        %v2214 = vadd.f32 %v2000, %v2151
        %v2215 = vadd.f32 %v2001, %v2154
        %v2216 = vadd.f32 %v2002, %v2157
        %v2217 = vadd.f32 %v2003, %v2160
        %v2218 = vadd.f32 %v2004, %v2163
        %v2219 = vadd.f32 %v2005, %v2166
        %v2220 = vadd.f32 %v2006, %v2169
        %v2221 = vadd.f32 %v2007, %v2172
        %v2222 = vadd.f32 %v2008, %v2175
        %v2223 = vadd.f32 %v2009, %v2178
        %v2224 = vadd.f32 %v2010, %v2181
        %v2225 = vadd.f32 %v2011, %v2184
        %v2226 = vadd.f32 %v2012, %v2187
        %v2227 = vadd.f32 %v2013, %v2190
        %2228 = vst [vmem:[#allocation2] sm:$0xff] %v2192
        %2229 = vst [vmem:[#allocation2 + $0x8] sm:$0xff] %v2193
        %2230 = vst [vmem:[#allocation2 + $0x10] sm:$0xff] %v2194
        %2231 = vst [vmem:[#allocation2 + $0x18] sm:$0xff] %v2195
        %2232 = vst [vmem:[#allocation2 + $0x20] sm:$0xff] %v2196
        %2233 = vst [vmem:[#allocation2 + $0x28] sm:$0xff] %v2197
        %2234 = vst [vmem:[#allocation2 + $0x30] sm:$0xff] %v2198
        %2235 = vst [vmem:[#allocation2 + $0x38] sm:$0xff] %v2199
        %2236 = vst [vmem:[#allocation2 + $0x40] sm:$0xff] %v2200
        %2237 = vst [vmem:[#allocation2 + $0x48] sm:$0xff] %v2201
        %2238 = vst [vmem:[#allocation2 + $0x50] sm:$0xff] %v2202
        %2239 = vst [vmem:[#allocation2 + $0x58] sm:$0xff] %v2203
        %2240 = vst [vmem:[#allocation2 + $0x60] sm:$0xff] %v2204
        %2241 = vst [vmem:[#allocation2 + $0x68] sm:$0xff] %v2205
        %2242 = vst [vmem:[#allocation2 + $0x70] sm:$0xff] %v2206
        %2243 = vst [vmem:[#allocation2 + $0x78] sm:$0xff] %v2207
        %2244 = vst [vmem:[#allocation2 + $0x80] sm:$0xff] %v2208
        %2245 = vst [vmem:[#allocation2 + $0x88] sm:$0xff] %v2209
        %2246 = vst [vmem:[#allocation2 + $0x90] sm:$0xff] %v2210
        %2247 = vst [vmem:[#allocation2 + $0x98] sm:$0xff] %v2211
        %2248 = vst [vmem:[#allocation2 + $0xa0] sm:$0xff] %v2212
        %2249 = vst [vmem:[#allocation2 + $0xa8] sm:$0xff] %v2213
        %2250 = vst [vmem:[#allocation2 + $0xb0] sm:$0xff] %v2214
        %2251 = vst [vmem:[#allocation2 + $0xb8] sm:$0xff] %v2215
        %2252 = vst [vmem:[#allocation2 + $0xc0] sm:$0xff] %v2216
        %2253 = vst [vmem:[#allocation2 + $0xc8] sm:$0xff] %v2217
        %2254 = vst [vmem:[#allocation2 + $0xd0] sm:$0xff] %v2218
        %2255 = vst [vmem:[#allocation2 + $0xd8] sm:$0xff] %v2219
        %2256 = vst [vmem:[#allocation2 + $0xe0] sm:$0xff] %v2220
        %2257 = vst [vmem:[#allocation2 + $0xe8] sm:$0xff] %v2221
        %2258 = vst [vmem:[#allocation2 + $0xf0] sm:$0xff] %v2222
        %2259 = vst [vmem:[#allocation2 + $0xf8] sm:$0xff] %v2223
        %2260 = vst [vmem:[#allocation2 + $0x100] sm:$0xff] %v2224
        %2261 = vst [vmem:[#allocation2 + $0x108] sm:$0xff] %v2225
        %2262 = vst [vmem:[#allocation2 + $0x110] sm:$0xff] %v2226
        %2263 = vst [vmem:[#allocation2 + $0x118] sm:$0xff] %v2227
        %v2264 = vld [vmem:[#allocation2] sm:$0xff]
        %v2265 = vld [vmem:[#allocation2 + $0x8] sm:$0xff]
        %v2266 = vld [vmem:[#allocation2 + $0x10] sm:$0xff]
        %v2267 = vld [vmem:[#allocation2 + $0x18] sm:$0xff]
        %v2268 = vld [vmem:[#allocation2 + $0x20] sm:$0xff]
        %v2269 = vld [vmem:[#allocation2 + $0x28] sm:$0xff]
        %v2270 = vld [vmem:[#allocation2 + $0x30] sm:$0xff]
        %v2271 = vld [vmem:[#allocation2 + $0x38] sm:$0xff]
        %v2272 = vld [vmem:[#allocation2 + $0x40] sm:$0xff]
        %v2273 = vld [vmem:[#allocation2 + $0x48] sm:$0xff]
        %v2274 = vld [vmem:[#allocation2 + $0x50] sm:$0xff]
        %v2275 = vld [vmem:[#allocation2 + $0x58] sm:$0xff]
        %v2276 = vld [vmem:[#allocation2 + $0x60] sm:$0xff]
        %v2277 = vld [vmem:[#allocation2 + $0x68] sm:$0xff]
        %v2278 = vld [vmem:[#allocation2 + $0x70] sm:$0xff]
        %v2279 = vld [vmem:[#allocation2 + $0x78] sm:$0xff]
        %v2280 = vld [vmem:[#allocation2 + $0x80] sm:$0xff]
        %v2281 = vld [vmem:[#allocation2 + $0x88] sm:$0xff]
        %v2282 = vld [vmem:[#allocation2 + $0x90] sm:$0xff]
        %v2283 = vld [vmem:[#allocation2 + $0x98] sm:$0xff]
        %v2284 = vld [vmem:[#allocation2 + $0xa0] sm:$0xff]
        %v2285 = vld [vmem:[#allocation2 + $0xa8] sm:$0xff]
        %v2286 = vld [vmem:[#allocation2 + $0xb0] sm:$0xff]
        %v2287 = vld [vmem:[#allocation2 + $0xb8] sm:$0xff]
        %v2288 = vld [vmem:[#allocation2 + $0xc0] sm:$0xff]
        %v2289 = vld [vmem:[#allocation2 + $0xc8] sm:$0xff]
        %v2290 = vld [vmem:[#allocation2 + $0xd0] sm:$0xff]
        %v2291 = vld [vmem:[#allocation2 + $0xd8] sm:$0xff]
        %v2292 = vld [vmem:[#allocation2 + $0xe0] sm:$0xff]
        %v2293 = vld [vmem:[#allocation2 + $0xe8] sm:$0xff]
        %v2294 = vld [vmem:[#allocation2 + $0xf0] sm:$0xff]
        %v2295 = vld [vmem:[#allocation2 + $0xf8] sm:$0xff]
        %v2296 = vld [vmem:[#allocation2 + $0x100] sm:$0xff]
        %v2297 = vld [vmem:[#allocation2 + $0x108] sm:$0xff]
        %v2298 = vld [vmem:[#allocation2 + $0x110] sm:$0xff]
        %v2299 = vld [vmem:[#allocation2 + $0x118] sm:$0xff]
        %v2300 = vld [vmem:[%s222 + $0x25] sm:$0xff]
        %v2301 = vld [vmem:[%s222 + $0x2d] sm:$0xff]
        %v2302 = vld [vmem:[%s222 + $0x35] sm:$0xff]
        %v2303 = vld [vmem:[%s222 + $0x3d] sm:$0xff]
        %v2304 = vld [vmem:[%s222 + $0x45] sm:$0xff]
        %v2305 = vld [vmem:[%s222 + $0x4d] sm:$0xff]
        %v2306 = vld [vmem:[%s222 + $0x55] sm:$0xff]
        %v2307 = vld [vmem:[%s222 + $0x5d] sm:$0xff]
        %v2308 = vld [vmem:[%s222 + $0x65] sm:$0xff]
        %v2309 = vld [vmem:[%s222 + $0x6d] sm:$0xff]
        %v2310 = vld [vmem:[%s222 + $0x75] sm:$0xff]
        %v2311 = vld [vmem:[%s222 + $0x7d] sm:$0xff]
        %v2312 = vld [vmem:[%s222 + $0x85] sm:$0xff]
        %v2313 = vld [vmem:[%s222 + $0x8d] sm:$0xff]
        %v2314 = vld [vmem:[%s222 + $0x95] sm:$0xff]
        %v2315 = vld [vmem:[%s222 + $0x9d] sm:$0xff]
        %v2316 = vld [vmem:[%s222 + $0xa5] sm:$0xff]
        %v2317 = vld [vmem:[%s222 + $0xad] sm:$0xff]
        %v2318 = vld [vmem:[%s222 + $0xb5] sm:$0xff]
        %v2319 = vld [vmem:[%s222 + $0xbd] sm:$0xff]
        %v2320 = vld [vmem:[%s222 + $0xc5] sm:$0xff]
        %v2321 = vld [vmem:[%s222 + $0xcd] sm:$0xff]
        %v2322 = vld [vmem:[%s222 + $0xd5] sm:$0xff]
        %v2323 = vld [vmem:[%s222 + $0xdd] sm:$0xff]
        %v2324 = vld [vmem:[%s222 + $0xe5] sm:$0xff]
        %v2325 = vld [vmem:[%s222 + $0xed] sm:$0xff]
        %v2326 = vld [vmem:[%s222 + $0xf5] sm:$0xff]
        %v2327 = vld [vmem:[%s222 + $0xfd] sm:$0xff]
        %v2328 = vld [vmem:[%s222 + $0x105] sm:$0xff]
        %v2329 = vld [vmem:[%s222 + $0x10d] sm:$0xff]
        %v2330 = vld [vmem:[%s222 + $0x115] sm:$0xff]
        %v2331 = vld [vmem:[%s222 + $0x11d] sm:$0xff]
        %v2332 = vld [vmem:[%s222 + $0x125] sm:$0xff]
        %v2333 = vld [vmem:[%s222 + $0x12d] sm:$0xff]
        %v2334 = vld [vmem:[%s222 + $0x135] sm:$0xff]
        %v2335 = vld [vmem:[%s222 + $0x13d] sm:$0xff]
        %s2336 = scalar_lea.vmem %s1, 896
        %v2337 = vld [vmem:[%s2336] sm:$0xff]
        %v2338 = vld [vmem:[%s2336 + $0x8] sm:$0xff]
        %v2339 = vld [vmem:[%s2336 + $0x10] sm:$0xff]
        %v2340 = vld [vmem:[%s2336 + $0x18] sm:$0xff]
        %v2341 = vld [vmem:[%s2336 + $0x20] sm:$0xff]
        %v2342 = vld [vmem:[%s2336 + $0x28] sm:$0xff]
        %v2343 = vld [vmem:[%s2336 + $0x30] sm:$0xff]
        %v2344 = vld [vmem:[%s2336 + $0x38] sm:$0xff]
        %v2345 = vld [vmem:[%s2336 + $0x40] sm:$0xff]
        %v2346 = vld [vmem:[%s2336 + $0x48] sm:$0xff]
        %v2347 = vld [vmem:[%s2336 + $0x50] sm:$0xff]
        %v2348 = vld [vmem:[%s2336 + $0x58] sm:$0xff]
        %v2349 = vld [vmem:[%s2336 + $0x60] sm:$0xff]
        %v2350 = vld [vmem:[%s2336 + $0x68] sm:$0xff]
        %v2351 = vld [vmem:[%s2336 + $0x70] sm:$0xff]
        %v2352 = vld [vmem:[%s2336 + $0x78] sm:$0xff]
        %2353 = vmatpush.msra.mxu0 %v2352
        %2354 = vmatpush.msra.mxu0 %v2351
        %2355 = vmatpush.msra.mxu0 %v2350
        %2356 = vmatpush.msra.mxu0 %v2349
        %2357 = vmatpush.msra.mxu0 %v2348
        %2358 = vmatpush.msra.mxu0 %v2347
        %2359 = vmatpush.msra.mxu0 %v2346
        %2360 = vmatpush.msra.mxu0 %v2345
        %2361 = vmatpush.msra.mxu0 %v2344
        %2362 = vmatpush.msra.mxu0 %v2343
        %2363 = vmatpush.msra.mxu0 %v2342
        %2364 = vmatpush.msra.mxu0 %v2341
        %2365 = vmatpush.msra.mxu0 %v2340
        %2366 = vmatpush.msra.mxu0 %v2339
        %2367 = vmatpush.msra.mxu0 %v2338
        %2368 = vmatpush.msra.mxu0 %v2337
        %2369 = vmatmul.f32.gmra.mxu0 %v2300
        %v2370 = vpop.f32.mrf.mxu0
        %v2371 = vadd.f32 0.0, %v2370
        %2372 = vmatmul.f32.gmra.mxu0 %v2301
        %v2373 = vpop.f32.mrf.mxu0
        %v2374 = vadd.f32 0.0, %v2373
        %2375 = vmatmul.f32.gmra.mxu0 %v2302
        %v2376 = vpop.f32.mrf.mxu0
        %v2377 = vadd.f32 0.0, %v2376
        %2378 = vmatmul.f32.gmra.mxu0 %v2303
        %v2379 = vpop.f32.mrf.mxu0
        %v2380 = vadd.f32 0.0, %v2379
        %2381 = vmatmul.f32.gmra.mxu0 %v2304
        %v2382 = vpop.f32.mrf.mxu0
        %v2383 = vadd.f32 0.0, %v2382
        %2384 = vmatmul.f32.gmra.mxu0 %v2305
        %v2385 = vpop.f32.mrf.mxu0
        %v2386 = vadd.f32 0.0, %v2385
        %2387 = vmatmul.f32.gmra.mxu0 %v2306
        %v2388 = vpop.f32.mrf.mxu0
        %v2389 = vadd.f32 0.0, %v2388
        %2390 = vmatmul.f32.gmra.mxu0 %v2307
        %v2391 = vpop.f32.mrf.mxu0
        %v2392 = vadd.f32 0.0, %v2391
        %2393 = vmatmul.f32.gmra.mxu0 %v2308
        %v2394 = vpop.f32.mrf.mxu0
        %v2395 = vadd.f32 0.0, %v2394
        %2396 = vmatmul.f32.gmra.mxu0 %v2309
        %v2397 = vpop.f32.mrf.mxu0
        %v2398 = vadd.f32 0.0, %v2397
        %2399 = vmatmul.f32.gmra.mxu0 %v2310
        %v2400 = vpop.f32.mrf.mxu0
        %v2401 = vadd.f32 0.0, %v2400
        %2402 = vmatmul.f32.gmra.mxu0 %v2311
        %v2403 = vpop.f32.mrf.mxu0
        %v2404 = vadd.f32 0.0, %v2403
        %2405 = vmatmul.f32.gmra.mxu0 %v2312
        %v2406 = vpop.f32.mrf.mxu0
        %v2407 = vadd.f32 0.0, %v2406
        %2408 = vmatmul.f32.gmra.mxu0 %v2313
        %v2409 = vpop.f32.mrf.mxu0
        %v2410 = vadd.f32 0.0, %v2409
        %2411 = vmatmul.f32.gmra.mxu0 %v2314
        %v2412 = vpop.f32.mrf.mxu0
        %v2413 = vadd.f32 0.0, %v2412
        %2414 = vmatmul.f32.gmra.mxu0 %v2315
        %v2415 = vpop.f32.mrf.mxu0
        %v2416 = vadd.f32 0.0, %v2415
        %2417 = vmatmul.f32.gmra.mxu0 %v2316
        %v2418 = vpop.f32.mrf.mxu0
        %v2419 = vadd.f32 0.0, %v2418
        %2420 = vmatmul.f32.gmra.mxu0 %v2317
        %v2421 = vpop.f32.mrf.mxu0
        %v2422 = vadd.f32 0.0, %v2421
        %2423 = vmatmul.f32.gmra.mxu0 %v2318
        %v2424 = vpop.f32.mrf.mxu0
        %v2425 = vadd.f32 0.0, %v2424
        %2426 = vmatmul.f32.gmra.mxu0 %v2319
        %v2427 = vpop.f32.mrf.mxu0
        %v2428 = vadd.f32 0.0, %v2427
        %2429 = vmatmul.f32.gmra.mxu0 %v2320
        %v2430 = vpop.f32.mrf.mxu0
        %v2431 = vadd.f32 0.0, %v2430
        %2432 = vmatmul.f32.gmra.mxu0 %v2321
        %v2433 = vpop.f32.mrf.mxu0
        %v2434 = vadd.f32 0.0, %v2433
        %2435 = vmatmul.f32.gmra.mxu0 %v2322
        %v2436 = vpop.f32.mrf.mxu0
        %v2437 = vadd.f32 0.0, %v2436
        %2438 = vmatmul.f32.gmra.mxu0 %v2323
        %v2439 = vpop.f32.mrf.mxu0
        %v2440 = vadd.f32 0.0, %v2439
        %2441 = vmatmul.f32.gmra.mxu0 %v2324
        %v2442 = vpop.f32.mrf.mxu0
        %v2443 = vadd.f32 0.0, %v2442
        %2444 = vmatmul.f32.gmra.mxu0 %v2325
        %v2445 = vpop.f32.mrf.mxu0
        %v2446 = vadd.f32 0.0, %v2445
        %2447 = vmatmul.f32.gmra.mxu0 %v2326
        %v2448 = vpop.f32.mrf.mxu0
        %v2449 = vadd.f32 0.0, %v2448
        %2450 = vmatmul.f32.gmra.mxu0 %v2327
        %v2451 = vpop.f32.mrf.mxu0
        %v2452 = vadd.f32 0.0, %v2451
        %2453 = vmatmul.f32.gmra.mxu0 %v2328
        %v2454 = vpop.f32.mrf.mxu0
        %v2455 = vadd.f32 0.0, %v2454
        %2456 = vmatmul.f32.gmra.mxu0 %v2329
        %v2457 = vpop.f32.mrf.mxu0
        %v2458 = vadd.f32 0.0, %v2457
        %2459 = vmatmul.f32.gmra.mxu0 %v2330
        %v2460 = vpop.f32.mrf.mxu0
        %v2461 = vadd.f32 0.0, %v2460
        %2462 = vmatmul.f32.gmra.mxu0 %v2331
        %v2463 = vpop.f32.mrf.mxu0
        %v2464 = vadd.f32 0.0, %v2463
        %2465 = vmatmul.f32.gmra.mxu0 %v2332
        %v2466 = vpop.f32.mrf.mxu0
        %v2467 = vadd.f32 0.0, %v2466
        %2468 = vmatmul.f32.gmra.mxu0 %v2333
        %v2469 = vpop.f32.mrf.mxu0
        %v2470 = vadd.f32 0.0, %v2469
        %2471 = vmatmul.f32.gmra.mxu0 %v2334
        %v2472 = vpop.f32.mrf.mxu0
        %v2473 = vadd.f32 0.0, %v2472
        %2474 = vmatmul.f32.gmra.mxu0 %v2335
        %v2475 = vpop.f32.mrf.mxu0
        %v2476 = vadd.f32 0.0, %v2475
        %2477 = vdwg.mxu0
        %v2478 = vadd.f32 %v2264, %v2371
        %v2479 = vadd.f32 %v2265, %v2374
        %v2480 = vadd.f32 %v2266, %v2377
        %v2481 = vadd.f32 %v2267, %v2380
        %v2482 = vadd.f32 %v2268, %v2383
        %v2483 = vadd.f32 %v2269, %v2386
        %v2484 = vadd.f32 %v2270, %v2389
        %v2485 = vadd.f32 %v2271, %v2392
        %v2486 = vadd.f32 %v2272, %v2395
        %v2487 = vadd.f32 %v2273, %v2398
        %v2488 = vadd.f32 %v2274, %v2401
        %v2489 = vadd.f32 %v2275, %v2404
        %v2490 = vadd.f32 %v2276, %v2407
        %v2491 = vadd.f32 %v2277, %v2410
        %v2492 = vadd.f32 %v2278, %v2413
        %v2493 = vadd.f32 %v2279, %v2416
        %v2494 = vadd.f32 %v2280, %v2419
        %v2495 = vadd.f32 %v2281, %v2422
        %v2496 = vadd.f32 %v2282, %v2425
        %v2497 = vadd.f32 %v2283, %v2428
        %v2498 = vadd.f32 %v2284, %v2431
        %v2499 = vadd.f32 %v2285, %v2434
        %v2500 = vadd.f32 %v2286, %v2437
        %v2501 = vadd.f32 %v2287, %v2440
        %v2502 = vadd.f32 %v2288, %v2443
        %v2503 = vadd.f32 %v2289, %v2446
        %v2504 = vadd.f32 %v2290, %v2449
        %v2505 = vadd.f32 %v2291, %v2452
        %v2506 = vadd.f32 %v2292, %v2455
        %v2507 = vadd.f32 %v2293, %v2458
        %v2508 = vadd.f32 %v2294, %v2461
        %v2509 = vadd.f32 %v2295, %v2464
        %v2510 = vadd.f32 %v2296, %v2467
        %v2511 = vadd.f32 %v2297, %v2470
        %v2512 = vadd.f32 %v2298, %v2473
        %v2513 = vadd.f32 %v2299, %v2476
        %2514 = vst [vmem:[#allocation2] sm:$0xff] %v2478
        %2515 = vst [vmem:[#allocation2 + $0x8] sm:$0xff] %v2479
        %2516 = vst [vmem:[#allocation2 + $0x10] sm:$0xff] %v2480
        %2517 = vst [vmem:[#allocation2 + $0x18] sm:$0xff] %v2481
        %2518 = vst [vmem:[#allocation2 + $0x20] sm:$0xff] %v2482
        %2519 = vst [vmem:[#allocation2 + $0x28] sm:$0xff] %v2483
        %2520 = vst [vmem:[#allocation2 + $0x30] sm:$0xff] %v2484
        %2521 = vst [vmem:[#allocation2 + $0x38] sm:$0xff] %v2485
        %2522 = vst [vmem:[#allocation2 + $0x40] sm:$0xff] %v2486
        %2523 = vst [vmem:[#allocation2 + $0x48] sm:$0xff] %v2487
        %2524 = vst [vmem:[#allocation2 + $0x50] sm:$0xff] %v2488
        %2525 = vst [vmem:[#allocation2 + $0x58] sm:$0xff] %v2489
        %2526 = vst [vmem:[#allocation2 + $0x60] sm:$0xff] %v2490
        %2527 = vst [vmem:[#allocation2 + $0x68] sm:$0xff] %v2491
        %2528 = vst [vmem:[#allocation2 + $0x70] sm:$0xff] %v2492
        %2529 = vst [vmem:[#allocation2 + $0x78] sm:$0xff] %v2493
        %2530 = vst [vmem:[#allocation2 + $0x80] sm:$0xff] %v2494
        %2531 = vst [vmem:[#allocation2 + $0x88] sm:$0xff] %v2495
        %2532 = vst [vmem:[#allocation2 + $0x90] sm:$0xff] %v2496
        %2533 = vst [vmem:[#allocation2 + $0x98] sm:$0xff] %v2497
        %2534 = vst [vmem:[#allocation2 + $0xa0] sm:$0xff] %v2498
        %2535 = vst [vmem:[#allocation2 + $0xa8] sm:$0xff] %v2499
        %2536 = vst [vmem:[#allocation2 + $0xb0] sm:$0xff] %v2500
        %2537 = vst [vmem:[#allocation2 + $0xb8] sm:$0xff] %v2501
        %2538 = vst [vmem:[#allocation2 + $0xc0] sm:$0xff] %v2502
        %2539 = vst [vmem:[#allocation2 + $0xc8] sm:$0xff] %v2503
        %2540 = vst [vmem:[#allocation2 + $0xd0] sm:$0xff] %v2504
        %2541 = vst [vmem:[#allocation2 + $0xd8] sm:$0xff] %v2505
        %2542 = vst [vmem:[#allocation2 + $0xe0] sm:$0xff] %v2506
        %2543 = vst [vmem:[#allocation2 + $0xe8] sm:$0xff] %v2507
        %2544 = vst [vmem:[#allocation2 + $0xf0] sm:$0xff] %v2508
        %2545 = vst [vmem:[#allocation2 + $0xf8] sm:$0xff] %v2509
        %2546 = vst [vmem:[#allocation2 + $0x100] sm:$0xff] %v2510
        %2547 = vst [vmem:[#allocation2 + $0x108] sm:$0xff] %v2511
        %2548 = vst [vmem:[#allocation2 + $0x110] sm:$0xff] %v2512
        %2549 = vst [vmem:[#allocation2 + $0x118] sm:$0xff] %v2513
        %v2550 = vld [vmem:[#allocation2] sm:$0xff]
        %v2551 = vld [vmem:[#allocation2 + $0x8] sm:$0xff]
        %v2552 = vld [vmem:[#allocation2 + $0x10] sm:$0xff]
        %v2553 = vld [vmem:[#allocation2 + $0x18] sm:$0xff]
        %v2554 = vld [vmem:[#allocation2 + $0x20] sm:$0xff]
        %v2555 = vld [vmem:[#allocation2 + $0x28] sm:$0xff]
        %v2556 = vld [vmem:[#allocation2 + $0x30] sm:$0xff]
        %v2557 = vld [vmem:[#allocation2 + $0x38] sm:$0xff]
        %v2558 = vld [vmem:[#allocation2 + $0x40] sm:$0xff]
        %v2559 = vld [vmem:[#allocation2 + $0x48] sm:$0xff]
        %v2560 = vld [vmem:[#allocation2 + $0x50] sm:$0xff]
        %v2561 = vld [vmem:[#allocation2 + $0x58] sm:$0xff]
        %v2562 = vld [vmem:[#allocation2 + $0x60] sm:$0xff]
        %v2563 = vld [vmem:[#allocation2 + $0x68] sm:$0xff]
        %v2564 = vld [vmem:[#allocation2 + $0x70] sm:$0xff]
        %v2565 = vld [vmem:[#allocation2 + $0x78] sm:$0xff]
        %v2566 = vld [vmem:[#allocation2 + $0x80] sm:$0xff]
        %v2567 = vld [vmem:[#allocation2 + $0x88] sm:$0xff]
        %v2568 = vld [vmem:[#allocation2 + $0x90] sm:$0xff]
        %v2569 = vld [vmem:[#allocation2 + $0x98] sm:$0xff]
        %v2570 = vld [vmem:[#allocation2 + $0xa0] sm:$0xff]
        %v2571 = vld [vmem:[#allocation2 + $0xa8] sm:$0xff]
        %v2572 = vld [vmem:[#allocation2 + $0xb0] sm:$0xff]
        %v2573 = vld [vmem:[#allocation2 + $0xb8] sm:$0xff]
        %v2574 = vld [vmem:[#allocation2 + $0xc0] sm:$0xff]
        %v2575 = vld [vmem:[#allocation2 + $0xc8] sm:$0xff]
        %v2576 = vld [vmem:[#allocation2 + $0xd0] sm:$0xff]
        %v2577 = vld [vmem:[#allocation2 + $0xd8] sm:$0xff]
        %v2578 = vld [vmem:[#allocation2 + $0xe0] sm:$0xff]
        %v2579 = vld [vmem:[#allocation2 + $0xe8] sm:$0xff]
        %v2580 = vld [vmem:[#allocation2 + $0xf0] sm:$0xff]
        %v2581 = vld [vmem:[#allocation2 + $0xf8] sm:$0xff]
        %v2582 = vld [vmem:[#allocation2 + $0x100] sm:$0xff]
        %v2583 = vld [vmem:[#allocation2 + $0x108] sm:$0xff]
        %v2584 = vld [vmem:[#allocation2 + $0x110] sm:$0xff]
        %v2585 = vld [vmem:[#allocation2 + $0x118] sm:$0xff]
        %v2586 = vld [vmem:[%s222 + $0x26] sm:$0xff]
        %v2587 = vld [vmem:[%s222 + $0x2e] sm:$0xff]
        %v2588 = vld [vmem:[%s222 + $0x36] sm:$0xff]
        %v2589 = vld [vmem:[%s222 + $0x3e] sm:$0xff]
        %v2590 = vld [vmem:[%s222 + $0x46] sm:$0xff]
        %v2591 = vld [vmem:[%s222 + $0x4e] sm:$0xff]
        %v2592 = vld [vmem:[%s222 + $0x56] sm:$0xff]
        %v2593 = vld [vmem:[%s222 + $0x5e] sm:$0xff]
        %v2594 = vld [vmem:[%s222 + $0x66] sm:$0xff]
        %v2595 = vld [vmem:[%s222 + $0x6e] sm:$0xff]
        %v2596 = vld [vmem:[%s222 + $0x76] sm:$0xff]
        %v2597 = vld [vmem:[%s222 + $0x7e] sm:$0xff]
        %v2598 = vld [vmem:[%s222 + $0x86] sm:$0xff]
        %v2599 = vld [vmem:[%s222 + $0x8e] sm:$0xff]
        %v2600 = vld [vmem:[%s222 + $0x96] sm:$0xff]
        %v2601 = vld [vmem:[%s222 + $0x9e] sm:$0xff]
        %v2602 = vld [vmem:[%s222 + $0xa6] sm:$0xff]
        %v2603 = vld [vmem:[%s222 + $0xae] sm:$0xff]
        %v2604 = vld [vmem:[%s222 + $0xb6] sm:$0xff]
        %v2605 = vld [vmem:[%s222 + $0xbe] sm:$0xff]
        %v2606 = vld [vmem:[%s222 + $0xc6] sm:$0xff]
        %v2607 = vld [vmem:[%s222 + $0xce] sm:$0xff]
        %v2608 = vld [vmem:[%s222 + $0xd6] sm:$0xff]
        %v2609 = vld [vmem:[%s222 + $0xde] sm:$0xff]
        %v2610 = vld [vmem:[%s222 + $0xe6] sm:$0xff]
        %v2611 = vld [vmem:[%s222 + $0xee] sm:$0xff]
        %v2612 = vld [vmem:[%s222 + $0xf6] sm:$0xff]
        %v2613 = vld [vmem:[%s222 + $0xfe] sm:$0xff]
        %v2614 = vld [vmem:[%s222 + $0x106] sm:$0xff]
        %v2615 = vld [vmem:[%s222 + $0x10e] sm:$0xff]
        %v2616 = vld [vmem:[%s222 + $0x116] sm:$0xff]
        %v2617 = vld [vmem:[%s222 + $0x11e] sm:$0xff]
        %v2618 = vld [vmem:[%s222 + $0x126] sm:$0xff]
        %v2619 = vld [vmem:[%s222 + $0x12e] sm:$0xff]
        %v2620 = vld [vmem:[%s222 + $0x136] sm:$0xff]
        %v2621 = vld [vmem:[%s222 + $0x13e] sm:$0xff]
        %s2622 = scalar_lea.vmem %s1, 1024
        %v2623 = vld [vmem:[%s2622] sm:$0xff]
        %v2624 = vld [vmem:[%s2622 + $0x8] sm:$0xff]
        %v2625 = vld [vmem:[%s2622 + $0x10] sm:$0xff]
        %v2626 = vld [vmem:[%s2622 + $0x18] sm:$0xff]
        %v2627 = vld [vmem:[%s2622 + $0x20] sm:$0xff]
        %v2628 = vld [vmem:[%s2622 + $0x28] sm:$0xff]
        %v2629 = vld [vmem:[%s2622 + $0x30] sm:$0xff]
        %v2630 = vld [vmem:[%s2622 + $0x38] sm:$0xff]
        %v2631 = vld [vmem:[%s2622 + $0x40] sm:$0xff]
        %v2632 = vld [vmem:[%s2622 + $0x48] sm:$0xff]
        %v2633 = vld [vmem:[%s2622 + $0x50] sm:$0xff]
        %v2634 = vld [vmem:[%s2622 + $0x58] sm:$0xff]
        %v2635 = vld [vmem:[%s2622 + $0x60] sm:$0xff]
        %v2636 = vld [vmem:[%s2622 + $0x68] sm:$0xff]
        %v2637 = vld [vmem:[%s2622 + $0x70] sm:$0xff]
        %v2638 = vld [vmem:[%s2622 + $0x78] sm:$0xff]
        %2639 = vmatpush.msra.mxu0 %v2638
        %2640 = vmatpush.msra.mxu0 %v2637
        %2641 = vmatpush.msra.mxu0 %v2636
        %2642 = vmatpush.msra.mxu0 %v2635
        %2643 = vmatpush.msra.mxu0 %v2634
        %2644 = vmatpush.msra.mxu0 %v2633
        %2645 = vmatpush.msra.mxu0 %v2632
        %2646 = vmatpush.msra.mxu0 %v2631
        %2647 = vmatpush.msra.mxu0 %v2630
        %2648 = vmatpush.msra.mxu0 %v2629
        %2649 = vmatpush.msra.mxu0 %v2628
        %2650 = vmatpush.msra.mxu0 %v2627
        %2651 = vmatpush.msra.mxu0 %v2626
        %2652 = vmatpush.msra.mxu0 %v2625
        %2653 = vmatpush.msra.mxu0 %v2624
        %2654 = vmatpush.msra.mxu0 %v2623
        %2655 = vmatmul.f32.gmra.mxu0 %v2586
        %v2656 = vpop.f32.mrf.mxu0
        %v2657 = vadd.f32 0.0, %v2656
        %2658 = vmatmul.f32.gmra.mxu0 %v2587
        %v2659 = vpop.f32.mrf.mxu0
        %v2660 = vadd.f32 0.0, %v2659
        %2661 = vmatmul.f32.gmra.mxu0 %v2588
        %v2662 = vpop.f32.mrf.mxu0
        %v2663 = vadd.f32 0.0, %v2662
        %2664 = vmatmul.f32.gmra.mxu0 %v2589
        %v2665 = vpop.f32.mrf.mxu0
        %v2666 = vadd.f32 0.0, %v2665
        %2667 = vmatmul.f32.gmra.mxu0 %v2590
        %v2668 = vpop.f32.mrf.mxu0
        %v2669 = vadd.f32 0.0, %v2668
        %2670 = vmatmul.f32.gmra.mxu0 %v2591
        %v2671 = vpop.f32.mrf.mxu0
        %v2672 = vadd.f32 0.0, %v2671
        %2673 = vmatmul.f32.gmra.mxu0 %v2592
        %v2674 = vpop.f32.mrf.mxu0
        %v2675 = vadd.f32 0.0, %v2674
        %2676 = vmatmul.f32.gmra.mxu0 %v2593
        %v2677 = vpop.f32.mrf.mxu0
        %v2678 = vadd.f32 0.0, %v2677
        %2679 = vmatmul.f32.gmra.mxu0 %v2594
        %v2680 = vpop.f32.mrf.mxu0
        %v2681 = vadd.f32 0.0, %v2680
        %2682 = vmatmul.f32.gmra.mxu0 %v2595
        %v2683 = vpop.f32.mrf.mxu0
        %v2684 = vadd.f32 0.0, %v2683
        %2685 = vmatmul.f32.gmra.mxu0 %v2596
        %v2686 = vpop.f32.mrf.mxu0
        %v2687 = vadd.f32 0.0, %v2686
        %2688 = vmatmul.f32.gmra.mxu0 %v2597
        %v2689 = vpop.f32.mrf.mxu0
        %v2690 = vadd.f32 0.0, %v2689
        %2691 = vmatmul.f32.gmra.mxu0 %v2598
        %v2692 = vpop.f32.mrf.mxu0
        %v2693 = vadd.f32 0.0, %v2692
        %2694 = vmatmul.f32.gmra.mxu0 %v2599
        %v2695 = vpop.f32.mrf.mxu0
        %v2696 = vadd.f32 0.0, %v2695
        %2697 = vmatmul.f32.gmra.mxu0 %v2600
        %v2698 = vpop.f32.mrf.mxu0
        %v2699 = vadd.f32 0.0, %v2698
        %2700 = vmatmul.f32.gmra.mxu0 %v2601
        %v2701 = vpop.f32.mrf.mxu0
        %v2702 = vadd.f32 0.0, %v2701
        %2703 = vmatmul.f32.gmra.mxu0 %v2602
        %v2704 = vpop.f32.mrf.mxu0
        %v2705 = vadd.f32 0.0, %v2704
        %2706 = vmatmul.f32.gmra.mxu0 %v2603
        %v2707 = vpop.f32.mrf.mxu0
        %v2708 = vadd.f32 0.0, %v2707
        %2709 = vmatmul.f32.gmra.mxu0 %v2604
        %v2710 = vpop.f32.mrf.mxu0
        %v2711 = vadd.f32 0.0, %v2710
        %2712 = vmatmul.f32.gmra.mxu0 %v2605
        %v2713 = vpop.f32.mrf.mxu0
        %v2714 = vadd.f32 0.0, %v2713
        %2715 = vmatmul.f32.gmra.mxu0 %v2606
        %v2716 = vpop.f32.mrf.mxu0
        %v2717 = vadd.f32 0.0, %v2716
        %2718 = vmatmul.f32.gmra.mxu0 %v2607
        %v2719 = vpop.f32.mrf.mxu0
        %v2720 = vadd.f32 0.0, %v2719
        %2721 = vmatmul.f32.gmra.mxu0 %v2608
        %v2722 = vpop.f32.mrf.mxu0
        %v2723 = vadd.f32 0.0, %v2722
        %2724 = vmatmul.f32.gmra.mxu0 %v2609
        %v2725 = vpop.f32.mrf.mxu0
        %v2726 = vadd.f32 0.0, %v2725
        %2727 = vmatmul.f32.gmra.mxu0 %v2610
        %v2728 = vpop.f32.mrf.mxu0
        %v2729 = vadd.f32 0.0, %v2728
        %2730 = vmatmul.f32.gmra.mxu0 %v2611
        %v2731 = vpop.f32.mrf.mxu0
        %v2732 = vadd.f32 0.0, %v2731
        %2733 = vmatmul.f32.gmra.mxu0 %v2612
        %v2734 = vpop.f32.mrf.mxu0
        %v2735 = vadd.f32 0.0, %v2734
        %2736 = vmatmul.f32.gmra.mxu0 %v2613
        %v2737 = vpop.f32.mrf.mxu0
        %v2738 = vadd.f32 0.0, %v2737
        %2739 = vmatmul.f32.gmra.mxu0 %v2614
        %v2740 = vpop.f32.mrf.mxu0
        %v2741 = vadd.f32 0.0, %v2740
        %2742 = vmatmul.f32.gmra.mxu0 %v2615
        %v2743 = vpop.f32.mrf.mxu0
        %v2744 = vadd.f32 0.0, %v2743
        %2745 = vmatmul.f32.gmra.mxu0 %v2616
        %v2746 = vpop.f32.mrf.mxu0
        %v2747 = vadd.f32 0.0, %v2746
        %2748 = vmatmul.f32.gmra.mxu0 %v2617
        %v2749 = vpop.f32.mrf.mxu0
        %v2750 = vadd.f32 0.0, %v2749
        %2751 = vmatmul.f32.gmra.mxu0 %v2618
        %v2752 = vpop.f32.mrf.mxu0
        %v2753 = vadd.f32 0.0, %v2752
        %2754 = vmatmul.f32.gmra.mxu0 %v2619
        %v2755 = vpop.f32.mrf.mxu0
        %v2756 = vadd.f32 0.0, %v2755
        %2757 = vmatmul.f32.gmra.mxu0 %v2620
        %v2758 = vpop.f32.mrf.mxu0
        %v2759 = vadd.f32 0.0, %v2758
        %2760 = vmatmul.f32.gmra.mxu0 %v2621
        %v2761 = vpop.f32.mrf.mxu0
        %v2762 = vadd.f32 0.0, %v2761
        %2763 = vdwg.mxu0
        %v2764 = vadd.f32 %v2550, %v2657
        %v2765 = vadd.f32 %v2551, %v2660
        %v2766 = vadd.f32 %v2552, %v2663
        %v2767 = vadd.f32 %v2553, %v2666
        %v2768 = vadd.f32 %v2554, %v2669
        %v2769 = vadd.f32 %v2555, %v2672
        %v2770 = vadd.f32 %v2556, %v2675
        %v2771 = vadd.f32 %v2557, %v2678
        %v2772 = vadd.f32 %v2558, %v2681
        %v2773 = vadd.f32 %v2559, %v2684
        %v2774 = vadd.f32 %v2560, %v2687
        %v2775 = vadd.f32 %v2561, %v2690
        %v2776 = vadd.f32 %v2562, %v2693
        %v2777 = vadd.f32 %v2563, %v2696
        %v2778 = vadd.f32 %v2564, %v2699
        %v2779 = vadd.f32 %v2565, %v2702
        %v2780 = vadd.f32 %v2566, %v2705
        %v2781 = vadd.f32 %v2567, %v2708
        %v2782 = vadd.f32 %v2568, %v2711
        %v2783 = vadd.f32 %v2569, %v2714
        %v2784 = vadd.f32 %v2570, %v2717
        %v2785 = vadd.f32 %v2571, %v2720
        %v2786 = vadd.f32 %v2572, %v2723
        %v2787 = vadd.f32 %v2573, %v2726
        %v2788 = vadd.f32 %v2574, %v2729
        %v2789 = vadd.f32 %v2575, %v2732
        %v2790 = vadd.f32 %v2576, %v2735
        %v2791 = vadd.f32 %v2577, %v2738
        %v2792 = vadd.f32 %v2578, %v2741
        %v2793 = vadd.f32 %v2579, %v2744
        %v2794 = vadd.f32 %v2580, %v2747
        %v2795 = vadd.f32 %v2581, %v2750
        %v2796 = vadd.f32 %v2582, %v2753
        %v2797 = vadd.f32 %v2583, %v2756
        %v2798 = vadd.f32 %v2584, %v2759
        %v2799 = vadd.f32 %v2585, %v2762
        %2800 = vst [vmem:[#allocation2] sm:$0xff] %v2764
        %2801 = vst [vmem:[#allocation2 + $0x8] sm:$0xff] %v2765
        %2802 = vst [vmem:[#allocation2 + $0x10] sm:$0xff] %v2766
        %2803 = vst [vmem:[#allocation2 + $0x18] sm:$0xff] %v2767
        %2804 = vst [vmem:[#allocation2 + $0x20] sm:$0xff] %v2768
        %2805 = vst [vmem:[#allocation2 + $0x28] sm:$0xff] %v2769
        %2806 = vst [vmem:[#allocation2 + $0x30] sm:$0xff] %v2770
        %2807 = vst [vmem:[#allocation2 + $0x38] sm:$0xff] %v2771
        %2808 = vst [vmem:[#allocation2 + $0x40] sm:$0xff] %v2772
        %2809 = vst [vmem:[#allocation2 + $0x48] sm:$0xff] %v2773
        %2810 = vst [vmem:[#allocation2 + $0x50] sm:$0xff] %v2774
        %2811 = vst [vmem:[#allocation2 + $0x58] sm:$0xff] %v2775
        %2812 = vst [vmem:[#allocation2 + $0x60] sm:$0xff] %v2776
        %2813 = vst [vmem:[#allocation2 + $0x68] sm:$0xff] %v2777
        %2814 = vst [vmem:[#allocation2 + $0x70] sm:$0xff] %v2778
        %2815 = vst [vmem:[#allocation2 + $0x78] sm:$0xff] %v2779
        %2816 = vst [vmem:[#allocation2 + $0x80] sm:$0xff] %v2780
        %2817 = vst [vmem:[#allocation2 + $0x88] sm:$0xff] %v2781
        %2818 = vst [vmem:[#allocation2 + $0x90] sm:$0xff] %v2782
        %2819 = vst [vmem:[#allocation2 + $0x98] sm:$0xff] %v2783
        %2820 = vst [vmem:[#allocation2 + $0xa0] sm:$0xff] %v2784
        %2821 = vst [vmem:[#allocation2 + $0xa8] sm:$0xff] %v2785
        %2822 = vst [vmem:[#allocation2 + $0xb0] sm:$0xff] %v2786
        %2823 = vst [vmem:[#allocation2 + $0xb8] sm:$0xff] %v2787
        %2824 = vst [vmem:[#allocation2 + $0xc0] sm:$0xff] %v2788
        %2825 = vst [vmem:[#allocation2 + $0xc8] sm:$0xff] %v2789
        %2826 = vst [vmem:[#allocation2 + $0xd0] sm:$0xff] %v2790
        %2827 = vst [vmem:[#allocation2 + $0xd8] sm:$0xff] %v2791
        %2828 = vst [vmem:[#allocation2 + $0xe0] sm:$0xff] %v2792
        %2829 = vst [vmem:[#allocation2 + $0xe8] sm:$0xff] %v2793
        %2830 = vst [vmem:[#allocation2 + $0xf0] sm:$0xff] %v2794
        %2831 = vst [vmem:[#allocation2 + $0xf8] sm:$0xff] %v2795
        %2832 = vst [vmem:[#allocation2 + $0x100] sm:$0xff] %v2796
        %2833 = vst [vmem:[#allocation2 + $0x108] sm:$0xff] %v2797
        %2834 = vst [vmem:[#allocation2 + $0x110] sm:$0xff] %v2798
        %2835 = vst [vmem:[#allocation2 + $0x118] sm:$0xff] %v2799
        %v2836 = vld [vmem:[#allocation2] sm:$0xff]
        %v2837 = vld [vmem:[#allocation2 + $0x8] sm:$0xff]
        %v2838 = vld [vmem:[#allocation2 + $0x10] sm:$0xff]
        %v2839 = vld [vmem:[#allocation2 + $0x18] sm:$0xff]
        %v2840 = vld [vmem:[#allocation2 + $0x20] sm:$0xff]
        %v2841 = vld [vmem:[#allocation2 + $0x28] sm:$0xff]
        %v2842 = vld [vmem:[#allocation2 + $0x30] sm:$0xff]
        %v2843 = vld [vmem:[#allocation2 + $0x38] sm:$0xff]
        %v2844 = vld [vmem:[#allocation2 + $0x40] sm:$0xff]
        %v2845 = vld [vmem:[#allocation2 + $0x48] sm:$0xff]
        %v2846 = vld [vmem:[#allocation2 + $0x50] sm:$0xff]
        %v2847 = vld [vmem:[#allocation2 + $0x58] sm:$0xff]
        %v2848 = vld [vmem:[#allocation2 + $0x60] sm:$0xff]
        %v2849 = vld [vmem:[#allocation2 + $0x68] sm:$0xff]
        %v2850 = vld [vmem:[#allocation2 + $0x70] sm:$0xff]
        %v2851 = vld [vmem:[#allocation2 + $0x78] sm:$0xff]
        %v2852 = vld [vmem:[#allocation2 + $0x80] sm:$0xff]
        %v2853 = vld [vmem:[#allocation2 + $0x88] sm:$0xff]
        %v2854 = vld [vmem:[#allocation2 + $0x90] sm:$0xff]
        %v2855 = vld [vmem:[#allocation2 + $0x98] sm:$0xff]
        %v2856 = vld [vmem:[#allocation2 + $0xa0] sm:$0xff]
        %v2857 = vld [vmem:[#allocation2 + $0xa8] sm:$0xff]
        %v2858 = vld [vmem:[#allocation2 + $0xb0] sm:$0xff]
        %v2859 = vld [vmem:[#allocation2 + $0xb8] sm:$0xff]
        %v2860 = vld [vmem:[#allocation2 + $0xc0] sm:$0xff]
        %v2861 = vld [vmem:[#allocation2 + $0xc8] sm:$0xff]
        %v2862 = vld [vmem:[#allocation2 + $0xd0] sm:$0xff]
        %v2863 = vld [vmem:[#allocation2 + $0xd8] sm:$0xff]
        %v2864 = vld [vmem:[#allocation2 + $0xe0] sm:$0xff]
        %v2865 = vld [vmem:[#allocation2 + $0xe8] sm:$0xff]
        %v2866 = vld [vmem:[#allocation2 + $0xf0] sm:$0xff]
        %v2867 = vld [vmem:[#allocation2 + $0xf8] sm:$0xff]
        %v2868 = vld [vmem:[#allocation2 + $0x100] sm:$0xff]
        %v2869 = vld [vmem:[#allocation2 + $0x108] sm:$0xff]
        %v2870 = vld [vmem:[#allocation2 + $0x110] sm:$0xff]
        %v2871 = vld [vmem:[#allocation2 + $0x118] sm:$0xff]
        %v2872 = vmax.f32 %v2836, 0.0
        %v2873 = vmax.f32 %v2837, 0.0
        %v2874 = vmax.f32 %v2838, 0.0
        %v2875 = vmax.f32 %v2839, 0.0
        %v2876 = vmax.f32 %v2840, 0.0
        %v2877 = vmax.f32 %v2841, 0.0
        %v2878 = vmax.f32 %v2842, 0.0
        %v2879 = vmax.f32 %v2843, 0.0
        %v2880 = vmax.f32 %v2844, 0.0
        %v2881 = vmax.f32 %v2845, 0.0
        %v2882 = vmax.f32 %v2846, 0.0
        %v2883 = vmax.f32 %v2847, 0.0
        %v2884 = vmax.f32 %v2848, 0.0
        %v2885 = vmax.f32 %v2849, 0.0
        %v2886 = vmax.f32 %v2850, 0.0
        %v2887 = vmax.f32 %v2851, 0.0
        %v2888 = vmax.f32 %v2852, 0.0
        %v2889 = vmax.f32 %v2853, 0.0
        %v2890 = vmax.f32 %v2854, 0.0
        %v2891 = vmax.f32 %v2855, 0.0
        %v2892 = vmax.f32 %v2856, 0.0
        %v2893 = vmax.f32 %v2857, 0.0
        %v2894 = vmax.f32 %v2858, 0.0
        %v2895 = vmax.f32 %v2859, 0.0
        %v2896 = vmax.f32 %v2860, 0.0
        %v2897 = vmax.f32 %v2861, 0.0
        %v2898 = vmax.f32 %v2862, 0.0
        %v2899 = vmax.f32 %v2863, 0.0
        %v2900 = vmax.f32 %v2864, 0.0
        %v2901 = vmax.f32 %v2865, 0.0
        %v2902 = vmax.f32 %v2866, 0.0
        %v2903 = vmax.f32 %v2867, 0.0
        %v2904 = vmax.f32 %v2868, 0.0
        %v2905 = vmax.f32 %v2869, 0.0
        %v2906 = vmax.f32 %v2870, 0.0
        %v2907 = vmax.f32 %v2871, 0.0
        %2908 = vst [vmem:[#allocation2] sm:$0xff] %v2872
        %2909 = vst [vmem:[#allocation2 + $0x8] sm:$0xff] %v2873
        %2910 = vst [vmem:[#allocation2 + $0x10] sm:$0xff] %v2874
        %2911 = vst [vmem:[#allocation2 + $0x18] sm:$0xff] %v2875
        %2912 = vst [vmem:[#allocation2 + $0x20] sm:$0xff] %v2876
        %2913 = vst [vmem:[#allocation2 + $0x28] sm:$0xff] %v2877
        %2914 = vst [vmem:[#allocation2 + $0x30] sm:$0xff] %v2878
        %2915 = vst [vmem:[#allocation2 + $0x38] sm:$0xff] %v2879
        %2916 = vst [vmem:[#allocation2 + $0x40] sm:$0xff] %v2880
        %2917 = vst [vmem:[#allocation2 + $0x48] sm:$0xff] %v2881
        %2918 = vst [vmem:[#allocation2 + $0x50] sm:$0xff] %v2882
        %2919 = vst [vmem:[#allocation2 + $0x58] sm:$0xff] %v2883
        %2920 = vst [vmem:[#allocation2 + $0x60] sm:$0xff] %v2884
        %2921 = vst [vmem:[#allocation2 + $0x68] sm:$0xff] %v2885
        %2922 = vst [vmem:[#allocation2 + $0x70] sm:$0xff] %v2886
        %2923 = vst [vmem:[#allocation2 + $0x78] sm:$0xff] %v2887
        %2924 = vst [vmem:[#allocation2 + $0x80] sm:$0xff] %v2888
        %2925 = vst [vmem:[#allocation2 + $0x88] sm:$0xff] %v2889
        %2926 = vst [vmem:[#allocation2 + $0x90] sm:$0xff] %v2890
        %2927 = vst [vmem:[#allocation2 + $0x98] sm:$0xff] %v2891
        %2928 = vst [vmem:[#allocation2 + $0xa0] sm:$0xff] %v2892
        %2929 = vst [vmem:[#allocation2 + $0xa8] sm:$0xff] %v2893
        %2930 = vst [vmem:[#allocation2 + $0xb0] sm:$0xff] %v2894
        %2931 = vst [vmem:[#allocation2 + $0xb8] sm:$0xff] %v2895
        %2932 = vst [vmem:[#allocation2 + $0xc0] sm:$0xff] %v2896
        %2933 = vst [vmem:[#allocation2 + $0xc8] sm:$0xff] %v2897
        %2934 = vst [vmem:[#allocation2 + $0xd0] sm:$0xff] %v2898
        %2935 = vst [vmem:[#allocation2 + $0xd8] sm:$0xff] %v2899
        %2936 = vst [vmem:[#allocation2 + $0xe0] sm:$0xff] %v2900
        %2937 = vst [vmem:[#allocation2 + $0xe8] sm:$0xff] %v2901
        %2938 = vst [vmem:[#allocation2 + $0xf0] sm:$0xff] %v2902
        %2939 = vst [vmem:[#allocation2 + $0xf8] sm:$0xff] %v2903
        %2940 = vst [vmem:[#allocation2 + $0x100] sm:$0xff] %v2904
        %2941 = vst [vmem:[#allocation2 + $0x108] sm:$0xff] %v2905
        %2942 = vst [vmem:[#allocation2 + $0x110] sm:$0xff] %v2906
        %2943 = vst [vmem:[#allocation2 + $0x118] sm:$0xff] %v2907
        %v2944 = vld [vmem:[#allocation2] sm:$0xff]
        %v2945 = vld [vmem:[#allocation2 + $0x8] sm:$0xff]
        %v2946 = vld [vmem:[#allocation2 + $0x10] sm:$0xff]
        %v2947 = vld [vmem:[#allocation2 + $0x18] sm:$0xff]
        %v2948 = vld [vmem:[#allocation2 + $0x20] sm:$0xff]
        %v2949 = vld [vmem:[#allocation2 + $0x28] sm:$0xff]
        %v2950 = vld [vmem:[#allocation2 + $0x30] sm:$0xff]
        %v2951 = vld [vmem:[#allocation2 + $0x38] sm:$0xff]
        %v2952 = vld [vmem:[#allocation2 + $0x40] sm:$0xff]
        %v2953 = vld [vmem:[#allocation2 + $0x48] sm:$0xff]
        %v2954 = vld [vmem:[#allocation2 + $0x50] sm:$0xff]
        %v2955 = vld [vmem:[#allocation2 + $0x58] sm:$0xff]
        %v2956 = vld [vmem:[#allocation2 + $0x60] sm:$0xff]
        %v2957 = vld [vmem:[#allocation2 + $0x68] sm:$0xff]
        %v2958 = vld [vmem:[#allocation2 + $0x70] sm:$0xff]
        %v2959 = vld [vmem:[#allocation2 + $0x78] sm:$0xff]
        %v2960 = vld [vmem:[#allocation2 + $0x80] sm:$0xff]
        %v2961 = vld [vmem:[#allocation2 + $0x88] sm:$0xff]
        %v2962 = vld [vmem:[#allocation2 + $0x90] sm:$0xff]
        %v2963 = vld [vmem:[#allocation2 + $0x98] sm:$0xff]
        %v2964 = vld [vmem:[#allocation2 + $0xa0] sm:$0xff]
        %v2965 = vld [vmem:[#allocation2 + $0xa8] sm:$0xff]
        %v2966 = vld [vmem:[#allocation2 + $0xb0] sm:$0xff]
        %v2967 = vld [vmem:[#allocation2 + $0xb8] sm:$0xff]
        %v2968 = vld [vmem:[#allocation2 + $0xc0] sm:$0xff]
        %v2969 = vld [vmem:[#allocation2 + $0xc8] sm:$0xff]
        %v2970 = vld [vmem:[#allocation2 + $0xd0] sm:$0xff]
        %v2971 = vld [vmem:[#allocation2 + $0xd8] sm:$0xff]
        %v2972 = vld [vmem:[#allocation2 + $0xe0] sm:$0xff]
        %v2973 = vld [vmem:[#allocation2 + $0xe8] sm:$0xff]
        %v2974 = vld [vmem:[#allocation2 + $0xf0] sm:$0xff]
        %v2975 = vld [vmem:[#allocation2 + $0xf8] sm:$0xff]
        %v2976 = vld [vmem:[#allocation2 + $0x100] sm:$0xff]
        %v2977 = vld [vmem:[#allocation2 + $0x108] sm:$0xff]
        %v2978 = vld [vmem:[#allocation2 + $0x110] sm:$0xff]
        %v2979 = vld [vmem:[#allocation2 + $0x118] sm:$0xff]
        %v2980 = vld [vmem:[%s3] sm:$0xff]
        %v2981 = vld [vmem:[%s3 + $0x8] sm:$0xff]
        %v2982 = vld [vmem:[%s3 + $0x10] sm:$0xff]
        %v2983 = vld [vmem:[%s3 + $0x18] sm:$0xff]
        %v2984 = vld [vmem:[%s3 + $0x20] sm:$0xff]
        %v2985 = vld [vmem:[%s3 + $0x28] sm:$0xff]
        %v2986 = vld [vmem:[%s3 + $0x30] sm:$0xff]
        %v2987 = vld [vmem:[%s3 + $0x38] sm:$0xff]
        %v2988 = vld [vmem:[%s3 + $0x40] sm:$0xff]
        %v2989 = vld [vmem:[%s3 + $0x48] sm:$0xff]
        %v2990 = vld [vmem:[%s3 + $0x50] sm:$0xff]
        %v2991 = vld [vmem:[%s3 + $0x58] sm:$0xff]
        %v2992 = vld [vmem:[%s3 + $0x60] sm:$0xff]
        %v2993 = vld [vmem:[%s3 + $0x68] sm:$0xff]
        %v2994 = vld [vmem:[%s3 + $0x70] sm:$0xff]
        %v2995 = vld [vmem:[%s3 + $0x78] sm:$0xff]
        %v2996 = vld [vmem:[%s4] sm:$0x1]
        %v2998 = vperm.slane %v2996, 0
        %3000 = vmatpush.msra.mxu0 %v2995
        %3001 = vmatpush.msra.mxu0 %v2994
        %3002 = vmatpush.msra.mxu0 %v2993
        %3003 = vmatpush.msra.mxu0 %v2992
        %3004 = vmatpush.msra.mxu0 %v2991
        %3005 = vmatpush.msra.mxu0 %v2990
        %3006 = vmatpush.msra.mxu0 %v2989
        %3007 = vmatpush.msra.mxu0 %v2988
        %3008 = vmatpush.msra.mxu0 %v2987
        %3009 = vmatpush.msra.mxu0 %v2986
        %3010 = vmatpush.msra.mxu0 %v2985
        %3011 = vmatpush.msra.mxu0 %v2984
        %3012 = vmatpush.msra.mxu0 %v2983
        %3013 = vmatpush.msra.mxu0 %v2982
        %3014 = vmatpush.msra.mxu0 %v2981
        %3015 = vmatpush.msra.mxu0 %v2980
        %3016 = vmatmul.f32.gmra.mxu0 %v2944
        %v3017 = vpop.f32.mrf.mxu0
        %v3018 = vadd.f32 %v2998, %v3017
        %3019 = vmatmul.f32.gmra.mxu0 %v2945
        %v3020 = vpop.f32.mrf.mxu0
        %v3021 = vadd.f32 %v2998, %v3020
        %3022 = vmatmul.f32.gmra.mxu0 %v2946
        %v3023 = vpop.f32.mrf.mxu0
        %v3024 = vadd.f32 %v2998, %v3023
        %3025 = vmatmul.f32.gmra.mxu0 %v2947
        %v3026 = vpop.f32.mrf.mxu0
        %v3027 = vadd.f32 %v2998, %v3026
        %3028 = vmatmul.f32.gmra.mxu0 %v2948
        %v3029 = vpop.f32.mrf.mxu0
        %v3030 = vadd.f32 %v2998, %v3029
        %3031 = vmatmul.f32.gmra.mxu0 %v2949
        %v3032 = vpop.f32.mrf.mxu0
        %v3033 = vadd.f32 %v2998, %v3032
        %3034 = vmatmul.f32.gmra.mxu0 %v2950
        %v3035 = vpop.f32.mrf.mxu0
        %v3036 = vadd.f32 %v2998, %v3035
        %3037 = vmatmul.f32.gmra.mxu0 %v2951
        %v3038 = vpop.f32.mrf.mxu0
        %v3039 = vadd.f32 %v2998, %v3038
        %3040 = vmatmul.f32.gmra.mxu0 %v2952
        %v3041 = vpop.f32.mrf.mxu0
        %v3042 = vadd.f32 %v2998, %v3041
        %3043 = vmatmul.f32.gmra.mxu0 %v2953
        %v3044 = vpop.f32.mrf.mxu0
        %v3045 = vadd.f32 %v2998, %v3044
        %3046 = vmatmul.f32.gmra.mxu0 %v2954
        %v3047 = vpop.f32.mrf.mxu0
        %v3048 = vadd.f32 %v2998, %v3047
        %3049 = vmatmul.f32.gmra.mxu0 %v2955
        %v3050 = vpop.f32.mrf.mxu0
        %v3051 = vadd.f32 %v2998, %v3050
        %3052 = vmatmul.f32.gmra.mxu0 %v2956
        %v3053 = vpop.f32.mrf.mxu0
        %v3054 = vadd.f32 %v2998, %v3053
        %3055 = vmatmul.f32.gmra.mxu0 %v2957
        %v3056 = vpop.f32.mrf.mxu0
        %v3057 = vadd.f32 %v2998, %v3056
        %3058 = vmatmul.f32.gmra.mxu0 %v2958
        %v3059 = vpop.f32.mrf.mxu0
        %v3060 = vadd.f32 %v2998, %v3059
        %3061 = vmatmul.f32.gmra.mxu0 %v2959
        %v3062 = vpop.f32.mrf.mxu0
        %v3063 = vadd.f32 %v2998, %v3062
        %3064 = vmatmul.f32.gmra.mxu0 %v2960
        %v3065 = vpop.f32.mrf.mxu0
        %v3066 = vadd.f32 %v2998, %v3065
        %3067 = vmatmul.f32.gmra.mxu0 %v2961
        %v3068 = vpop.f32.mrf.mxu0
        %v3069 = vadd.f32 %v2998, %v3068
        %3070 = vmatmul.f32.gmra.mxu0 %v2962
        %v3071 = vpop.f32.mrf.mxu0
        %v3072 = vadd.f32 %v2998, %v3071
        %3073 = vmatmul.f32.gmra.mxu0 %v2963
        %v3074 = vpop.f32.mrf.mxu0
        %v3075 = vadd.f32 %v2998, %v3074
        %3076 = vmatmul.f32.gmra.mxu0 %v2964
        %v3077 = vpop.f32.mrf.mxu0
        %v3078 = vadd.f32 %v2998, %v3077
        %3079 = vmatmul.f32.gmra.mxu0 %v2965
        %v3080 = vpop.f32.mrf.mxu0
        %v3081 = vadd.f32 %v2998, %v3080
        %3082 = vmatmul.f32.gmra.mxu0 %v2966
        %v3083 = vpop.f32.mrf.mxu0
        %v3084 = vadd.f32 %v2998, %v3083
        %3085 = vmatmul.f32.gmra.mxu0 %v2967
        %v3086 = vpop.f32.mrf.mxu0
        %v3087 = vadd.f32 %v2998, %v3086
        %3088 = vmatmul.f32.gmra.mxu0 %v2968
        %v3089 = vpop.f32.mrf.mxu0
        %v3090 = vadd.f32 %v2998, %v3089
        %3091 = vmatmul.f32.gmra.mxu0 %v2969
        %v3092 = vpop.f32.mrf.mxu0
        %v3093 = vadd.f32 %v2998, %v3092
        %3094 = vmatmul.f32.gmra.mxu0 %v2970
        %v3095 = vpop.f32.mrf.mxu0
        %v3096 = vadd.f32 %v2998, %v3095
        %3097 = vmatmul.f32.gmra.mxu0 %v2971
        %v3098 = vpop.f32.mrf.mxu0
        %v3099 = vadd.f32 %v2998, %v3098
        %3100 = vmatmul.f32.gmra.mxu0 %v2972
        %v3101 = vpop.f32.mrf.mxu0
        %v3102 = vadd.f32 %v2998, %v3101
        %3103 = vmatmul.f32.gmra.mxu0 %v2973
        %v3104 = vpop.f32.mrf.mxu0
        %v3105 = vadd.f32 %v2998, %v3104
        %3106 = vmatmul.f32.gmra.mxu0 %v2974
        %v3107 = vpop.f32.mrf.mxu0
        %v3108 = vadd.f32 %v2998, %v3107
        %3109 = vmatmul.f32.gmra.mxu0 %v2975
        %v3110 = vpop.f32.mrf.mxu0
        %v3111 = vadd.f32 %v2998, %v3110
        %3112 = vmatmul.f32.gmra.mxu0 %v2976
        %v3113 = vpop.f32.mrf.mxu0
        %v3114 = vadd.f32 %v2998, %v3113
        %3115 = vmatmul.f32.gmra.mxu0 %v2977
        %v3116 = vpop.f32.mrf.mxu0
        %v3117 = vadd.f32 %v2998, %v3116
        %3118 = vmatmul.f32.gmra.mxu0 %v2978
        %v3119 = vpop.f32.mrf.mxu0
        %v3120 = vadd.f32 %v2998, %v3119
        %3121 = vmatmul.f32.gmra.mxu0 %v2979
        %v3122 = vpop.f32.mrf.mxu0
        %v3123 = vadd.f32 %v2998, %v3122
        %3124 = vdwg.mxu0
        %3125 = vst [vmem:[%s217] sm:$0xff] %v3018
        %3126 = vst [vmem:[%s217 + $0x8] sm:$0xff] %v3021
        %3127 = vst [vmem:[%s217 + $0x10] sm:$0xff] %v3024
        %3128 = vst [vmem:[%s217 + $0x18] sm:$0xff] %v3027
        %3129 = vst [vmem:[%s217 + $0x20] sm:$0xff] %v3030
        %3130 = vst [vmem:[%s217 + $0x28] sm:$0xff] %v3033
        %3131 = vst [vmem:[%s217 + $0x30] sm:$0xff] %v3036
        %3132 = vst [vmem:[%s217 + $0x38] sm:$0xff] %v3039
        %3133 = vst [vmem:[%s217 + $0x40] sm:$0xff] %v3042
        %3134 = vst [vmem:[%s217 + $0x48] sm:$0xff] %v3045
        %3135 = vst [vmem:[%s217 + $0x50] sm:$0xff] %v3048
        %3136 = vst [vmem:[%s217 + $0x58] sm:$0xff] %v3051
        %3137 = vst [vmem:[%s217 + $0x60] sm:$0xff] %v3054
        %3138 = vst [vmem:[%s217 + $0x68] sm:$0xff] %v3057
        %3139 = vst [vmem:[%s217 + $0x70] sm:$0xff] %v3060
        %3140 = vst [vmem:[%s217 + $0x78] sm:$0xff] %v3063
        %3141 = vst [vmem:[%s217 + $0x80] sm:$0xff] %v3066
        %3142 = vst [vmem:[%s217 + $0x88] sm:$0xff] %v3069
        %3143 = vst [vmem:[%s217 + $0x90] sm:$0xff] %v3072
        %3144 = vst [vmem:[%s217 + $0x98] sm:$0xff] %v3075
        %3145 = vst [vmem:[%s217 + $0xa0] sm:$0xff] %v3078
        %3146 = vst [vmem:[%s217 + $0xa8] sm:$0xff] %v3081
        %3147 = vst [vmem:[%s217 + $0xb0] sm:$0xff] %v3084
        %3148 = vst [vmem:[%s217 + $0xb8] sm:$0xff] %v3087
        %3149 = vst [vmem:[%s217 + $0xc0] sm:$0xff] %v3090
        %3150 = vst [vmem:[%s217 + $0xc8] sm:$0xff] %v3093
        %3151 = vst [vmem:[%s217 + $0xd0] sm:$0xff] %v3096
        %3152 = vst [vmem:[%s217 + $0xd8] sm:$0xff] %v3099
        %3153 = vst [vmem:[%s217 + $0xe0] sm:$0xff] %v3102
        %3154 = vst [vmem:[%s217 + $0xe8] sm:$0xff] %v3105
        %3155 = vst [vmem:[%s217 + $0xf0] sm:$0xff] %v3108
        %3156 = vst [vmem:[%s217 + $0xf8] sm:$0xff] %v3111
        %3157 = vst [vmem:[%s217 + $0x100] sm:$0xff] %v3114
        %3158 = vst [vmem:[%s217 + $0x108] sm:$0xff] %v3117
        %3159 = vst [vmem:[%s217 + $0x110] sm:$0xff] %v3120
        %3160 = vst [vmem:[%s217 + $0x118] sm:$0xff] %v3123
        %s3161 = sand.u32 %s137, 1
        %s3162 = scalar_lea.sflag [#allocation4], %s3161
        %s3163 = sand.u32 %s137, 1
        %s3164 = smul.addr %s3163, 288
        %s3165 = scalar_lea.vmem [#allocation3], %s3164
        // Predicated region
        $region41: #{tpu_custom_call.1} parent=39 // pred_check
          %p3166 = pneg %p147
        $region42: #{tpu_custom_call.1} parent=39 // pred_check_branch
          %3168 = sbr.rel (%p3166) target = $region44
        $region43: #{tpu_custom_call.1} parent=39 // pred_region
          %3170 = vsyncadd %s3162, 0
          %s3171 = smul.addr %s19, 36
          %s3172 = smul.addr %s3171, 8
          %s3173 = scalar_lea.hbm %s5, %s3172
          %s3174 = sshll.u32 %s3165, 4
          %s3175 = int_to_ptr.vmem [resolvable:$true] %s3174
          %s3176 = sshll.u32 %s3173, 4
          %s3177 = int_to_ptr.hbm [resolvable:$true] %s3176
          %3182 = dma.vmem_to_hbm [thread:$0]  %s3175, 4608, %s3177, %s3162, 128, 128, 8
        $region44: #{tpu_custom_call.1} parent=39 // pred_fallthru
          _
      $region40: #{tpu_custom_call.1} parent=5 // pred_fallthru
        _
      %p3183 = scmp.le.s32.totalorder 2, %s14
      // Predicated region
      $region45: #{tpu_custom_call.1} parent=5 // pred_check
        %p3184 = pneg %p3183
      $region46: #{tpu_custom_call.1} parent=5 // pred_check_branch
        %3186 = sbr.rel (%p3184) target = $region48
      $region47: #{tpu_custom_call.1} parent=5 // pred_region
        %s3187 = ssub.s32 %s14, 2
        // Predicated region
        $region49: #{tpu_custom_call.1} parent=47 // pred_check
          %p3188 = pneg %p153
        $region50: #{tpu_custom_call.1} parent=47 // pred_check_branch
          %3190 = sbr.rel (%p3188) target = $region52
        $region51: #{tpu_custom_call.1} parent=47 // pred_region
          %s3191 = sand.u32 %s138, 1
          %s3192 = scalar_lea.sflag [#allocation4], %s3191
          %s3193 = sand.u32 %s138, 1
          %s3194 = smul.addr %s3193, 288
          %s3195 = scalar_lea.vmem [#allocation3], %s3194
          %3197 = dma.done %s3192, 4608
        $region52: #{tpu_custom_call.1} parent=47 // pred_fallthru
          _
      $region48: #{tpu_custom_call.1} parent=5 // pred_fallthru
        _
    $region6: #{tpu_custom_call.1} parent=1 // loop_footer
      %s18 = sadd.s32 1, %s14
    $region7: #{tpu_custom_call.1} parent=1 // loop_footer_branch
      %13 = sbr.rel target = $region3
    $region8: #{tpu_custom_call.1} parent=1 // loop_exit
      _
    %3198 = vsyncpa [#allocation4], 1
    %s3199 = scalar_lea.sflag [#allocation4], 1
    %3200 = vsyncpa %s3199, 1

</llo_original>
